<compile_context>
chip_gen: v7x
topology: tpu7x:2x2x1
jax: 0.10.0
libtpu: 0.0.40
codegen_flags: <defaults>
</compile_context>

<pallas_src>
import functools
import math

import jax
import jax.numpy as jnp
from jax.experimental import pallas as pl
from jax.experimental.pallas import tpu as pltpu

D = 640              # hidden dim fixed by the nn.Parameter shapes (640, 640)
PROJ_TM = 512        # M-tile (rows of B*L2) for the K/V pre-projection matmuls
ATTN_TQ = 128        # query-row tile (v5e MXU width; halves live intermediates)
VMEM_LIMIT = 48 << 20   # > v5e/v6e scoped defaults, < v7x 64 MiB physical


def _round_up(x, m):
    return ((x + m - 1) // m) * m


# ---------------------------------------------------------------------------
# Shared in-kernel pieces.
# ---------------------------------------------------------------------------
def _softmax_pv(scores, v, o_ref, attn_ref):
    """Exact-f32 softmax (attn_weights is exported) + bf16-MXU attn @ V."""
    m = jnp.max(scores, axis=-1, keepdims=True)
    e = jnp.exp(scores - m)
    s = jnp.sum(e, axis=-1, keepdims=True)
    inv = 1.0 / s                         # one exact divide per row, not per (row, col)
    attn = e * inv
    attn_ref[...] = attn
    # bf16 inputs -> full MXU rate; f32 accumulation keeps the output accurate.
    o_ref[...] = jnp.dot(attn.astype(jnp.bfloat16), v.astype(jnp.bfloat16),
                         preferred_element_type=jnp.float32)


def _apply_mask(scores, mask_ref):
    keep = mask_ref[...].astype(jnp.int32) != 0       # int8 -> i32 -> bool
    keep = jnp.broadcast_to(keep, scores.shape)       # (1 | rows, L2) -> (rows, L2)
    return jnp.where(keep, scores, -jnp.inf)


# ---------------------------------------------------------------------------
# Fully fused kernel: Q/K/V projections + attention, one grid step per batch.
# ---------------------------------------------------------------------------
def _fused_kernel(x1_ref, x2_ref, wq_ref, wk_ref, wv_ref, o_ref, attn_ref, *, scale):
    q = jnp.dot(x1_ref[...], wq_ref[...], preferred_element_type=jnp.float32) * scale
    k = jnp.dot(x2_ref[...], wk_ref[...], preferred_element_type=jnp.float32)
    v = jnp.dot(x2_ref[...], wv_ref[...], preferred_element_type=jnp.float32)
    scores = jax.lax.dot_general(q, k, dimension_numbers=(((1,), (1,)), ((), ())),
                                 preferred_element_type=jnp.float32)
    _softmax_pv(scores, v, o_ref, attn_ref)


def _fused_kernel_masked(x1_ref, x2_ref, wq_ref, wk_ref, wv_ref, mask_ref,
                         o_ref, attn_ref, *, scale):
    q = jnp.dot(x1_ref[...], wq_ref[...], preferred_element_type=jnp.float32) * scale
    k = jnp.dot(x2_ref[...], wk_ref[...], preferred_element_type=jnp.float32)
    v = jnp.dot(x2_ref[...], wv_ref[...], preferred_element_type=jnp.float32)
    scores = jax.lax.dot_general(q, k, dimension_numbers=(((1,), (1,)), ((), ())),
                                 preferred_element_type=jnp.float32)
    scores = _apply_mask(scores, mask_ref)
    _softmax_pv(scores, v, o_ref, attn_ref)


def _fused_attention(x1, x2, wq, wk, wv, mask, *, scale):
    B, L1p, d = x1.shape
    L2 = x2.shape[1]
    # Weights are grid-invariant -> single-buffered (halves their VMEM footprint).
    in_specs = [
        pl.BlockSpec((None, L1p, d), lambda b: (b, 0, 0)),
        pl.BlockSpec((None, L2, d), lambda b: (b, 0, 0)),
        pl.BlockSpec((d, d), lambda b: (0, 0), pipeline_mode=pl.Buffered(1)),
        pl.BlockSpec((d, d), lambda b: (0, 0), pipeline_mode=pl.Buffered(1)),
        pl.BlockSpec((d, d), lambda b: (0, 0), pipeline_mode=pl.Buffered(1)),
    ]
    args = (x1, x2, wq, wk, wv)
    mask_bytes = 0
    if mask is None:
        kernel = functools.partial(_fused_kernel, scale=scale)
    else:
        kernel = functools.partial(_fused_kernel_masked, scale=scale)
        mb, ml, _ = mask.shape
        if mb > 1:
            mask_idx = lambda b: (b, 0, 0)
        else:
            mask_idx = lambda b: (0, 0, 0)
        in_specs.append(pl.BlockSpec((None, ml, L2), mask_idx))
        args = args + (mask,)
        mask_bytes = mask.size                     # int8: 1 byte per element
    flops = (2 * B * L1p * d * d + 4 * B * L2 * d * d
             + 4 * B * L1p * L2 * d + 6 * B * L1p * L2)
    bytes_accessed = 4 * (B * L1p * d + B * L2 * d + 3 * d * d
                          + B * L1p * d + B * L1p * L2) + mask_bytes

    out, attn = pl.pallas_call(
        kernel,
        out_shape=(jax.ShapeDtypeStruct((B, L1p, d), jnp.float32),
                   jax.ShapeDtypeStruct((B, L1p, L2), jnp.float32)),
        grid=(B,),
        in_specs=in_specs,
        out_specs=[pl.BlockSpec((None, L1p, d), lambda b: (b, 0, 0)),
                   pl.BlockSpec((None, L1p, L2), lambda b: (b, 0, 0))],
        compiler_params=pltpu.CompilerParams(
            dimension_semantics=("parallel",),
            vmem_limit_bytes=VMEM_LIMIT),
        cost_estimate=pl.CostEstimate(flops=flops, transcendentals=B * L1p * L2,
                                      bytes_accessed=bytes_accessed),
    )(*args)
    return out, attn


# ---------------------------------------------------------------------------
# Split path: K/V pre-projected once; Q projection fused into attention.
# ---------------------------------------------------------------------------
def _split_kernel(x1_ref, wq_ref, k_ref, v_ref, o_ref, attn_ref, *, scale):
    q = jnp.dot(x1_ref[...], wq_ref[...], preferred_element_type=jnp.float32) * scale
    scores = jax.lax.dot_general(q, k_ref[...],
                                 dimension_numbers=(((1,), (1,)), ((), ())),
                                 preferred_element_type=jnp.float32)
    _softmax_pv(scores, v_ref[...], o_ref, attn_ref)


def _split_kernel_masked(x1_ref, wq_ref, k_ref, v_ref, mask_ref, o_ref, attn_ref,
                         *, scale):
    q = jnp.dot(x1_ref[...], wq_ref[...], preferred_element_type=jnp.float32) * scale
    scores = jax.lax.dot_general(q, k_ref[...],
                                 dimension_numbers=(((1,), (1,)), ((), ())),
                                 preferred_element_type=jnp.float32)
    scores = _apply_mask(scores, mask_ref)
    _softmax_pv(scores, v_ref[...], o_ref, attn_ref)


def _split_attention(x1, wq, k, v, mask, *, scale, tq):
    B, L1p, d = x1.shape
    L2 = k.shape[1]
    nt = L1p // tq
    in_specs = [
        pl.BlockSpec((None, tq, d), lambda b, i: (b, i, 0)),
        pl.BlockSpec((d, d), lambda b, i: (0, 0), pipeline_mode=pl.Buffered(1)),
        # K/V: constant over the query-tile axis; single-buffered (re-DMA only at
        # batch boundaries, halves the resident VMEM footprint).
        pl.BlockSpec((None, L2, d), lambda b, i: (b, 0, 0), pipeline_mode=pl.Buffered(1)),
        pl.BlockSpec((None, L2, d), lambda b, i: (b, 0, 0), pipeline_mode=pl.Buffered(1)),
    ]
    args = (x1, wq, k, v)
    mask_bytes = 0
    if mask is None:
        kernel = functools.partial(_split_kernel, scale=scale)
    else:
        kernel = functools.partial(_split_kernel_masked, scale=scale)
        mb, ml, _ = mask.shape
        tiled = (ml == L1p)
        mrows = tq if tiled else ml

        def mask_idx(b, i, _batched=(mb > 1), _tiled=tiled):
            return (b if _batched else 0, i if _tiled else 0, 0)

        in_specs.append(pl.BlockSpec((None, mrows, L2), mask_idx))
        args = args + (mask,)
        mask_bytes = mask.size
    flops = 2 * B * L1p * d * d + 4 * B * L1p * L2 * d + 6 * B * L1p * L2
    bytes_accessed = 4 * (B * L1p * d + d * d + 2 * B * L2 * d
                          + B * L1p * d + B * L1p * L2) + mask_bytes

    out, attn = pl.pallas_call(
        kernel,
        out_shape=(jax.ShapeDtypeStruct((B, L1p, d), jnp.float32),
                   jax.ShapeDtypeStruct((B, L1p, L2), jnp.float32)),
        grid=(B, nt),
        in_specs=in_specs,
        out_specs=[pl.BlockSpec((None, tq, d), lambda b, i: (b, i, 0)),
                   pl.BlockSpec((None, tq, L2), lambda b, i: (b, i, 0))],
        compiler_params=pltpu.CompilerParams(
            dimension_semantics=("parallel", "parallel"),
            vmem_limit_bytes=VMEM_LIMIT),
        cost_estimate=pl.CostEstimate(flops=flops, transcendentals=B * L1p * L2,
                                      bytes_accessed=bytes_accessed),
    )(*args)
    return out, attn


# ---------------------------------------------------------------------------
# K/V pre-projection (split path only): batch folded into the matmul M dim.
# ---------------------------------------------------------------------------
def _make_proj_kernel(n_w):
    def kernel(*refs):
        x_ref = refs[0]
        w_refs = refs[1:1 + n_w]
        o_refs = refs[1 + n_w:]
        x = x_ref[...]
        # Kept in f32 on purpose: K feeds the exported attn_weights, so the
        # scores path must stay f32-accurate.
        for w_ref, o_ref in zip(w_refs, o_refs):
            o_ref[...] = jnp.dot(x, w_ref[...], preferred_element_type=jnp.float32)
    return kernel


def _project(x_flat, weights, tm=PROJ_TM):
    M, K = x_flat.shape
    N = weights[0].shape[1]
    n_w = len(weights)
    if M <= tm:
        tm = M
        Mp = M
    else:
        Mp = _round_up(M, tm)
        if Mp != M:
            x_flat = jnp.pad(x_flat, ((0, Mp - M), (0, 0)))
    grid = (Mp // tm,)
    flops = 2 * Mp * K * N * n_w
    bytes_accessed = 4 * (Mp * K + n_w * (K * N + Mp * N))

    outs = pl.pallas_call(
        _make_proj_kernel(n_w),
        out_shape=tuple(jax.ShapeDtypeStruct((Mp, N), jnp.float32)
                        for _ in range(n_w)),
        grid=grid,
        in_specs=[pl.BlockSpec((tm, K), lambda i: (i, 0))]
                 + [pl.BlockSpec((K, N), lambda i: (0, 0),
                                 pipeline_mode=pl.Buffered(1))   # grid-invariant weight
                    for _ in range(n_w)],
        out_specs=[pl.BlockSpec((tm, N), lambda i: (i, 0)) for _ in range(n_w)],
        compiler_params=pltpu.CompilerParams(
            dimension_semantics=("parallel",),
            vmem_limit_bytes=VMEM_LIMIT),
        cost_estimate=pl.CostEstimate(flops=flops, transcendentals=0,
                                      bytes_accessed=bytes_accessed),
    )(x_flat, *weights)
    if not isinstance(outs, (list, tuple)):
        outs = (outs,)
    return tuple(o[:M] for o in outs)


# ---------------------------------------------------------------------------
# Public entry point (matches CrossAttention.forward semantics).
# ---------------------------------------------------------------------------
def _choose_tiling(B, L1, tq):
    L1r = _round_up(L1, 8)
    tq = max(8, min(_round_up(tq, 8), L1r))
    if B == 1 and L1r >= 16 and L1r // tq < 2:
        # v7x megacore: expose >= 2 parallel grid programs by splitting L1.
        tq = _round_up((L1r + 1) // 2, 8)
    L1p = _round_up(L1, tq)
    return tq, L1p


@functools.partial(jax.jit, static_argnames=("tq", "proj_tm"))
def cross_attention(x_1, x_2, w_query, w_key, w_value, attn_mask=None, *,
                    tq=ATTN_TQ, proj_tm=PROJ_TM):
    B, L1, d = x_1.shape
    _, L2, _ = x_2.shape
    scale = 1.0 / math.sqrt(d)

    tq_eff, L1p = _choose_tiling(B, L1, tq)
    n_tiles = L1p // tq_eff

    x1p = x_1 if L1p == L1 else jnp.pad(x_1, ((0, 0), (0, L1p - L1), (0, 0)))

    mask = None
    if attn_mask is not None:
        # Keep the caller's broadcastable shape (never materialize (B, L1, L2));
        # stored as int8 so a full-shape mask costs 1 byte/elem of HBM traffic.
        mask = (jnp.asarray(attn_mask) != 0).astype(jnp.int8)
        while mask.ndim < 3:
            mask = mask[None]
        mb, ml, mk = mask.shape
        assert mk == L2 and mb in (1, B) and ml in (1, L1), (
            "attn_mask must broadcast against (B, L1, L2)")
        if ml == L1 and L1p != L1:
            # Padded query rows must stay unmasked to avoid all -inf rows (NaN).
            mask = jnp.pad(mask, ((0, 0), (0, L1p - L1), (0, 0)), constant_values=1)

    if n_tiles == 1:
        # Fully fused: Q, K, V projections + attention in one kernel (no HBM
        # round trip for q/k/v, single pallas_call launch).
        out, attn = _fused_attention(x1p, x_2, w_query, w_key, w_value, mask,
                                     scale=scale)
    else:
        # Several query tiles per batch: pre-project K/V once (batch folded into
        # the matmul M dimension) so they are not recomputed per tile; the Q
        # projection stays fused into the attention kernel (per-tile anyway).
        k_flat, v_flat = _project(x_2.reshape(B * L2, d), [w_key, w_value],
                                  tm=proj_tm)
        k = k_flat.reshape(B, L2, d)
        v = v_flat.reshape(B, L2, d)
        out, attn = _split_attention(x1p, w_query, k, v, mask,
                                     scale=scale, tq=tq_eff)

    if L1p != L1:
        out = out[:, :L1]
        attn = attn[:, :L1]
    return out, attn


def _reference(x_1, x_2, wq, wk, wv, attn_mask=None):
    q = x_1 @ wq
    k = x_2 @ wk
    v = x_2 @ wv
    scores = jnp.einsum("bqd,bkd->bqk", q, k) / math.sqrt(q.shape[-1])
    if attn_mask is not None:
        scores = jnp.where(attn_mask == 0, -jnp.inf, scores)
    attn = jax.nn.softmax(scores, axis=-1)
    out = jnp.einsum("bqk,bkd->bqd", attn, v)
    return out, attn


if __name__ == "__main__":
    key = jax.random.PRNGKey(0)
    k1, k2, kq, kk, kv, km = jax.random.split(key, 6)

    B, L1, L2 = 2, 8, 16
    # Parameters: deterministic analogue of torch.rand(640, 640) (uniform [0,1)).
    w_query = jax.random.uniform(kq, (D, D), dtype=jnp.float32)
    w_key = jax.random.uniform(kk, (D, D), dtype=jnp.float32)
    w_value = jax.random.uniform(kv, (D, D), dtype=jnp.float32)

    x_1 = jax.random.normal(k1, (B, L1, D), dtype=jnp.float32)
    x_2 = jax.random.normal(k2, (B, L2, D), dtype=jnp.float32)

    # attn_weights stays exact f32; the bf16 attn @ V matmul only loosens the
    # tolerance on `out` (rounding bound ~ 2^-8 * sum_k attn_k * |v_k|).
    ATTN_TOL = dict(rtol=1e-3, atol=1e-3)
    OUT_TOL = dict(rtol=2e-2, atol=2.5e-1)

    # ---- 1) fused path (single query tile per batch), attn_mask=None --------
    out, attn = cross_attention(x_1, x_2, w_query, w_key, w_value)
    out, attn = jax.block_until_ready((out, attn))
    ref_out, ref_attn = _reference(x_1, x_2, w_query, w_key, w_value)
    assert out.shape == (B, L1, D) and attn.shape == (B, L1, L2)
    assert jnp.allclose(attn, ref_attn, **ATTN_TOL)
    assert jnp.allclose(out, ref_out, **OUT_TOL)

    # ---- 2) fused path with a full-shape (B, L1, L2) mask -------------------
    mask = (jax.random.uniform(km, (B, L1, L2)) > 0.3).astype(jnp.int32)
    mask = mask.at[..., 0].set(1)   # avoid fully-masked rows (NaN in both impls)
    out_m, attn_m = cross_attention(x_1, x_2, w_query, w_key, w_value, mask)
    out_m, attn_m = jax.block_until_ready((out_m, attn_m))
    ref_out_m, ref_attn_m = _reference(x_1, x_2, w_query, w_key, w_value, mask)
    assert jnp.allclose(attn_m, ref_attn_m, **ATTN_TOL)
    assert jnp.allclose(out_m, ref_out_m, **OUT_TOL)

    # ---- 3) split path (several query tiles: pre-projected K/V, fused Q) with
    #         a broadcastable (B, 1, L2) mask that is never expanded -----------
    k3, km2 = jax.random.split(jax.random.PRNGKey(1))
    L1b = 32
    x_1b = jax.random.normal(k3, (B, L1b, D), dtype=jnp.float32)
    mask_b = (jax.random.uniform(km2, (B, 1, L2)) > 0.2).astype(jnp.int32)
    mask_b = mask_b.at[..., 0].set(1)
    out_s, attn_s = cross_attention(x_1b, x_2, w_query, w_key, w_value, mask_b,
                                    tq=8)
    out_s, attn_s = jax.block_until_ready((out_s, attn_s))
    ref_out_s, ref_attn_s = _reference(x_1b, x_2, w_query, w_key, w_value, mask_b)
    assert out_s.shape == (B, L1b, D) and attn_s.shape == (B, L1b, L2)
    assert jnp.allclose(attn_s, ref_attn_s, **ATTN_TOL)
    assert jnp.allclose(out_s, ref_out_s, **OUT_TOL)

    print("KERNEL_OK")
</pallas_src>

<mosaic_0001>
module attributes {stable_mosaic.version = 11 : i64} {
  func.func @_fused_kernel(%arg0: i32, %arg1: memref<1x8x640xf32, #tpu.memory_space<vmem>>, %arg2: memref<1x16x640xf32, #tpu.memory_space<vmem>>, %arg3: memref<640x640xf32, #tpu.memory_space<vmem>>, %arg4: memref<640x640xf32, #tpu.memory_space<vmem>>, %arg5: memref<640x640xf32, #tpu.memory_space<vmem>>, %arg6: memref<1x8x640xf32, #tpu.memory_space<vmem>>, %arg7: memref<1x8x16xf32, #tpu.memory_space<vmem>>) attributes {dimension_semantics = [#tpu.dimension_semantics<parallel>], iteration_bounds = array<i64: 2>, scalar_prefetch = 0 : i64, scratch_operands = 0 : i64, tpu.core_type = #tpu.core_type<tc>, window_params = [{transform_indices = @transform_0, window_bounds = array<i64: 1, 8, 640>}, {transform_indices = @transform_1, window_bounds = array<i64: 1, 16, 640>}, {pipeline_mode = #tpu.pipeline_mode<synchronous>, transform_indices = @transform_2, window_bounds = array<i64: 640, 640>}, {pipeline_mode = #tpu.pipeline_mode<synchronous>, transform_indices = @transform_3, window_bounds = array<i64: 640, 640>}, {pipeline_mode = #tpu.pipeline_mode<synchronous>, transform_indices = @transform_4, window_bounds = array<i64: 640, 640>}, {transform_indices = @transform_5, window_bounds = array<i64: 1, 8, 640>}, {transform_indices = @transform_6, window_bounds = array<i64: 1, 8, 16>}]} {
    %c0 = arith.constant 0 : index
    %c0_0 = arith.constant 0 : index
    %c0_1 = arith.constant 0 : index
    %0 = vector.load %arg1[%c0, %c0_0, %c0_1] : memref<1x8x640xf32, #tpu.memory_space<vmem>>, vector<1x8x640xf32>
    %1 = vector.shape_cast %0 : vector<1x8x640xf32> to vector<8x640xf32>
    %c0_2 = arith.constant 0 : index
    %c0_3 = arith.constant 0 : index
    %2 = vector.load %arg3[%c0_2, %c0_3] : memref<640x640xf32, #tpu.memory_space<vmem>>, vector<640x640xf32>
    %cst = arith.constant dense<0.000000e+00> : vector<8x640xf32>
    %3 = tpu.matmul %1, %2, %cst {dimension_numbers = #tpu.dot_dimension_numbers<[1], [0], [0], [1], [0, 0, 1, 1], [], []>} : vector<8x640xf32>, vector<640x640xf32>, vector<8x640xf32> -> vector<8x640xf32>
    %cst_4 = arith.constant 0.0395284705 : f32
    %4 = vector.broadcast %cst_4 : f32 to vector<8x640xf32>
    %5 = arith.mulf %3, %4 : vector<8x640xf32>
    %c0_5 = arith.constant 0 : index
    %c0_6 = arith.constant 0 : index
    %c0_7 = arith.constant 0 : index
    %6 = vector.load %arg2[%c0_5, %c0_6, %c0_7] : memref<1x16x640xf32, #tpu.memory_space<vmem>>, vector<1x16x640xf32>
    %7 = vector.shape_cast %6 : vector<1x16x640xf32> to vector<16x640xf32>
    %c0_8 = arith.constant 0 : index
    %c0_9 = arith.constant 0 : index
    %8 = vector.load %arg4[%c0_8, %c0_9] : memref<640x640xf32, #tpu.memory_space<vmem>>, vector<640x640xf32>
    %cst_10 = arith.constant dense<0.000000e+00> : vector<16x640xf32>
    %9 = tpu.matmul %7, %8, %cst_10 {dimension_numbers = #tpu.dot_dimension_numbers<[1], [0], [0], [1], [0, 0, 1, 1], [], []>} : vector<16x640xf32>, vector<640x640xf32>, vector<16x640xf32> -> vector<16x640xf32>
    %c0_11 = arith.constant 0 : index
    %c0_12 = arith.constant 0 : index
    %c0_13 = arith.constant 0 : index
    %10 = vector.load %arg2[%c0_11, %c0_12, %c0_13] : memref<1x16x640xf32, #tpu.memory_space<vmem>>, vector<1x16x640xf32>
    %11 = vector.shape_cast %10 : vector<1x16x640xf32> to vector<16x640xf32>
    %c0_14 = arith.constant 0 : index
    %c0_15 = arith.constant 0 : index
    %12 = vector.load %arg5[%c0_14, %c0_15] : memref<640x640xf32, #tpu.memory_space<vmem>>, vector<640x640xf32>
    %cst_16 = arith.constant dense<0.000000e+00> : vector<16x640xf32>
    %13 = tpu.matmul %11, %12, %cst_16 {dimension_numbers = #tpu.dot_dimension_numbers<[1], [0], [0], [1], [0, 0, 1, 1], [], []>} : vector<16x640xf32>, vector<640x640xf32>, vector<16x640xf32> -> vector<16x640xf32>
    %cst_17 = arith.constant dense<0.000000e+00> : vector<8x16xf32>
    %14 = tpu.matmul %5, %9, %cst_17 {dimension_numbers = #tpu.dot_dimension_numbers<[1], [1], [0], [0], [0, 0, 1, 0], [], []>} : vector<8x640xf32>, vector<16x640xf32>, vector<8x16xf32> -> vector<8x16xf32>
    %cst_18 = arith.constant dense<0xFF800000> : vector<8xf32>
    %15 = vector.multi_reduction <maximumf>, %14, %cst_18 [1] : vector<8x16xf32> to vector<8xf32>
    %16 = vector.shape_cast %15 : vector<8xf32> to vector<8x1xf32>
    %17 = vector.broadcast %16 : vector<8x1xf32> to vector<8x16xf32>
    %18 = arith.subf %14, %17 : vector<8x16xf32>
    %19 = math.exp %18 : vector<8x16xf32>
    %cst_19 = arith.constant dense<0.000000e+00> : vector<8xf32>
    %20 = vector.multi_reduction <add>, %19, %cst_19 [1] : vector<8x16xf32> to vector<8xf32>
    %21 = vector.shape_cast %20 : vector<8xf32> to vector<8x1xf32>
    %cst_20 = arith.constant 1.000000e+00 : f32
    %22 = vector.broadcast %cst_20 : f32 to vector<8x1xf32>
    %23 = arith.divf %22, %21 : vector<8x1xf32>
    %24 = vector.broadcast %23 : vector<8x1xf32> to vector<8x16xf32>
    %25 = arith.mulf %19, %24 : vector<8x16xf32>
    %c0_21 = arith.constant 0 : index
    %c0_22 = arith.constant 0 : index
    %c0_23 = arith.constant 0 : index
    %26 = vector.load %arg7[%c0_21, %c0_22, %c0_23] : memref<1x8x16xf32, #tpu.memory_space<vmem>>, vector<1x8x16xf32>
    %27 = vector.shape_cast %26 : vector<1x8x16xf32> to vector<8x16xf32>
    %28 = vector.shape_cast %25 : vector<8x16xf32> to vector<1x8x16xf32>
    tpu.vector_store %arg7[%c0_21, %c0_22, %c0_23], %28 {strides = array<i32>} : memref<1x8x16xf32, #tpu.memory_space<vmem>>, vector<1x8x16xf32>,
    %29 = arith.truncf %25 : vector<8x16xf32> to vector<8x16xbf16>
    %30 = arith.truncf %13 : vector<16x640xf32> to vector<16x640xbf16>
    %cst_24 = arith.constant dense<0.000000e+00> : vector<8x640xf32>
    %31 = tpu.matmul %29, %30, %cst_24 {dimension_numbers = #tpu.dot_dimension_numbers<[1], [0], [0], [1], [0, 0, 1, 1], [], []>} : vector<8x16xbf16>, vector<16x640xbf16>, vector<8x640xf32> -> vector<8x640xf32>
    %c0_25 = arith.constant 0 : index
    %c0_26 = arith.constant 0 : index
    %c0_27 = arith.constant 0 : index
    %32 = vector.load %arg6[%c0_25, %c0_26, %c0_27] : memref<1x8x640xf32, #tpu.memory_space<vmem>>, vector<1x8x640xf32>
    %33 = vector.shape_cast %32 : vector<1x8x640xf32> to vector<8x640xf32>
    %34 = vector.shape_cast %31 : vector<8x640xf32> to vector<1x8x640xf32>
    tpu.vector_store %arg6[%c0_25, %c0_26, %c0_27], %34 {strides = array<i32>} : memref<1x8x640xf32, #tpu.memory_space<vmem>>, vector<1x8x640xf32>,
    return
  }
  func.func @transform_0(%arg0: i32) -> (i32, i32, i32) {
    %c0_i32 = arith.constant 0 : i32
    %c0_i32_0 = arith.constant 0 : i32
    %c0_i32_1 = arith.constant 0 : i32
    return %arg0, %c0_i32, %c0_i32_0 : i32, i32, i32
  }
  func.func @transform_1(%arg0: i32) -> (i32, i32, i32) {
    %c0_i32 = arith.constant 0 : i32
    %c0_i32_0 = arith.constant 0 : i32
    %c0_i32_1 = arith.constant 0 : i32
    return %arg0, %c0_i32, %c0_i32_0 : i32, i32, i32
  }
  func.func @transform_2(%arg0: i32) -> (i32, i32) {
    %c0_i32 = arith.constant 0 : i32
    %c0_i32_0 = arith.constant 0 : i32
    %c0_i32_1 = arith.constant 0 : i32
    return %c0_i32, %c0_i32_0 : i32, i32
  }
  func.func @transform_3(%arg0: i32) -> (i32, i32) {
    %c0_i32 = arith.constant 0 : i32
    %c0_i32_0 = arith.constant 0 : i32
    %c0_i32_1 = arith.constant 0 : i32
    return %c0_i32, %c0_i32_0 : i32, i32
  }
  func.func @transform_4(%arg0: i32) -> (i32, i32) {
    %c0_i32 = arith.constant 0 : i32
    %c0_i32_0 = arith.constant 0 : i32
    %c0_i32_1 = arith.constant 0 : i32
    return %c0_i32, %c0_i32_0 : i32, i32
  }
  func.func @transform_5(%arg0: i32) -> (i32, i32, i32) {
    %c0_i32 = arith.constant 0 : i32
    %c0_i32_0 = arith.constant 0 : i32
    %c0_i32_1 = arith.constant 0 : i32
    return %arg0, %c0_i32, %c0_i32_0 : i32, i32, i32
  }
  func.func @transform_6(%arg0: i32) -> (i32, i32, i32) {
    %c0_i32 = arith.constant 0 : i32
    %c0_i32_0 = arith.constant 0 : i32
    %c0_i32_1 = arith.constant 0 : i32
    return %arg0, %c0_i32, %c0_i32_0 : i32, i32, i32
  }
}

</mosaic_0001>

<llo_original>
// kernel: cross_attention.1
$region0: #{cross_attention.1}
  #allocation0 [shape = 'u32[]', space=smem, size = 0x4, offset = 0x4, fixed_abs, tag = 'smem constant byte address 0x4 - core index']
  #allocation1 [shape = 'u32[144,128]{1,0:T(1,128)}', space=vmem, size = 0x12000, scoped, tag = 'internal scratch']
  %s0 = inlined_call_operand.hbm [shape: f32[2,8,640], index: 0, kind: input, shape index: {}]
  %s1 = inlined_call_operand.hbm [shape: f32[2,16,640], index: 1, kind: input, shape index: {}]
  %s2 = inlined_call_operand.hbm [shape: f32[640,640], index: 2, kind: input, shape index: {}]
  %s3 = inlined_call_operand.hbm [shape: f32[640,640], index: 3, kind: input, shape index: {}]
  %s4 = inlined_call_operand.hbm [shape: f32[640,640], index: 4, kind: input, shape index: {}]
  %s5 = inlined_call_operand.hbm [shape: f32[2,8,640], index: 5, kind: output, shape index: {0}]
  %s6 = inlined_call_operand.hbm [shape: f32[2,8,16], index: 6, kind: output, shape index: {1}]
  %7 = xla_tuple %s5, %s6
  %s8 = sld [smem:[#allocation0]]
  $region81: #{cross_attention.1} parent=0
    _
  %s10 = ssub.s32 1, %s8
  %s11 = scalar_select 0, %s10, %s8
  $region1: #{cross_attention.1} parent=0
    #allocation2 [shape = 'u8[40960]{0}', space=vmem, size = 0xa000, scoped, tag = 'input window, operand 0']
    #allocation3 [shape = 's32[2]{0}', space=sflag, size = 0x8, scoped, tag = 'scoped memory for cross_attention.1']
    #allocation4 [shape = 's32[2]{0}', space=sflag, size = 0x8, scoped, tag = 'scoped memory for cross_attention.1']
    #allocation5 [shape = 'u8[81920]{0}', space=vmem, size = 0x14000, scoped, tag = 'input window, operand 1']
    #allocation6 [shape = 's32[2]{0}', space=sflag, size = 0x8, scoped, tag = 'scoped memory for cross_attention.1']
    #allocation7 [shape = 'u8[1638400]{0}', space=vmem, size = 0x190000, scoped, tag = 'input window, operand 2, single buffered']
    #allocation8 [shape = 'u8[1638400]{0}', space=vmem, size = 0x190000, scoped, tag = 'input window, operand 3, single buffered']
    #allocation9 [shape = 's32[1]{0}', space=sflag, size = 0x4, scoped, tag = 'scoped memory for cross_attention.1']
    #allocation10 [shape = 'u8[1638400]{0}', space=vmem, size = 0x190000, scoped, tag = 'input window, operand 4, single buffered']
    #allocation11 [shape = 'u8[40960]{0}', space=vmem, size = 0xa000, scoped, tag = 'output window, operand 0']
    #allocation12 [shape = 'u8[8192]{0}', space=vmem, size = 0x2000, scoped, tag = 'output window, operand 1']
    #allocation13 [shape = 's32[2]{0}', space=sflag, size = 0x8, scoped, tag = 'scoped memory for cross_attention.1']
    %12 = vsyncpa [#allocation3], 0
    %s13 = scalar_lea.sflag [#allocation3], 1
    %14 = vsyncpa %s13, 0
    %15 = vsyncpa [#allocation6], 0
    %s16 = scalar_lea.sflag [#allocation6], 1
    %17 = vsyncpa %s16, 0
    %18 = vsyncpa [#allocation9], 0
    %19 = vsyncpa [#allocation4], 0
    %s20 = scalar_lea.sflag [#allocation4], 1
    %21 = vsyncpa %s20, 0
    %22 = vsyncpa [#allocation13], 0
    %s23 = scalar_lea.sflag [#allocation13], 1
    %24 = vsyncpa %s23, 0
    loop: start=0, step=1, limit=4
    $region2: #{cross_attention.1} parent=1 // loop_pre_header
      _
    $region3: #{cross_attention.1} parent=1 // loop_header
      %s26 = sphi 0, %s30
      %p27 = scmp.ge.s32.totalorder %s26, 4
      %s36 = sphi 0, %s38
      %s39 = sphi 0, %s36
      %s40 = sphi 0, %s39
      %s56 = sphi 0, %s40
      %s62 = sphi 0, %s64
      %s65 = sphi 0, %s62
      %s66 = sphi 0, %s65
      %s82 = sphi 0, %s66
      %s86 = sphi 0, %s86
      %s88 = sphi 0, %s86
      %s89 = sphi 0, %s88
      %s103 = sphi 0, %s89
      %s107 = sphi 0, %s107
      %s109 = sphi 0, %s107
      %s110 = sphi 0, %s109
      %s124 = sphi 0, %s110
      %s128 = sphi 0, %s128
      %s130 = sphi 0, %s128
      %s131 = sphi 0, %s130
      %s145 = sphi 0, %s131
      %s151 = sphi 0, %s153
      %s154 = sphi 0, %s151
      %s155 = sphi 0, %s154
      %s171 = sphi 0, %s155
      %s177 = sphi 0, %s179
      %s180 = sphi 0, %s177
      %s181 = sphi 0, %s180
      %s197 = sphi 0, %s181
    $region4: #{cross_attention.1} parent=1 // loop_header_branch
      %29 = sbr.rel (%p27) target = $region8
    $region5: #{cross_attention.1} parent=1 // loop_body
      %s31 = ssub.s32 %s26, 1
      %s32 = ssub.s32 %s26, 2
      %s33 = sadd.s32 %s26, 1
      %s34 = ssub.s32 %s26, %s33
      %p35 = scmp.eq.s32.totalorder %s34, 0
      %s37 = sadd.s32 %s36, 1
      %s38 = scalar_select %p35, %s36, %s37
      %p41 = pneg %p35
      %p42 = scmp.eq.s32.totalorder %s26, 1
      %p43 = por %p41, %p42
      %p44 = scmp.ne.s32.totalorder %s36, %s39
      %p45 = scmp.eq.s32.totalorder %s26, 0
      %p46 = por %p44, %p45
      %p47 = scmp.ne.s32.totalorder %s36, %s39
      %p48 = scmp.eq.s32.totalorder %s31, 1
      %p49 = por %p47, %p48
      %p50 = scmp.ne.s32.totalorder %s39, %s40
      %p51 = scmp.eq.s32.totalorder %s31, 0
      %p52 = por %p50, %p51
      %p53 = scmp.ne.s32.totalorder %s39, %s40
      %p54 = scmp.eq.s32.totalorder %s32, 1
      %p55 = por %p53, %p54
      %p57 = scmp.ne.s32.totalorder %s40, %s56
      %p58 = scmp.eq.s32.totalorder %s32, 0
      %p59 = por %p57, %p58
      %s60 = ssub.s32 %s26, %s33
      %p61 = scmp.eq.s32.totalorder %s60, 0
      %s63 = sadd.s32 %s62, 1
      %s64 = scalar_select %p61, %s62, %s63
      %p67 = pneg %p61
      %p68 = scmp.eq.s32.totalorder %s26, 1
      %p69 = por %p67, %p68
      %p70 = scmp.ne.s32.totalorder %s62, %s65
      %p71 = scmp.eq.s32.totalorder %s26, 0
      %p72 = por %p70, %p71
      %p73 = scmp.ne.s32.totalorder %s62, %s65
      %p74 = scmp.eq.s32.totalorder %s31, 1
      %p75 = por %p73, %p74
      %p76 = scmp.ne.s32.totalorder %s65, %s66
      %p77 = scmp.eq.s32.totalorder %s31, 0
      %p78 = por %p76, %p77
      %p79 = scmp.ne.s32.totalorder %s65, %s66
      %p80 = scmp.eq.s32.totalorder %s32, 1
      %p81 = por %p79, %p80
      %p83 = scmp.ne.s32.totalorder %s66, %s82
      %p84 = scmp.eq.s32.totalorder %s32, 0
      %p85 = por %p83, %p84
      %s87 = sadd.s32 %s86, 1
      %p90 = scmp.eq.s32.totalorder %s26, 1
      %p91 = scmp.ne.s32.totalorder %s86, %s88
      %p92 = scmp.eq.s32.totalorder %s26, 0
      %p93 = por %p91, %p92
      %p94 = scmp.ne.s32.totalorder %s86, %s88
      %p95 = scmp.eq.s32.totalorder %s31, 1
      %p96 = por %p94, %p95
      %p97 = scmp.ne.s32.totalorder %s88, %s89
      %p98 = scmp.eq.s32.totalorder %s31, 0
      %p99 = por %p97, %p98
      %p100 = scmp.ne.s32.totalorder %s88, %s89
      %p101 = scmp.eq.s32.totalorder %s32, 1
      %p102 = por %p100, %p101
      %p104 = scmp.ne.s32.totalorder %s89, %s103
      %p105 = scmp.eq.s32.totalorder %s32, 0
      %p106 = por %p104, %p105
      %s108 = sadd.s32 %s107, 1
      %p111 = scmp.eq.s32.totalorder %s26, 1
      %p112 = scmp.ne.s32.totalorder %s107, %s109
      %p113 = scmp.eq.s32.totalorder %s26, 0
      %p114 = por %p112, %p113
      %p115 = scmp.ne.s32.totalorder %s107, %s109
      %p116 = scmp.eq.s32.totalorder %s31, 1
      %p117 = por %p115, %p116
      %p118 = scmp.ne.s32.totalorder %s109, %s110
      %p119 = scmp.eq.s32.totalorder %s31, 0
      %p120 = por %p118, %p119
      %p121 = scmp.ne.s32.totalorder %s109, %s110
      %p122 = scmp.eq.s32.totalorder %s32, 1
      %p123 = por %p121, %p122
      %p125 = scmp.ne.s32.totalorder %s110, %s124
      %p126 = scmp.eq.s32.totalorder %s32, 0
      %p127 = por %p125, %p126
      %s129 = sadd.s32 %s128, 1
      %p132 = scmp.eq.s32.totalorder %s26, 1
      %p133 = scmp.ne.s32.totalorder %s128, %s130
      %p134 = scmp.eq.s32.totalorder %s26, 0
      %p135 = por %p133, %p134
      %p136 = scmp.ne.s32.totalorder %s128, %s130
      %p137 = scmp.eq.s32.totalorder %s31, 1
      %p138 = por %p136, %p137
      %p139 = scmp.ne.s32.totalorder %s130, %s131
      %p140 = scmp.eq.s32.totalorder %s31, 0
      %p141 = por %p139, %p140
      %p142 = scmp.ne.s32.totalorder %s130, %s131
      %p143 = scmp.eq.s32.totalorder %s32, 1
      %p144 = por %p142, %p143
      %p146 = scmp.ne.s32.totalorder %s131, %s145
      %p147 = scmp.eq.s32.totalorder %s32, 0
      %p148 = por %p146, %p147
      %s149 = ssub.s32 %s26, %s33
      %p150 = scmp.eq.s32.totalorder %s149, 0
      %s152 = sadd.s32 %s151, 1
      %s153 = scalar_select %p150, %s151, %s152
      %p156 = pneg %p150
      %p157 = scmp.eq.s32.totalorder %s26, 1
      %p158 = por %p156, %p157
      %p159 = scmp.ne.s32.totalorder %s151, %s154
      %p160 = scmp.eq.s32.totalorder %s26, 0
      %p161 = por %p159, %p160
      %p162 = scmp.ne.s32.totalorder %s151, %s154
      %p163 = scmp.eq.s32.totalorder %s31, 1
      %p164 = por %p162, %p163
      %p165 = scmp.ne.s32.totalorder %s154, %s155
      %p166 = scmp.eq.s32.totalorder %s31, 0
      %p167 = por %p165, %p166
      %p168 = scmp.ne.s32.totalorder %s154, %s155
      %p169 = scmp.eq.s32.totalorder %s32, 1
      %p170 = por %p168, %p169
      %p172 = scmp.ne.s32.totalorder %s155, %s171
      %p173 = scmp.eq.s32.totalorder %s32, 0
      %p174 = por %p172, %p173
      %s175 = ssub.s32 %s26, %s33
      %p176 = scmp.eq.s32.totalorder %s175, 0
      %s178 = sadd.s32 %s177, 1
      %s179 = scalar_select %p176, %s177, %s178
      %p182 = pneg %p176
      %p183 = scmp.eq.s32.totalorder %s26, 1
      %p184 = por %p182, %p183
      %p185 = scmp.ne.s32.totalorder %s177, %s180
      %p186 = scmp.eq.s32.totalorder %s26, 0
      %p187 = por %p185, %p186
      %p188 = scmp.ne.s32.totalorder %s177, %s180
      %p189 = scmp.eq.s32.totalorder %s31, 1
      %p190 = por %p188, %p189
      %p191 = scmp.ne.s32.totalorder %s180, %s181
      %p192 = scmp.eq.s32.totalorder %s31, 0
      %p193 = por %p191, %p192
      %p194 = scmp.ne.s32.totalorder %s180, %s181
      %p195 = scmp.eq.s32.totalorder %s32, 1
      %p196 = por %p194, %p195
      %p198 = scmp.ne.s32.totalorder %s181, %s197
      %p199 = scmp.eq.s32.totalorder %s32, 0
      %p200 = por %p198, %p199
      %p201 = scmp.le.s32.totalorder 1, %s26
      %p202 = scmp.lt.s32.totalorder %s26, 3
      %p203 = pnand %p201, %p202
      %p204 = pneg %p203
      // Predicated region
      $region9: #{cross_attention.1} parent=5 // pred_check
        _
      $region10: #{cross_attention.1} parent=5 // pred_check_branch
        %206 = sbr.rel (%p203) target = $region12
      $region11: #{cross_attention.1} parent=5 // pred_region
        %s207 = ssub.s32 %s26, 1
        // Predicated region
        $region13: #{cross_attention.1} parent=11 // pred_check
          %p208 = pneg %p99
        $region14: #{cross_attention.1} parent=11 // pred_check_branch
          %210 = sbr.rel (%p208) target = $region16
        $region15: #{cross_attention.1} parent=11 // pred_region
          %s212 = ssub.s32 51200, 51200
          %213 = vsyncadd [#allocation6], %s212
          %s214 = sshll.u32 [#allocation7], 4
          %s215 = int_to_ptr.vmem [resolvable:$true] %s214
          %220 = dma.hbm_to_vmem [thread:$0]  %s2, 51200, %s215, [#allocation6], 640, 640, 40
        $region16: #{cross_attention.1} parent=11 // pred_fallthru
          _
        // Predicated region
        $region17: #{cross_attention.1} parent=11 // pred_check
          %p221 = pneg %p120
        $region18: #{cross_attention.1} parent=11 // pred_check_branch
          %223 = sbr.rel (%p221) target = $region20
        $region19: #{cross_attention.1} parent=11 // pred_region
          %s225 = ssub.s32 51200, 51200
          %226 = vsyncadd [#allocation9], %s225
          %s227 = sshll.u32 [#allocation8], 4
          %s228 = int_to_ptr.vmem [resolvable:$true] %s227
          %233 = dma.hbm_to_vmem [thread:$0]  %s3, 51200, %s228, [#allocation9], 640, 640, 40
        $region20: #{cross_attention.1} parent=11 // pred_fallthru
          _
        // Predicated region
        $region21: #{cross_attention.1} parent=11 // pred_check
          %p234 = pneg %p141
        $region22: #{cross_attention.1} parent=11 // pred_check_branch
          %236 = sbr.rel (%p234) target = $region24
        $region23: #{cross_attention.1} parent=11 // pred_region
          %s238 = ssub.s32 51200, 51200
          %239 = vsyncadd [#allocation9], %s238
          %s240 = sshll.u32 [#allocation10], 4
          %s241 = int_to_ptr.vmem [resolvable:$true] %s240
          %246 = dma.hbm_to_vmem [thread:$0]  %s4, 51200, %s241, [#allocation9], 640, 640, 40
        $region24: #{cross_attention.1} parent=11 // pred_fallthru
          _
      $region12: #{cross_attention.1} parent=5 // pred_fallthru
        _
      %p247 = scmp.lt.s32.totalorder %s26, 2
      // Predicated region
      $region25: #{cross_attention.1} parent=5 // pred_check
        %p248 = pneg %p247
      $region26: #{cross_attention.1} parent=5 // pred_check_branch
        %250 = sbr.rel (%p248) target = $region28
      $region27: #{cross_attention.1} parent=5 // pred_region
        // Predicated region
        $region29: #{cross_attention.1} parent=27 // pred_check
          %p251 = pneg %p46
        $region30: #{cross_attention.1} parent=27 // pred_check_branch
          %253 = sbr.rel (%p251) target = $region32
        $region31: #{cross_attention.1} parent=27 // pred_region
          %s254 = sand.u32 %s36, 1
          %s255 = scalar_lea.sflag [#allocation3], %s254
          %s256 = sand.u32 %s36, 1
          %s257 = smul.addr %s256, 40
          %s258 = scalar_lea.vmem [#allocation2], %s257
          %s260 = ssub.s32 640, 640
          %261 = vsyncadd %s255, %s260
          %s262 = smul.addr %s26, 5
          %s263 = smul.addr %s262, 128
          %s264 = scalar_lea.hbm %s0, %s263
          %s266 = sshll.u32 %s258, 4
          %s267 = int_to_ptr.vmem [resolvable:$true] %s266
          %269 = dma.hbm_to_vmem [thread:$0]  %s264, 640, %s267, %s255
        $region32: #{cross_attention.1} parent=27 // pred_fallthru
          _
        // Predicated region
        $region33: #{cross_attention.1} parent=27 // pred_check
          %p270 = pneg %p72
        $region34: #{cross_attention.1} parent=27 // pred_check_branch
          %272 = sbr.rel (%p270) target = $region36
        $region35: #{cross_attention.1} parent=27 // pred_region
          %s273 = sand.u32 %s26, 1
          %s274 = scalar_lea.sflag [#allocation6], %s273
          %s275 = sand.u32 %s62, 1
          %s276 = smul.addr %s275, 80
          %s277 = scalar_lea.vmem [#allocation5], %s276
          %s279 = ssub.s32 1280, 1280
          %280 = vsyncadd %s274, %s279
          %s281 = smul.addr %s26, 10
          %s282 = smul.addr %s281, 128
          %s283 = scalar_lea.hbm %s1, %s282
          %s284 = sshll.u32 %s277, 4
          %s285 = int_to_ptr.vmem [resolvable:$true] %s284
          %290 = dma.hbm_to_vmem [thread:$0]  %s283, 1280, %s285, %s274, 640, 640, 40
        $region36: #{cross_attention.1} parent=27 // pred_fallthru
          _
      $region28: #{cross_attention.1} parent=5 // pred_fallthru
        _
      %p291 = scmp.le.s32.totalorder 1, %s26
      %p292 = scmp.lt.s32.totalorder %s26, 3
      %p293 = pnand %p291, %p292
      %p294 = pneg %p293
      // Predicated region
      $region37: #{cross_attention.1} parent=5 // pred_check
        _
      $region38: #{cross_attention.1} parent=5 // pred_check_branch
        %296 = sbr.rel (%p293) target = $region40
      $region39: #{cross_attention.1} parent=5 // pred_region
        %s297 = ssub.s32 %s26, 1
        %s298 = sand.u32 %s39, 1
        %s299 = scalar_lea.sflag [#allocation3], %s298
        %s300 = sand.u32 %s39, 1
        %s301 = smul.addr %s300, 40
        %s302 = scalar_lea.vmem [#allocation2], %s301
        // Predicated region
        $region41: #{cross_attention.1} parent=39 // pred_check
          %p303 = pneg %p52
        $region42: #{cross_attention.1} parent=39 // pred_check_branch
          %305 = sbr.rel (%p303) target = $region44
        $region43: #{cross_attention.1} parent=39 // pred_region
          %306 = dma.done %s299, 640
        $region44: #{cross_attention.1} parent=39 // pred_fallthru
          _
        %s307 = sand.u32 %s31, 1
        %s308 = scalar_lea.sflag [#allocation6], %s307
        %s309 = sand.u32 %s65, 1
        %s310 = smul.addr %s309, 80
        %s311 = scalar_lea.vmem [#allocation5], %s310
        // Predicated region
        $region45: #{cross_attention.1} parent=39 // pred_check
          %p312 = pneg %p78
        $region46: #{cross_attention.1} parent=39 // pred_check_branch
          %314 = sbr.rel (%p312) target = $region48
        $region47: #{cross_attention.1} parent=39 // pred_region
          %315 = dma.done %s308, 1280
        $region48: #{cross_attention.1} parent=39 // pred_fallthru
          _
        // Predicated region
        $region49: #{cross_attention.1} parent=39 // pred_check
          %p316 = pneg %p99
        $region50: #{cross_attention.1} parent=39 // pred_check_branch
          %318 = sbr.rel (%p316) target = $region52
        $region51: #{cross_attention.1} parent=39 // pred_region
          %319 = dma.done [#allocation6], 51200
        $region52: #{cross_attention.1} parent=39 // pred_fallthru
          _
        // Predicated region
        $region53: #{cross_attention.1} parent=39 // pred_check
          %p320 = pneg %p120
        $region54: #{cross_attention.1} parent=39 // pred_check_branch
          %322 = sbr.rel (%p320) target = $region56
        $region55: #{cross_attention.1} parent=39 // pred_region
          %323 = dma.done [#allocation9], 51200
        $region56: #{cross_attention.1} parent=39 // pred_fallthru
          _
        // Predicated region
        $region57: #{cross_attention.1} parent=39 // pred_check
          %p324 = pneg %p141
        $region58: #{cross_attention.1} parent=39 // pred_check_branch
          %326 = sbr.rel (%p324) target = $region60
        $region59: #{cross_attention.1} parent=39 // pred_region
          %327 = dma.done [#allocation9], 51200
        $region60: #{cross_attention.1} parent=39 // pred_fallthru
          _
        %s328 = sand.u32 %s39, 1
        %s329 = scalar_lea.sflag [#allocation3], %s328
        %s330 = sand.u32 %s39, 1
        %s331 = smul.addr %s330, 40
        %s332 = scalar_lea.vmem [#allocation2], %s331
        %p333 = pneg %p52
        %p334 = pneg %p49
        %s335 = sand.u32 %s31, 1
        %s336 = scalar_lea.sflag [#allocation6], %s335
        %s337 = sand.u32 %s65, 1
        %s338 = smul.addr %s337, 80
        %s339 = scalar_lea.vmem [#allocation5], %s338
        %p340 = pneg %p78
        %p341 = pneg %p75
        %p342 = pneg %p99
        %p343 = pneg %p96
        %p344 = pneg %p120
        %p345 = pneg %p117
        %p346 = pneg %p141
        %p347 = pneg %p138
        %p348 = pneg %p167
        %p349 = pneg %p164
        %s350 = sand.u32 %s154, 1
        %s351 = scalar_lea.sflag [#allocation4], %s350
        %s352 = sand.u32 %s154, 1
        %s353 = smul.addr %s352, 40
        %s354 = scalar_lea.vmem [#allocation11], %s353
        %p355 = pneg %p193
        %p356 = pneg %p190
        %s357 = sand.u32 %s180, 1
        %s358 = scalar_lea.sflag [#allocation13], %s357
        %s359 = sand.u32 %s180, 1
        %s360 = smul.addr %s359, 8
        %s361 = scalar_lea.vmem [#allocation12], %s360
        %v363 = vld [vmem:[%s302] sm:$0xff]
        %v364 = vld [vmem:[%s302 + $0x8] sm:$0xff]
        %v365 = vld [vmem:[%s302 + $0x10] sm:$0xff]
        %v366 = vld [vmem:[%s302 + $0x18] sm:$0xff]
        %v367 = vld [vmem:[%s302 + $0x20] sm:$0xff]
        %v368 = vld [vmem:[#allocation7] sm:$0xff]
        %v369 = vld [vmem:[#allocation7 + $0x8] sm:$0xff]
        %v370 = vld [vmem:[#allocation7 + $0x10] sm:$0xff]
        %v371 = vld [vmem:[#allocation7 + $0x18] sm:$0xff]
        %v372 = vld [vmem:[#allocation7 + $0x20] sm:$0xff]
        %v373 = vld [vmem:[#allocation7 + $0x28] sm:$0xff]
        %v374 = vld [vmem:[#allocation7 + $0x30] sm:$0xff]
        %v375 = vld [vmem:[#allocation7 + $0x38] sm:$0xff]
        %v376 = vld [vmem:[#allocation7 + $0x40] sm:$0xff]
        %v377 = vld [vmem:[#allocation7 + $0x48] sm:$0xff]
        %v378 = vld [vmem:[#allocation7 + $0x50] sm:$0xff]
        %v379 = vld [vmem:[#allocation7 + $0x58] sm:$0xff]
        %v380 = vld [vmem:[#allocation7 + $0x60] sm:$0xff]
        %v381 = vld [vmem:[#allocation7 + $0x68] sm:$0xff]
        %v382 = vld [vmem:[#allocation7 + $0x70] sm:$0xff]
        %v383 = vld [vmem:[#allocation7 + $0x78] sm:$0xff]
        %v384 = vld [vmem:[#allocation7 + $0x80] sm:$0xff]
        %v385 = vld [vmem:[#allocation7 + $0x88] sm:$0xff]
        %v386 = vld [vmem:[#allocation7 + $0x90] sm:$0xff]
        %v387 = vld [vmem:[#allocation7 + $0x98] sm:$0xff]
        %v388 = vld [vmem:[#allocation7 + $0xa0] sm:$0xff]
        %v389 = vld [vmem:[#allocation7 + $0xa8] sm:$0xff]
        %v390 = vld [vmem:[#allocation7 + $0xb0] sm:$0xff]
        %v391 = vld [vmem:[#allocation7 + $0xb8] sm:$0xff]
        %v392 = vld [vmem:[#allocation7 + $0xc0] sm:$0xff]
        %v393 = vld [vmem:[#allocation7 + $0xc8] sm:$0xff]
        %v394 = vld [vmem:[#allocation7 + $0xd0] sm:$0xff]
        %v395 = vld [vmem:[#allocation7 + $0xd8] sm:$0xff]
        %v396 = vld [vmem:[#allocation7 + $0xe0] sm:$0xff]
        %v397 = vld [vmem:[#allocation7 + $0xe8] sm:$0xff]
        %v398 = vld [vmem:[#allocation7 + $0xf0] sm:$0xff]
        %v399 = vld [vmem:[#allocation7 + $0xf8] sm:$0xff]
        %v400 = vld [vmem:[#allocation7 + $0x100] sm:$0xff]
        %v401 = vld [vmem:[#allocation7 + $0x108] sm:$0xff]
        %v402 = vld [vmem:[#allocation7 + $0x110] sm:$0xff]
        %v403 = vld [vmem:[#allocation7 + $0x118] sm:$0xff]
        %v404 = vld [vmem:[#allocation7 + $0x120] sm:$0xff]
        %v405 = vld [vmem:[#allocation7 + $0x128] sm:$0xff]
        %v406 = vld [vmem:[#allocation7 + $0x130] sm:$0xff]
        %v407 = vld [vmem:[#allocation7 + $0x138] sm:$0xff]
        %v408 = vld [vmem:[#allocation7 + $0x140] sm:$0xff]
        %v409 = vld [vmem:[#allocation7 + $0x148] sm:$0xff]
        %v410 = vld [vmem:[#allocation7 + $0x150] sm:$0xff]
        %v411 = vld [vmem:[#allocation7 + $0x158] sm:$0xff]
        %v412 = vld [vmem:[#allocation7 + $0x160] sm:$0xff]
        %v413 = vld [vmem:[#allocation7 + $0x168] sm:$0xff]
        %v414 = vld [vmem:[#allocation7 + $0x170] sm:$0xff]
        %v415 = vld [vmem:[#allocation7 + $0x178] sm:$0xff]
        %v416 = vld [vmem:[#allocation7 + $0x180] sm:$0xff]
        %v417 = vld [vmem:[#allocation7 + $0x188] sm:$0xff]
        %v418 = vld [vmem:[#allocation7 + $0x190] sm:$0xff]
        %v419 = vld [vmem:[#allocation7 + $0x198] sm:$0xff]
        %v420 = vld [vmem:[#allocation7 + $0x1a0] sm:$0xff]
        %v421 = vld [vmem:[#allocation7 + $0x1a8] sm:$0xff]
        %v422 = vld [vmem:[#allocation7 + $0x1b0] sm:$0xff]
        %v423 = vld [vmem:[#allocation7 + $0x1b8] sm:$0xff]
        %v424 = vld [vmem:[#allocation7 + $0x1c0] sm:$0xff]
        %v425 = vld [vmem:[#allocation7 + $0x1c8] sm:$0xff]
        %v426 = vld [vmem:[#allocation7 + $0x1d0] sm:$0xff]
        %v427 = vld [vmem:[#allocation7 + $0x1d8] sm:$0xff]
        %v428 = vld [vmem:[#allocation7 + $0x1e0] sm:$0xff]
        %v429 = vld [vmem:[#allocation7 + $0x1e8] sm:$0xff]
        %v430 = vld [vmem:[#allocation7 + $0x1f0] sm:$0xff]
        %v431 = vld [vmem:[#allocation7 + $0x1f8] sm:$0xff]
        %v432 = vld [vmem:[#allocation7 + $0x200] sm:$0xff]
        %v433 = vld [vmem:[#allocation7 + $0x208] sm:$0xff]
        %v434 = vld [vmem:[#allocation7 + $0x210] sm:$0xff]
        %v435 = vld [vmem:[#allocation7 + $0x218] sm:$0xff]
        %v436 = vld [vmem:[#allocation7 + $0x220] sm:$0xff]
        %v437 = vld [vmem:[#allocation7 + $0x228] sm:$0xff]
        %v438 = vld [vmem:[#allocation7 + $0x230] sm:$0xff]
        %v439 = vld [vmem:[#allocation7 + $0x238] sm:$0xff]
        %v440 = vld [vmem:[#allocation7 + $0x240] sm:$0xff]
        %v441 = vld [vmem:[#allocation7 + $0x248] sm:$0xff]
        %v442 = vld [vmem:[#allocation7 + $0x250] sm:$0xff]
        %v443 = vld [vmem:[#allocation7 + $0x258] sm:$0xff]
        %v444 = vld [vmem:[#allocation7 + $0x260] sm:$0xff]
        %v445 = vld [vmem:[#allocation7 + $0x268] sm:$0xff]
        %v446 = vld [vmem:[#allocation7 + $0x270] sm:$0xff]
        %v447 = vld [vmem:[#allocation7 + $0x278] sm:$0xff]
        %v448 = vld [vmem:[#allocation7 + $0x280] sm:$0xff]
        %v449 = vld [vmem:[#allocation7 + $0x288] sm:$0xff]
        %v450 = vld [vmem:[#allocation7 + $0x290] sm:$0xff]
        %v451 = vld [vmem:[#allocation7 + $0x298] sm:$0xff]
        %v452 = vld [vmem:[#allocation7 + $0x2a0] sm:$0xff]
        %v453 = vld [vmem:[#allocation7 + $0x2a8] sm:$0xff]
        %v454 = vld [vmem:[#allocation7 + $0x2b0] sm:$0xff]
        %v455 = vld [vmem:[#allocation7 + $0x2b8] sm:$0xff]
        %v456 = vld [vmem:[#allocation7 + $0x2c0] sm:$0xff]
        %v457 = vld [vmem:[#allocation7 + $0x2c8] sm:$0xff]
        %v458 = vld [vmem:[#allocation7 + $0x2d0] sm:$0xff]
        %v459 = vld [vmem:[#allocation7 + $0x2d8] sm:$0xff]
        %v460 = vld [vmem:[#allocation7 + $0x2e0] sm:$0xff]
        %v461 = vld [vmem:[#allocation7 + $0x2e8] sm:$0xff]
        %v462 = vld [vmem:[#allocation7 + $0x2f0] sm:$0xff]
        %v463 = vld [vmem:[#allocation7 + $0x2f8] sm:$0xff]
        %v464 = vld [vmem:[#allocation7 + $0x300] sm:$0xff]
        %v465 = vld [vmem:[#allocation7 + $0x308] sm:$0xff]
        %v466 = vld [vmem:[#allocation7 + $0x310] sm:$0xff]
        %v467 = vld [vmem:[#allocation7 + $0x318] sm:$0xff]
        %v468 = vld [vmem:[#allocation7 + $0x320] sm:$0xff]
        %v469 = vld [vmem:[#allocation7 + $0x328] sm:$0xff]
        %v470 = vld [vmem:[#allocation7 + $0x330] sm:$0xff]
        %v471 = vld [vmem:[#allocation7 + $0x338] sm:$0xff]
        %v472 = vld [vmem:[#allocation7 + $0x340] sm:$0xff]
        %v473 = vld [vmem:[#allocation7 + $0x348] sm:$0xff]
        %v474 = vld [vmem:[#allocation7 + $0x350] sm:$0xff]
        %v475 = vld [vmem:[#allocation7 + $0x358] sm:$0xff]
        %v476 = vld [vmem:[#allocation7 + $0x360] sm:$0xff]
        %v477 = vld [vmem:[#allocation7 + $0x368] sm:$0xff]
        %v478 = vld [vmem:[#allocation7 + $0x370] sm:$0xff]
        %v479 = vld [vmem:[#allocation7 + $0x378] sm:$0xff]
        %v480 = vld [vmem:[#allocation7 + $0x380] sm:$0xff]
        %v481 = vld [vmem:[#allocation7 + $0x388] sm:$0xff]
        %v482 = vld [vmem:[#allocation7 + $0x390] sm:$0xff]
        %v483 = vld [vmem:[#allocation7 + $0x398] sm:$0xff]
        %v484 = vld [vmem:[#allocation7 + $0x3a0] sm:$0xff]
        %v485 = vld [vmem:[#allocation7 + $0x3a8] sm:$0xff]
        %v486 = vld [vmem:[#allocation7 + $0x3b0] sm:$0xff]
        %v487 = vld [vmem:[#allocation7 + $0x3b8] sm:$0xff]
        %v488 = vld [vmem:[#allocation7 + $0x3c0] sm:$0xff]
        %v489 = vld [vmem:[#allocation7 + $0x3c8] sm:$0xff]
        %v490 = vld [vmem:[#allocation7 + $0x3d0] sm:$0xff]
        %v491 = vld [vmem:[#allocation7 + $0x3d8] sm:$0xff]
        %v492 = vld [vmem:[#allocation7 + $0x3e0] sm:$0xff]
        %v493 = vld [vmem:[#allocation7 + $0x3e8] sm:$0xff]
        %v494 = vld [vmem:[#allocation7 + $0x3f0] sm:$0xff]
        %v495 = vld [vmem:[#allocation7 + $0x3f8] sm:$0xff]
        %v496 = vld [vmem:[#allocation7 + $0x400] sm:$0xff]
        %v497 = vld [vmem:[#allocation7 + $0x408] sm:$0xff]
        %v498 = vld [vmem:[#allocation7 + $0x410] sm:$0xff]
        %v499 = vld [vmem:[#allocation7 + $0x418] sm:$0xff]
        %v500 = vld [vmem:[#allocation7 + $0x420] sm:$0xff]
        %v501 = vld [vmem:[#allocation7 + $0x428] sm:$0xff]
        %v502 = vld [vmem:[#allocation7 + $0x430] sm:$0xff]
        %v503 = vld [vmem:[#allocation7 + $0x438] sm:$0xff]
        %v504 = vld [vmem:[#allocation7 + $0x440] sm:$0xff]
        %v505 = vld [vmem:[#allocation7 + $0x448] sm:$0xff]
        %v506 = vld [vmem:[#allocation7 + $0x450] sm:$0xff]
        %v507 = vld [vmem:[#allocation7 + $0x458] sm:$0xff]
        %v508 = vld [vmem:[#allocation7 + $0x460] sm:$0xff]
        %v509 = vld [vmem:[#allocation7 + $0x468] sm:$0xff]
        %v510 = vld [vmem:[#allocation7 + $0x470] sm:$0xff]
        %v511 = vld [vmem:[#allocation7 + $0x478] sm:$0xff]
        %v512 = vld [vmem:[#allocation7 + $0x480] sm:$0xff]
        %v513 = vld [vmem:[#allocation7 + $0x488] sm:$0xff]
        %v514 = vld [vmem:[#allocation7 + $0x490] sm:$0xff]
        %v515 = vld [vmem:[#allocation7 + $0x498] sm:$0xff]
        %v516 = vld [vmem:[#allocation7 + $0x4a0] sm:$0xff]
        %v517 = vld [vmem:[#allocation7 + $0x4a8] sm:$0xff]
        %v518 = vld [vmem:[#allocation7 + $0x4b0] sm:$0xff]
        %v519 = vld [vmem:[#allocation7 + $0x4b8] sm:$0xff]
        %v520 = vld [vmem:[#allocation7 + $0x4c0] sm:$0xff]
        %v521 = vld [vmem:[#allocation7 + $0x4c8] sm:$0xff]
        %v522 = vld [vmem:[#allocation7 + $0x4d0] sm:$0xff]
        %v523 = vld [vmem:[#allocation7 + $0x4d8] sm:$0xff]
        %v524 = vld [vmem:[#allocation7 + $0x4e0] sm:$0xff]
        %v525 = vld [vmem:[#allocation7 + $0x4e8] sm:$0xff]
        %v526 = vld [vmem:[#allocation7 + $0x4f0] sm:$0xff]
        %v527 = vld [vmem:[#allocation7 + $0x4f8] sm:$0xff]
        %v528 = vld [vmem:[#allocation7 + $0x500] sm:$0xff]
        %v529 = vld [vmem:[#allocation7 + $0x508] sm:$0xff]
        %v530 = vld [vmem:[#allocation7 + $0x510] sm:$0xff]
        %v531 = vld [vmem:[#allocation7 + $0x518] sm:$0xff]
        %v532 = vld [vmem:[#allocation7 + $0x520] sm:$0xff]
        %v533 = vld [vmem:[#allocation7 + $0x528] sm:$0xff]
        %v534 = vld [vmem:[#allocation7 + $0x530] sm:$0xff]
        %v535 = vld [vmem:[#allocation7 + $0x538] sm:$0xff]
        %v536 = vld [vmem:[#allocation7 + $0x540] sm:$0xff]
        %v537 = vld [vmem:[#allocation7 + $0x548] sm:$0xff]
        %v538 = vld [vmem:[#allocation7 + $0x550] sm:$0xff]
        %v539 = vld [vmem:[#allocation7 + $0x558] sm:$0xff]
        %v540 = vld [vmem:[#allocation7 + $0x560] sm:$0xff]
        %v541 = vld [vmem:[#allocation7 + $0x568] sm:$0xff]
        %v542 = vld [vmem:[#allocation7 + $0x570] sm:$0xff]
        %v543 = vld [vmem:[#allocation7 + $0x578] sm:$0xff]
        %v544 = vld [vmem:[#allocation7 + $0x580] sm:$0xff]
        %v545 = vld [vmem:[#allocation7 + $0x588] sm:$0xff]
        %v546 = vld [vmem:[#allocation7 + $0x590] sm:$0xff]
        %v547 = vld [vmem:[#allocation7 + $0x598] sm:$0xff]
        %v548 = vld [vmem:[#allocation7 + $0x5a0] sm:$0xff]
        %v549 = vld [vmem:[#allocation7 + $0x5a8] sm:$0xff]
        %v550 = vld [vmem:[#allocation7 + $0x5b0] sm:$0xff]
        %v551 = vld [vmem:[#allocation7 + $0x5b8] sm:$0xff]
        %v552 = vld [vmem:[#allocation7 + $0x5c0] sm:$0xff]
        %v553 = vld [vmem:[#allocation7 + $0x5c8] sm:$0xff]
        %v554 = vld [vmem:[#allocation7 + $0x5d0] sm:$0xff]
        %v555 = vld [vmem:[#allocation7 + $0x5d8] sm:$0xff]
        %v556 = vld [vmem:[#allocation7 + $0x5e0] sm:$0xff]
        %v557 = vld [vmem:[#allocation7 + $0x5e8] sm:$0xff]
        %v558 = vld [vmem:[#allocation7 + $0x5f0] sm:$0xff]
        %v559 = vld [vmem:[#allocation7 + $0x5f8] sm:$0xff]
        %v560 = vld [vmem:[#allocation7 + $0x600] sm:$0xff]
        %v561 = vld [vmem:[#allocation7 + $0x608] sm:$0xff]
        %v562 = vld [vmem:[#allocation7 + $0x610] sm:$0xff]
        %v563 = vld [vmem:[#allocation7 + $0x618] sm:$0xff]
        %v564 = vld [vmem:[#allocation7 + $0x620] sm:$0xff]
        %v565 = vld [vmem:[#allocation7 + $0x628] sm:$0xff]
        %v566 = vld [vmem:[#allocation7 + $0x630] sm:$0xff]
        %v567 = vld [vmem:[#allocation7 + $0x638] sm:$0xff]
        %v568 = vld [vmem:[#allocation7 + $0x640] sm:$0xff]
        %v569 = vld [vmem:[#allocation7 + $0x648] sm:$0xff]
        %v570 = vld [vmem:[#allocation7 + $0x650] sm:$0xff]
        %v571 = vld [vmem:[#allocation7 + $0x658] sm:$0xff]
        %v572 = vld [vmem:[#allocation7 + $0x660] sm:$0xff]
        %v573 = vld [vmem:[#allocation7 + $0x668] sm:$0xff]
        %v574 = vld [vmem:[#allocation7 + $0x670] sm:$0xff]
        %v575 = vld [vmem:[#allocation7 + $0x678] sm:$0xff]
        %v576 = vld [vmem:[#allocation7 + $0x680] sm:$0xff]
        %v577 = vld [vmem:[#allocation7 + $0x688] sm:$0xff]
        %v578 = vld [vmem:[#allocation7 + $0x690] sm:$0xff]
        %v579 = vld [vmem:[#allocation7 + $0x698] sm:$0xff]
        %v580 = vld [vmem:[#allocation7 + $0x6a0] sm:$0xff]
        %v581 = vld [vmem:[#allocation7 + $0x6a8] sm:$0xff]
        %v582 = vld [vmem:[#allocation7 + $0x6b0] sm:$0xff]
        %v583 = vld [vmem:[#allocation7 + $0x6b8] sm:$0xff]
        %v584 = vld [vmem:[#allocation7 + $0x6c0] sm:$0xff]
        %v585 = vld [vmem:[#allocation7 + $0x6c8] sm:$0xff]
        %v586 = vld [vmem:[#allocation7 + $0x6d0] sm:$0xff]
        %v587 = vld [vmem:[#allocation7 + $0x6d8] sm:$0xff]
        %v588 = vld [vmem:[#allocation7 + $0x6e0] sm:$0xff]
        %v589 = vld [vmem:[#allocation7 + $0x6e8] sm:$0xff]
        %v590 = vld [vmem:[#allocation7 + $0x6f0] sm:$0xff]
        %v591 = vld [vmem:[#allocation7 + $0x6f8] sm:$0xff]
        %v592 = vld [vmem:[#allocation7 + $0x700] sm:$0xff]
        %v593 = vld [vmem:[#allocation7 + $0x708] sm:$0xff]
        %v594 = vld [vmem:[#allocation7 + $0x710] sm:$0xff]
        %v595 = vld [vmem:[#allocation7 + $0x718] sm:$0xff]
        %v596 = vld [vmem:[#allocation7 + $0x720] sm:$0xff]
        %v597 = vld [vmem:[#allocation7 + $0x728] sm:$0xff]
        %v598 = vld [vmem:[#allocation7 + $0x730] sm:$0xff]
        %v599 = vld [vmem:[#allocation7 + $0x738] sm:$0xff]
        %v600 = vld [vmem:[#allocation7 + $0x740] sm:$0xff]
        %v601 = vld [vmem:[#allocation7 + $0x748] sm:$0xff]
        %v602 = vld [vmem:[#allocation7 + $0x750] sm:$0xff]
        %v603 = vld [vmem:[#allocation7 + $0x758] sm:$0xff]
        %v604 = vld [vmem:[#allocation7 + $0x760] sm:$0xff]
        %v605 = vld [vmem:[#allocation7 + $0x768] sm:$0xff]
        %v606 = vld [vmem:[#allocation7 + $0x770] sm:$0xff]
        %v607 = vld [vmem:[#allocation7 + $0x778] sm:$0xff]
        %v608 = vld [vmem:[#allocation7 + $0x780] sm:$0xff]
        %v609 = vld [vmem:[#allocation7 + $0x788] sm:$0xff]
        %v610 = vld [vmem:[#allocation7 + $0x790] sm:$0xff]
        %v611 = vld [vmem:[#allocation7 + $0x798] sm:$0xff]
        %v612 = vld [vmem:[#allocation7 + $0x7a0] sm:$0xff]
        %v613 = vld [vmem:[#allocation7 + $0x7a8] sm:$0xff]
        %v614 = vld [vmem:[#allocation7 + $0x7b0] sm:$0xff]
        %v615 = vld [vmem:[#allocation7 + $0x7b8] sm:$0xff]
        %v616 = vld [vmem:[#allocation7 + $0x7c0] sm:$0xff]
        %v617 = vld [vmem:[#allocation7 + $0x7c8] sm:$0xff]
        %v618 = vld [vmem:[#allocation7 + $0x7d0] sm:$0xff]
        %v619 = vld [vmem:[#allocation7 + $0x7d8] sm:$0xff]
        %v620 = vld [vmem:[#allocation7 + $0x7e0] sm:$0xff]
        %v621 = vld [vmem:[#allocation7 + $0x7e8] sm:$0xff]
        %v622 = vld [vmem:[#allocation7 + $0x7f0] sm:$0xff]
        %v623 = vld [vmem:[#allocation7 + $0x7f8] sm:$0xff]
        %v624 = vld [vmem:[#allocation7 + $0x800] sm:$0xff]
        %v625 = vld [vmem:[#allocation7 + $0x808] sm:$0xff]
        %v626 = vld [vmem:[#allocation7 + $0x810] sm:$0xff]
        %v627 = vld [vmem:[#allocation7 + $0x818] sm:$0xff]
        %v628 = vld [vmem:[#allocation7 + $0x820] sm:$0xff]
        %v629 = vld [vmem:[#allocation7 + $0x828] sm:$0xff]
        %v630 = vld [vmem:[#allocation7 + $0x830] sm:$0xff]
        %v631 = vld [vmem:[#allocation7 + $0x838] sm:$0xff]
        %v632 = vld [vmem:[#allocation7 + $0x840] sm:$0xff]
        %v633 = vld [vmem:[#allocation7 + $0x848] sm:$0xff]
        %v634 = vld [vmem:[#allocation7 + $0x850] sm:$0xff]
        %v635 = vld [vmem:[#allocation7 + $0x858] sm:$0xff]
        %v636 = vld [vmem:[#allocation7 + $0x860] sm:$0xff]
        %v637 = vld [vmem:[#allocation7 + $0x868] sm:$0xff]
        %v638 = vld [vmem:[#allocation7 + $0x870] sm:$0xff]
        %v639 = vld [vmem:[#allocation7 + $0x878] sm:$0xff]
        %v640 = vld [vmem:[#allocation7 + $0x880] sm:$0xff]
        %v641 = vld [vmem:[#allocation7 + $0x888] sm:$0xff]
        %v642 = vld [vmem:[#allocation7 + $0x890] sm:$0xff]
        %v643 = vld [vmem:[#allocation7 + $0x898] sm:$0xff]
        %v644 = vld [vmem:[#allocation7 + $0x8a0] sm:$0xff]
        %v645 = vld [vmem:[#allocation7 + $0x8a8] sm:$0xff]
        %v646 = vld [vmem:[#allocation7 + $0x8b0] sm:$0xff]
        %v647 = vld [vmem:[#allocation7 + $0x8b8] sm:$0xff]
        %v648 = vld [vmem:[#allocation7 + $0x8c0] sm:$0xff]
        %v649 = vld [vmem:[#allocation7 + $0x8c8] sm:$0xff]
        %v650 = vld [vmem:[#allocation7 + $0x8d0] sm:$0xff]
        %v651 = vld [vmem:[#allocation7 + $0x8d8] sm:$0xff]
        %v652 = vld [vmem:[#allocation7 + $0x8e0] sm:$0xff]
        %v653 = vld [vmem:[#allocation7 + $0x8e8] sm:$0xff]
        %v654 = vld [vmem:[#allocation7 + $0x8f0] sm:$0xff]
        %v655 = vld [vmem:[#allocation7 + $0x8f8] sm:$0xff]
        %v656 = vld [vmem:[#allocation7 + $0x900] sm:$0xff]
        %v657 = vld [vmem:[#allocation7 + $0x908] sm:$0xff]
        %v658 = vld [vmem:[#allocation7 + $0x910] sm:$0xff]
        %v659 = vld [vmem:[#allocation7 + $0x918] sm:$0xff]
        %v660 = vld [vmem:[#allocation7 + $0x920] sm:$0xff]
        %v661 = vld [vmem:[#allocation7 + $0x928] sm:$0xff]
        %v662 = vld [vmem:[#allocation7 + $0x930] sm:$0xff]
        %v663 = vld [vmem:[#allocation7 + $0x938] sm:$0xff]
        %v664 = vld [vmem:[#allocation7 + $0x940] sm:$0xff]
        %v665 = vld [vmem:[#allocation7 + $0x948] sm:$0xff]
        %v666 = vld [vmem:[#allocation7 + $0x950] sm:$0xff]
        %v667 = vld [vmem:[#allocation7 + $0x958] sm:$0xff]
        %v668 = vld [vmem:[#allocation7 + $0x960] sm:$0xff]
        %v669 = vld [vmem:[#allocation7 + $0x968] sm:$0xff]
        %v670 = vld [vmem:[#allocation7 + $0x970] sm:$0xff]
        %v671 = vld [vmem:[#allocation7 + $0x978] sm:$0xff]
        %v672 = vld [vmem:[#allocation7 + $0x980] sm:$0xff]
        %v673 = vld [vmem:[#allocation7 + $0x988] sm:$0xff]
        %v674 = vld [vmem:[#allocation7 + $0x990] sm:$0xff]
        %v675 = vld [vmem:[#allocation7 + $0x998] sm:$0xff]
        %v676 = vld [vmem:[#allocation7 + $0x9a0] sm:$0xff]
        %v677 = vld [vmem:[#allocation7 + $0x9a8] sm:$0xff]
        %v678 = vld [vmem:[#allocation7 + $0x9b0] sm:$0xff]
        %v679 = vld [vmem:[#allocation7 + $0x9b8] sm:$0xff]
        %v680 = vld [vmem:[#allocation7 + $0x9c0] sm:$0xff]
        %v681 = vld [vmem:[#allocation7 + $0x9c8] sm:$0xff]
        %v682 = vld [vmem:[#allocation7 + $0x9d0] sm:$0xff]
        %v683 = vld [vmem:[#allocation7 + $0x9d8] sm:$0xff]
        %v684 = vld [vmem:[#allocation7 + $0x9e0] sm:$0xff]
        %v685 = vld [vmem:[#allocation7 + $0x9e8] sm:$0xff]
        %v686 = vld [vmem:[#allocation7 + $0x9f0] sm:$0xff]
        %v687 = vld [vmem:[#allocation7 + $0x9f8] sm:$0xff]
        %v688 = vld [vmem:[#allocation7 + $0xa00] sm:$0xff]
        %v689 = vld [vmem:[#allocation7 + $0xa08] sm:$0xff]
        %v690 = vld [vmem:[#allocation7 + $0xa10] sm:$0xff]
        %v691 = vld [vmem:[#allocation7 + $0xa18] sm:$0xff]
        %v692 = vld [vmem:[#allocation7 + $0xa20] sm:$0xff]
        %v693 = vld [vmem:[#allocation7 + $0xa28] sm:$0xff]
        %v694 = vld [vmem:[#allocation7 + $0xa30] sm:$0xff]
        %v695 = vld [vmem:[#allocation7 + $0xa38] sm:$0xff]
        %v696 = vld [vmem:[#allocation7 + $0xa40] sm:$0xff]
        %v697 = vld [vmem:[#allocation7 + $0xa48] sm:$0xff]
        %v698 = vld [vmem:[#allocation7 + $0xa50] sm:$0xff]
        %v699 = vld [vmem:[#allocation7 + $0xa58] sm:$0xff]
        %v700 = vld [vmem:[#allocation7 + $0xa60] sm:$0xff]
        %v701 = vld [vmem:[#allocation7 + $0xa68] sm:$0xff]
        %v702 = vld [vmem:[#allocation7 + $0xa70] sm:$0xff]
        %v703 = vld [vmem:[#allocation7 + $0xa78] sm:$0xff]
        %v704 = vld [vmem:[#allocation7 + $0xa80] sm:$0xff]
        %v705 = vld [vmem:[#allocation7 + $0xa88] sm:$0xff]
        %v706 = vld [vmem:[#allocation7 + $0xa90] sm:$0xff]
        %v707 = vld [vmem:[#allocation7 + $0xa98] sm:$0xff]
        %v708 = vld [vmem:[#allocation7 + $0xaa0] sm:$0xff]
        %v709 = vld [vmem:[#allocation7 + $0xaa8] sm:$0xff]
        %v710 = vld [vmem:[#allocation7 + $0xab0] sm:$0xff]
        %v711 = vld [vmem:[#allocation7 + $0xab8] sm:$0xff]
        %v712 = vld [vmem:[#allocation7 + $0xac0] sm:$0xff]
        %v713 = vld [vmem:[#allocation7 + $0xac8] sm:$0xff]
        %v714 = vld [vmem:[#allocation7 + $0xad0] sm:$0xff]
        %v715 = vld [vmem:[#allocation7 + $0xad8] sm:$0xff]
        %v716 = vld [vmem:[#allocation7 + $0xae0] sm:$0xff]
        %v717 = vld [vmem:[#allocation7 + $0xae8] sm:$0xff]
        %v718 = vld [vmem:[#allocation7 + $0xaf0] sm:$0xff]
        %v719 = vld [vmem:[#allocation7 + $0xaf8] sm:$0xff]
        %v720 = vld [vmem:[#allocation7 + $0xb00] sm:$0xff]
        %v721 = vld [vmem:[#allocation7 + $0xb08] sm:$0xff]
        %v722 = vld [vmem:[#allocation7 + $0xb10] sm:$0xff]
        %v723 = vld [vmem:[#allocation7 + $0xb18] sm:$0xff]
        %v724 = vld [vmem:[#allocation7 + $0xb20] sm:$0xff]
        %v725 = vld [vmem:[#allocation7 + $0xb28] sm:$0xff]
        %v726 = vld [vmem:[#allocation7 + $0xb30] sm:$0xff]
        %v727 = vld [vmem:[#allocation7 + $0xb38] sm:$0xff]
        %v728 = vld [vmem:[#allocation7 + $0xb40] sm:$0xff]
        %v729 = vld [vmem:[#allocation7 + $0xb48] sm:$0xff]
        %v730 = vld [vmem:[#allocation7 + $0xb50] sm:$0xff]
        %v731 = vld [vmem:[#allocation7 + $0xb58] sm:$0xff]
        %v732 = vld [vmem:[#allocation7 + $0xb60] sm:$0xff]
        %v733 = vld [vmem:[#allocation7 + $0xb68] sm:$0xff]
        %v734 = vld [vmem:[#allocation7 + $0xb70] sm:$0xff]
        %v735 = vld [vmem:[#allocation7 + $0xb78] sm:$0xff]
        %v736 = vld [vmem:[#allocation7 + $0xb80] sm:$0xff]
        %v737 = vld [vmem:[#allocation7 + $0xb88] sm:$0xff]
        %v738 = vld [vmem:[#allocation7 + $0xb90] sm:$0xff]
        %v739 = vld [vmem:[#allocation7 + $0xb98] sm:$0xff]
        %v740 = vld [vmem:[#allocation7 + $0xba0] sm:$0xff]
        %v741 = vld [vmem:[#allocation7 + $0xba8] sm:$0xff]
        %v742 = vld [vmem:[#allocation7 + $0xbb0] sm:$0xff]
        %v743 = vld [vmem:[#allocation7 + $0xbb8] sm:$0xff]
        %v744 = vld [vmem:[#allocation7 + $0xbc0] sm:$0xff]
        %v745 = vld [vmem:[#allocation7 + $0xbc8] sm:$0xff]
        %v746 = vld [vmem:[#allocation7 + $0xbd0] sm:$0xff]
        %v747 = vld [vmem:[#allocation7 + $0xbd8] sm:$0xff]
        %v748 = vld [vmem:[#allocation7 + $0xbe0] sm:$0xff]
        %v749 = vld [vmem:[#allocation7 + $0xbe8] sm:$0xff]
        %v750 = vld [vmem:[#allocation7 + $0xbf0] sm:$0xff]
        %v751 = vld [vmem:[#allocation7 + $0xbf8] sm:$0xff]
        %v752 = vld [vmem:[#allocation7 + $0xc00] sm:$0xff]
        %v753 = vld [vmem:[#allocation7 + $0xc08] sm:$0xff]
        %v754 = vld [vmem:[#allocation7 + $0xc10] sm:$0xff]
        %v755 = vld [vmem:[#allocation7 + $0xc18] sm:$0xff]
        %v756 = vld [vmem:[#allocation7 + $0xc20] sm:$0xff]
        %v757 = vld [vmem:[#allocation7 + $0xc28] sm:$0xff]
        %v758 = vld [vmem:[#allocation7 + $0xc30] sm:$0xff]
        %v759 = vld [vmem:[#allocation7 + $0xc38] sm:$0xff]
        %v760 = vld [vmem:[#allocation7 + $0xc40] sm:$0xff]
        %v761 = vld [vmem:[#allocation7 + $0xc48] sm:$0xff]
        %v762 = vld [vmem:[#allocation7 + $0xc50] sm:$0xff]
        %v763 = vld [vmem:[#allocation7 + $0xc58] sm:$0xff]
        %v764 = vld [vmem:[#allocation7 + $0xc60] sm:$0xff]
        %v765 = vld [vmem:[#allocation7 + $0xc68] sm:$0xff]
        %v766 = vld [vmem:[#allocation7 + $0xc70] sm:$0xff]
        %v767 = vld [vmem:[#allocation7 + $0xc78] sm:$0xff]
        %768 = vmatprep.subr.mxu0 %v369
        %769 = vmatpush1.msra.mxu0 %v368
        %770 = vmatprep.subr.mxu0 %v374
        %771 = vmatpush1.msra.mxu0 %v373
        %772 = vmatprep.subr.mxu0 %v379
        %773 = vmatpush1.msra.mxu0 %v378
        %774 = vmatprep.subr.mxu0 %v384
        %775 = vmatpush1.msra.mxu0 %v383
        %776 = vmatprep.subr.mxu0 %v389
        %777 = vmatpush1.msra.mxu0 %v388
        %778 = vmatprep.subr.mxu0 %v394
        %779 = vmatpush1.msra.mxu0 %v393
        %780 = vmatprep.subr.mxu0 %v399
        %781 = vmatpush1.msra.mxu0 %v398
        %782 = vmatprep.subr.mxu0 %v404
        %783 = vmatpush1.msra.mxu0 %v403
        %784 = vmatprep.subr.mxu0 %v409
        %785 = vmatpush1.msra.mxu0 %v408
        %786 = vmatprep.subr.mxu0 %v414
        %787 = vmatpush1.msra.mxu0 %v413
        %788 = vmatprep.subr.mxu0 %v419
        %789 = vmatpush1.msra.mxu0 %v418
        %790 = vmatprep.subr.mxu0 %v424
        %791 = vmatpush1.msra.mxu0 %v423
        %792 = vmatprep.subr.mxu0 %v429
        %793 = vmatpush1.msra.mxu0 %v428
        %794 = vmatprep.subr.mxu0 %v434
        %795 = vmatpush1.msra.mxu0 %v433
        %796 = vmatprep.subr.mxu0 %v439
        %797 = vmatpush1.msra.mxu0 %v438
        %798 = vmatprep.subr.mxu0 %v444
        %799 = vmatpush1.msra.mxu0 %v443
        %800 = vmatprep.subr.mxu0 %v449
        %801 = vmatpush1.msra.mxu0 %v448
        %802 = vmatprep.subr.mxu0 %v454
        %803 = vmatpush1.msra.mxu0 %v453
        %804 = vmatprep.subr.mxu0 %v459
        %805 = vmatpush1.msra.mxu0 %v458
        %806 = vmatprep.subr.mxu0 %v464
        %807 = vmatpush1.msra.mxu0 %v463
        %808 = vmatprep.subr.mxu0 %v469
        %809 = vmatpush1.msra.mxu0 %v468
        %810 = vmatprep.subr.mxu0 %v474
        %811 = vmatpush1.msra.mxu0 %v473
        %812 = vmatprep.subr.mxu0 %v479
        %813 = vmatpush1.msra.mxu0 %v478
        %814 = vmatprep.subr.mxu0 %v484
        %815 = vmatpush1.msra.mxu0 %v483
        %816 = vmatprep.subr.mxu0 %v489
        %817 = vmatpush1.msra.mxu0 %v488
        %818 = vmatprep.subr.mxu0 %v494
        %819 = vmatpush1.msra.mxu0 %v493
        %820 = vmatprep.subr.mxu0 %v499
        %821 = vmatpush1.msra.mxu0 %v498
        %822 = vmatprep.subr.mxu0 %v504
        %823 = vmatpush1.msra.mxu0 %v503
        %824 = vmatprep.subr.mxu0 %v509
        %825 = vmatpush1.msra.mxu0 %v508
        %826 = vmatprep.subr.mxu0 %v514
        %827 = vmatpush1.msra.mxu0 %v513
        %828 = vmatprep.subr.mxu0 %v519
        %829 = vmatpush1.msra.mxu0 %v518
        %830 = vmatprep.subr.mxu0 %v524
        %831 = vmatpush1.msra.mxu0 %v523
        %832 = vmatprep.mubr.f32.mxu0 %v364
        %833 = vmatmul.mubr.f32.gmra.mrb[0].mxu0 %v363
        %v834 = vpop.f32.mrb[0].mxu0
        %v835 = vadd.f32 0.0, %v834
        %v836 = vpop.f32.mrb[0].mxu0
        %v837 = vadd.f32 0.0, %v836
        %838 = vdwg.mxu0
        %839 = vmatprep.subr.mxu0 %v529
        %840 = vmatpush1.msra.mxu0 %v528
        %841 = vmatprep.subr.mxu0 %v534
        %842 = vmatpush1.msra.mxu0 %v533
        %843 = vmatprep.subr.mxu0 %v539
        %844 = vmatpush1.msra.mxu0 %v538
        %845 = vmatprep.subr.mxu0 %v544
        %846 = vmatpush1.msra.mxu0 %v543
        %847 = vmatprep.subr.mxu0 %v549
        %848 = vmatpush1.msra.mxu0 %v548
        %849 = vmatprep.subr.mxu0 %v554
        %850 = vmatpush1.msra.mxu0 %v553
        %851 = vmatprep.subr.mxu0 %v559
        %852 = vmatpush1.msra.mxu0 %v558
        %853 = vmatprep.subr.mxu0 %v564
        %854 = vmatpush1.msra.mxu0 %v563
        %855 = vmatprep.subr.mxu0 %v569
        %856 = vmatpush1.msra.mxu0 %v568
        %857 = vmatprep.subr.mxu0 %v574
        %858 = vmatpush1.msra.mxu0 %v573
        %859 = vmatprep.subr.mxu0 %v579
        %860 = vmatpush1.msra.mxu0 %v578
        %861 = vmatprep.subr.mxu0 %v584
        %862 = vmatpush1.msra.mxu0 %v583
        %863 = vmatprep.subr.mxu0 %v589
        %864 = vmatpush1.msra.mxu0 %v588
        %865 = vmatprep.subr.mxu0 %v594
        %866 = vmatpush1.msra.mxu0 %v593
        %867 = vmatprep.subr.mxu0 %v599
        %868 = vmatpush1.msra.mxu0 %v598
        %869 = vmatprep.subr.mxu0 %v604
        %870 = vmatpush1.msra.mxu0 %v603
        %871 = vmatprep.subr.mxu0 %v609
        %872 = vmatpush1.msra.mxu0 %v608
        %873 = vmatprep.subr.mxu0 %v614
        %874 = vmatpush1.msra.mxu0 %v613
        %875 = vmatprep.subr.mxu0 %v619
        %876 = vmatpush1.msra.mxu0 %v618
        %877 = vmatprep.subr.mxu0 %v624
        %878 = vmatpush1.msra.mxu0 %v623
        %879 = vmatprep.subr.mxu0 %v629
        %880 = vmatpush1.msra.mxu0 %v628
        %881 = vmatprep.subr.mxu0 %v634
        %882 = vmatpush1.msra.mxu0 %v633
        %883 = vmatprep.subr.mxu0 %v639
        %884 = vmatpush1.msra.mxu0 %v638
        %885 = vmatprep.subr.mxu0 %v644
        %886 = vmatpush1.msra.mxu0 %v643
        %887 = vmatprep.subr.mxu0 %v649
        %888 = vmatpush1.msra.mxu0 %v648
        %889 = vmatprep.subr.mxu0 %v654
        %890 = vmatpush1.msra.mxu0 %v653
        %891 = vmatprep.subr.mxu0 %v659
        %892 = vmatpush1.msra.mxu0 %v658
        %893 = vmatprep.subr.mxu0 %v664
        %894 = vmatpush1.msra.mxu0 %v663
        %895 = vmatprep.subr.mxu0 %v669
        %896 = vmatpush1.msra.mxu0 %v668
        %897 = vmatprep.subr.mxu0 %v674
        %898 = vmatpush1.msra.mxu0 %v673
        %899 = vmatprep.subr.mxu0 %v679
        %900 = vmatpush1.msra.mxu0 %v678
        %901 = vmatprep.subr.mxu0 %v684
        %902 = vmatpush1.msra.mxu0 %v683
        %903 = vmatprep.mubr.f32.mxu0 %v366
        %904 = vmatmul.mubr.f32.gmra.mrb[0].mxu0 %v365
        %v905 = vpop.f32.mrb[0].mxu0
        %v906 = vadd.f32 %v835, %v905
        %v907 = vpop.f32.mrb[0].mxu0
        %v908 = vadd.f32 %v837, %v907
        %909 = vdwg.mxu0
        %910 = vmatprep.subr.mxu0 %v689
        %911 = vmatpush1.msra.mxu0 %v688
        %912 = vmatprep.subr.mxu0 %v694
        %913 = vmatpush1.msra.mxu0 %v693
        %914 = vmatprep.subr.mxu0 %v699
        %915 = vmatpush1.msra.mxu0 %v698
        %916 = vmatprep.subr.mxu0 %v704
        %917 = vmatpush1.msra.mxu0 %v703
        %918 = vmatprep.subr.mxu0 %v709
        %919 = vmatpush1.msra.mxu0 %v708
        %920 = vmatprep.subr.mxu0 %v714
        %921 = vmatpush1.msra.mxu0 %v713
        %922 = vmatprep.subr.mxu0 %v719
        %923 = vmatpush1.msra.mxu0 %v718
        %924 = vmatprep.subr.mxu0 %v724
        %925 = vmatpush1.msra.mxu0 %v723
        %926 = vmatprep.subr.mxu0 %v729
        %927 = vmatpush1.msra.mxu0 %v728
        %928 = vmatprep.subr.mxu0 %v734
        %929 = vmatpush1.msra.mxu0 %v733
        %930 = vmatprep.subr.mxu0 %v739
        %931 = vmatpush1.msra.mxu0 %v738
        %932 = vmatprep.subr.mxu0 %v744
        %933 = vmatpush1.msra.mxu0 %v743
        %934 = vmatprep.subr.mxu0 %v749
        %935 = vmatpush1.msra.mxu0 %v748
        %936 = vmatprep.subr.mxu0 %v754
        %937 = vmatpush1.msra.mxu0 %v753
        %938 = vmatprep.subr.mxu0 %v759
        %939 = vmatpush1.msra.mxu0 %v758
        %940 = vmatprep.subr.mxu0 %v764
        %941 = vmatpush1.msra.mxu0 %v763
        %942 = vmatprep.subr.mxu0 0.0
        %943 = vmatpush1.msra.mxu0 0.0
        %944 = vmatprep.subr.mxu0 0.0
        %945 = vmatpush1.msra.mxu0 0.0
        %946 = vmatprep.subr.mxu0 0.0
        %947 = vmatpush1.msra.mxu0 0.0
        %948 = vmatprep.subr.mxu0 0.0
        %949 = vmatpush1.msra.mxu0 0.0
        %950 = vmatprep.subr.mxu0 0.0
        %951 = vmatpush1.msra.mxu0 0.0
        %952 = vmatprep.subr.mxu0 0.0
        %953 = vmatpush1.msra.mxu0 0.0
        %954 = vmatprep.subr.mxu0 0.0
        %955 = vmatpush1.msra.mxu0 0.0
        %956 = vmatprep.subr.mxu0 0.0
        %957 = vmatpush1.msra.mxu0 0.0
        %958 = vmatprep.subr.mxu0 0.0
        %959 = vmatpush1.msra.mxu0 0.0
        %960 = vmatprep.subr.mxu0 0.0
        %961 = vmatpush1.msra.mxu0 0.0
        %962 = vmatprep.subr.mxu0 0.0
        %963 = vmatpush1.msra.mxu0 0.0
        %964 = vmatprep.subr.mxu0 0.0
        %965 = vmatpush1.msra.mxu0 0.0
        %966 = vmatprep.subr.mxu0 0.0
        %967 = vmatpush1.msra.mxu0 0.0
        %968 = vmatprep.subr.mxu0 0.0
        %969 = vmatpush1.msra.mxu0 0.0
        %970 = vmatprep.subr.mxu0 0.0
        %971 = vmatpush1.msra.mxu0 0.0
        %972 = vmatprep.subr.mxu0 0.0
        %973 = vmatpush1.msra.mxu0 0.0
        %974 = vmatprep.mubr.f32.mxu0 0.0
        %975 = vmatmul.mubr.f32.gmra.mrb[0].mxu0 %v367
        %v976 = vpop.f32.mrb[0].mxu0
        %v977 = vadd.f32 %v906, %v976
        %v978 = vpop.f32.mrb[0].mxu0
        %v979 = vadd.f32 %v908, %v978
        %980 = vdwg.mxu0
        %981 = vmatprep.subr.mxu0 %v371
        %982 = vmatpush1.msra.mxu0 %v370
        %983 = vmatprep.subr.mxu0 %v376
        %984 = vmatpush1.msra.mxu0 %v375
        %985 = vmatprep.subr.mxu0 %v381
        %986 = vmatpush1.msra.mxu0 %v380
        %987 = vmatprep.subr.mxu0 %v386
        %988 = vmatpush1.msra.mxu0 %v385
        %989 = vmatprep.subr.mxu0 %v391
        %990 = vmatpush1.msra.mxu0 %v390
        %991 = vmatprep.subr.mxu0 %v396
        %992 = vmatpush1.msra.mxu0 %v395
        %993 = vmatprep.subr.mxu0 %v401
        %994 = vmatpush1.msra.mxu0 %v400
        %995 = vmatprep.subr.mxu0 %v406
        %996 = vmatpush1.msra.mxu0 %v405
        %997 = vmatprep.subr.mxu0 %v411
        %998 = vmatpush1.msra.mxu0 %v410
        %999 = vmatprep.subr.mxu0 %v416
        %1000 = vmatpush1.msra.mxu0 %v415
        %1001 = vmatprep.subr.mxu0 %v421
        %1002 = vmatpush1.msra.mxu0 %v420
        %1003 = vmatprep.subr.mxu0 %v426
        %1004 = vmatpush1.msra.mxu0 %v425
        %1005 = vmatprep.subr.mxu0 %v431
        %1006 = vmatpush1.msra.mxu0 %v430
        %1007 = vmatprep.subr.mxu0 %v436
        %1008 = vmatpush1.msra.mxu0 %v435
        %1009 = vmatprep.subr.mxu0 %v441
        %1010 = vmatpush1.msra.mxu0 %v440
        %1011 = vmatprep.subr.mxu0 %v446
        %1012 = vmatpush1.msra.mxu0 %v445
        %1013 = vmatprep.subr.mxu0 %v451
        %1014 = vmatpush1.msra.mxu0 %v450
        %1015 = vmatprep.subr.mxu0 %v456
        %1016 = vmatpush1.msra.mxu0 %v455
        %1017 = vmatprep.subr.mxu0 %v461
        %1018 = vmatpush1.msra.mxu0 %v460
        %1019 = vmatprep.subr.mxu0 %v466
        %1020 = vmatpush1.msra.mxu0 %v465
        %1021 = vmatprep.subr.mxu0 %v471
        %1022 = vmatpush1.msra.mxu0 %v470
        %1023 = vmatprep.subr.mxu0 %v476
        %1024 = vmatpush1.msra.mxu0 %v475
        %1025 = vmatprep.subr.mxu0 %v481
        %1026 = vmatpush1.msra.mxu0 %v480
        %1027 = vmatprep.subr.mxu0 %v486
        %1028 = vmatpush1.msra.mxu0 %v485
        %1029 = vmatprep.subr.mxu0 %v491
        %1030 = vmatpush1.msra.mxu0 %v490
        %1031 = vmatprep.subr.mxu0 %v496
        %1032 = vmatpush1.msra.mxu0 %v495
        %1033 = vmatprep.subr.mxu0 %v501
        %1034 = vmatpush1.msra.mxu0 %v500
        %1035 = vmatprep.subr.mxu0 %v506
        %1036 = vmatpush1.msra.mxu0 %v505
        %1037 = vmatprep.subr.mxu0 %v511
        %1038 = vmatpush1.msra.mxu0 %v510
        %1039 = vmatprep.subr.mxu0 %v516
        %1040 = vmatpush1.msra.mxu0 %v515
        %1041 = vmatprep.subr.mxu0 %v521
        %1042 = vmatpush1.msra.mxu0 %v520
        %1043 = vmatprep.subr.mxu0 %v526
        %1044 = vmatpush1.msra.mxu0 %v525
        %1045 = vmatprep.mubr.f32.mxu0 %v364
        %1046 = vmatmul.mubr.f32.gmra.mrb[0].mxu0 %v363
        %v1047 = vpop.f32.mrb[0].mxu0
        %v1048 = vadd.f32 0.0, %v1047
        %v1049 = vpop.f32.mrb[0].mxu0
        %v1050 = vadd.f32 0.0, %v1049
        %1051 = vdwg.mxu0
        %1052 = vmatprep.subr.mxu0 %v531
        %1053 = vmatpush1.msra.mxu0 %v530
        %1054 = vmatprep.subr.mxu0 %v536
        %1055 = vmatpush1.msra.mxu0 %v535
        %1056 = vmatprep.subr.mxu0 %v541
        %1057 = vmatpush1.msra.mxu0 %v540
        %1058 = vmatprep.subr.mxu0 %v546
        %1059 = vmatpush1.msra.mxu0 %v545
        %1060 = vmatprep.subr.mxu0 %v551
        %1061 = vmatpush1.msra.mxu0 %v550
        %1062 = vmatprep.subr.mxu0 %v556
        %1063 = vmatpush1.msra.mxu0 %v555
        %1064 = vmatprep.subr.mxu0 %v561
        %1065 = vmatpush1.msra.mxu0 %v560
        %1066 = vmatprep.subr.mxu0 %v566
        %1067 = vmatpush1.msra.mxu0 %v565
        %1068 = vmatprep.subr.mxu0 %v571
        %1069 = vmatpush1.msra.mxu0 %v570
        %1070 = vmatprep.subr.mxu0 %v576
        %1071 = vmatpush1.msra.mxu0 %v575
        %1072 = vmatprep.subr.mxu0 %v581
        %1073 = vmatpush1.msra.mxu0 %v580
        %1074 = vmatprep.subr.mxu0 %v586
        %1075 = vmatpush1.msra.mxu0 %v585
        %1076 = vmatprep.subr.mxu0 %v591
        %1077 = vmatpush1.msra.mxu0 %v590
        %1078 = vmatprep.subr.mxu0 %v596
        %1079 = vmatpush1.msra.mxu0 %v595
        %1080 = vmatprep.subr.mxu0 %v601
        %1081 = vmatpush1.msra.mxu0 %v600
        %1082 = vmatprep.subr.mxu0 %v606
        %1083 = vmatpush1.msra.mxu0 %v605
        %1084 = vmatprep.subr.mxu0 %v611
        %1085 = vmatpush1.msra.mxu0 %v610
        %1086 = vmatprep.subr.mxu0 %v616
        %1087 = vmatpush1.msra.mxu0 %v615
        %1088 = vmatprep.subr.mxu0 %v621
        %1089 = vmatpush1.msra.mxu0 %v620
        %1090 = vmatprep.subr.mxu0 %v626
        %1091 = vmatpush1.msra.mxu0 %v625
        %1092 = vmatprep.subr.mxu0 %v631
        %1093 = vmatpush1.msra.mxu0 %v630
        %1094 = vmatprep.subr.mxu0 %v636
        %1095 = vmatpush1.msra.mxu0 %v635
        %1096 = vmatprep.subr.mxu0 %v641
        %1097 = vmatpush1.msra.mxu0 %v640
        %1098 = vmatprep.subr.mxu0 %v646
        %1099 = vmatpush1.msra.mxu0 %v645
        %1100 = vmatprep.subr.mxu0 %v651
        %1101 = vmatpush1.msra.mxu0 %v650
        %1102 = vmatprep.subr.mxu0 %v656
        %1103 = vmatpush1.msra.mxu0 %v655
        %1104 = vmatprep.subr.mxu0 %v661
        %1105 = vmatpush1.msra.mxu0 %v660
        %1106 = vmatprep.subr.mxu0 %v666
        %1107 = vmatpush1.msra.mxu0 %v665
        %1108 = vmatprep.subr.mxu0 %v671
        %1109 = vmatpush1.msra.mxu0 %v670
        %1110 = vmatprep.subr.mxu0 %v676
        %1111 = vmatpush1.msra.mxu0 %v675
        %1112 = vmatprep.subr.mxu0 %v681
        %1113 = vmatpush1.msra.mxu0 %v680
        %1114 = vmatprep.subr.mxu0 %v686
        %1115 = vmatpush1.msra.mxu0 %v685
        %1116 = vmatprep.mubr.f32.mxu0 %v366
        %1117 = vmatmul.mubr.f32.gmra.mrb[0].mxu0 %v365
        %v1118 = vpop.f32.mrb[0].mxu0
        %v1119 = vadd.f32 %v1048, %v1118
        %v1120 = vpop.f32.mrb[0].mxu0
        %v1121 = vadd.f32 %v1050, %v1120
        %1122 = vdwg.mxu0
        %1123 = vmatprep.subr.mxu0 %v691
        %1124 = vmatpush1.msra.mxu0 %v690
        %1125 = vmatprep.subr.mxu0 %v696
        %1126 = vmatpush1.msra.mxu0 %v695
        %1127 = vmatprep.subr.mxu0 %v701
        %1128 = vmatpush1.msra.mxu0 %v700
        %1129 = vmatprep.subr.mxu0 %v706
        %1130 = vmatpush1.msra.mxu0 %v705
        %1131 = vmatprep.subr.mxu0 %v711
        %1132 = vmatpush1.msra.mxu0 %v710
        %1133 = vmatprep.subr.mxu0 %v716
        %1134 = vmatpush1.msra.mxu0 %v715
        %1135 = vmatprep.subr.mxu0 %v721
        %1136 = vmatpush1.msra.mxu0 %v720
        %1137 = vmatprep.subr.mxu0 %v726
        %1138 = vmatpush1.msra.mxu0 %v725
        %1139 = vmatprep.subr.mxu0 %v731
        %1140 = vmatpush1.msra.mxu0 %v730
        %1141 = vmatprep.subr.mxu0 %v736
        %1142 = vmatpush1.msra.mxu0 %v735
        %1143 = vmatprep.subr.mxu0 %v741
        %1144 = vmatpush1.msra.mxu0 %v740
        %1145 = vmatprep.subr.mxu0 %v746
        %1146 = vmatpush1.msra.mxu0 %v745
        %1147 = vmatprep.subr.mxu0 %v751
        %1148 = vmatpush1.msra.mxu0 %v750
        %1149 = vmatprep.subr.mxu0 %v756
        %1150 = vmatpush1.msra.mxu0 %v755
        %1151 = vmatprep.subr.mxu0 %v761
        %1152 = vmatpush1.msra.mxu0 %v760
        %1153 = vmatprep.subr.mxu0 %v766
        %1154 = vmatpush1.msra.mxu0 %v765
        %1155 = vmatprep.subr.mxu0 0.0
        %1156 = vmatpush1.msra.mxu0 0.0
        %1157 = vmatprep.subr.mxu0 0.0
        %1158 = vmatpush1.msra.mxu0 0.0
        %1159 = vmatprep.subr.mxu0 0.0
        %1160 = vmatpush1.msra.mxu0 0.0
        %1161 = vmatprep.subr.mxu0 0.0
        %1162 = vmatpush1.msra.mxu0 0.0
        %1163 = vmatprep.subr.mxu0 0.0
        %1164 = vmatpush1.msra.mxu0 0.0
        %1165 = vmatprep.subr.mxu0 0.0
        %1166 = vmatpush1.msra.mxu0 0.0
        %1167 = vmatprep.subr.mxu0 0.0
        %1168 = vmatpush1.msra.mxu0 0.0
        %1169 = vmatprep.subr.mxu0 0.0
        %1170 = vmatpush1.msra.mxu0 0.0
        %1171 = vmatprep.subr.mxu0 0.0
        %1172 = vmatpush1.msra.mxu0 0.0
        %1173 = vmatprep.subr.mxu0 0.0
        %1174 = vmatpush1.msra.mxu0 0.0
        %1175 = vmatprep.subr.mxu0 0.0
        %1176 = vmatpush1.msra.mxu0 0.0
        %1177 = vmatprep.subr.mxu0 0.0
        %1178 = vmatpush1.msra.mxu0 0.0
        %1179 = vmatprep.subr.mxu0 0.0
        %1180 = vmatpush1.msra.mxu0 0.0
        %1181 = vmatprep.subr.mxu0 0.0
        %1182 = vmatpush1.msra.mxu0 0.0
        %1183 = vmatprep.subr.mxu0 0.0
        %1184 = vmatpush1.msra.mxu0 0.0
        %1185 = vmatprep.subr.mxu0 0.0
        %1186 = vmatpush1.msra.mxu0 0.0
        %1187 = vmatprep.mubr.f32.mxu0 0.0
        %1188 = vmatmul.mubr.f32.gmra.mrb[0].mxu0 %v367
        %v1189 = vpop.f32.mrb[0].mxu0
        %v1190 = vadd.f32 %v1119, %v1189
        %v1191 = vpop.f32.mrb[0].mxu0
        %v1192 = vadd.f32 %v1121, %v1191
        %1193 = vdwg.mxu0
        %1194 = vmatprep.subr.mxu0 0.0
        %1195 = vmatpush1.msra.mxu0 %v372
        %1196 = vmatprep.subr.mxu0 0.0
        %1197 = vmatpush1.msra.mxu0 %v377
        %1198 = vmatprep.subr.mxu0 0.0
        %1199 = vmatpush1.msra.mxu0 %v382
        %1200 = vmatprep.subr.mxu0 0.0
        %1201 = vmatpush1.msra.mxu0 %v387
        %1202 = vmatprep.subr.mxu0 0.0
        %1203 = vmatpush1.msra.mxu0 %v392
        %1204 = vmatprep.subr.mxu0 0.0
        %1205 = vmatpush1.msra.mxu0 %v397
        %1206 = vmatprep.subr.mxu0 0.0
        %1207 = vmatpush1.msra.mxu0 %v402
        %1208 = vmatprep.subr.mxu0 0.0
        %1209 = vmatpush1.msra.mxu0 %v407
        %1210 = vmatprep.subr.mxu0 0.0
        %1211 = vmatpush1.msra.mxu0 %v412
        %1212 = vmatprep.subr.mxu0 0.0
        %1213 = vmatpush1.msra.mxu0 %v417
        %1214 = vmatprep.subr.mxu0 0.0
        %1215 = vmatpush1.msra.mxu0 %v422
        %1216 = vmatprep.subr.mxu0 0.0
        %1217 = vmatpush1.msra.mxu0 %v427
        %1218 = vmatprep.subr.mxu0 0.0
        %1219 = vmatpush1.msra.mxu0 %v432
        %1220 = vmatprep.subr.mxu0 0.0
        %1221 = vmatpush1.msra.mxu0 %v437
        %1222 = vmatprep.subr.mxu0 0.0
        %1223 = vmatpush1.msra.mxu0 %v442
        %1224 = vmatprep.subr.mxu0 0.0
        %1225 = vmatpush1.msra.mxu0 %v447
        %1226 = vmatprep.subr.mxu0 0.0
        %1227 = vmatpush1.msra.mxu0 %v452
        %1228 = vmatprep.subr.mxu0 0.0
        %1229 = vmatpush1.msra.mxu0 %v457
        %1230 = vmatprep.subr.mxu0 0.0
        %1231 = vmatpush1.msra.mxu0 %v462
        %1232 = vmatprep.subr.mxu0 0.0
        %1233 = vmatpush1.msra.mxu0 %v467
        %1234 = vmatprep.subr.mxu0 0.0
        %1235 = vmatpush1.msra.mxu0 %v472
        %1236 = vmatprep.subr.mxu0 0.0
        %1237 = vmatpush1.msra.mxu0 %v477
        %1238 = vmatprep.subr.mxu0 0.0
        %1239 = vmatpush1.msra.mxu0 %v482
        %1240 = vmatprep.subr.mxu0 0.0
        %1241 = vmatpush1.msra.mxu0 %v487
        %1242 = vmatprep.subr.mxu0 0.0
        %1243 = vmatpush1.msra.mxu0 %v492
        %1244 = vmatprep.subr.mxu0 0.0
        %1245 = vmatpush1.msra.mxu0 %v497
        %1246 = vmatprep.subr.mxu0 0.0
        %1247 = vmatpush1.msra.mxu0 %v502
        %1248 = vmatprep.subr.mxu0 0.0
        %1249 = vmatpush1.msra.mxu0 %v507
        %1250 = vmatprep.subr.mxu0 0.0
        %1251 = vmatpush1.msra.mxu0 %v512
        %1252 = vmatprep.subr.mxu0 0.0
        %1253 = vmatpush1.msra.mxu0 %v517
        %1254 = vmatprep.subr.mxu0 0.0
        %1255 = vmatpush1.msra.mxu0 %v522
        %1256 = vmatprep.subr.mxu0 0.0
        %1257 = vmatpush1.msra.mxu0 %v527
        %1258 = vmatprep.mubr.f32.mxu0 %v364
        %1259 = vmatmul.mubr.f32.gmra.mrb[0].mxu0 %v363
        %v1260 = vpop.f32.mrb[0].mxu0
        %v1261 = vadd.f32 0.0, %v1260
        %v1262 = vpop.f32.mrb[0].mxu0
        %1263 = vdwg.mxu0
        %1264 = vmatprep.subr.mxu0 0.0
        %1265 = vmatpush1.msra.mxu0 %v532
        %1266 = vmatprep.subr.mxu0 0.0
        %1267 = vmatpush1.msra.mxu0 %v537
        %1268 = vmatprep.subr.mxu0 0.0
        %1269 = vmatpush1.msra.mxu0 %v542
        %1270 = vmatprep.subr.mxu0 0.0
        %1271 = vmatpush1.msra.mxu0 %v547
        %1272 = vmatprep.subr.mxu0 0.0
        %1273 = vmatpush1.msra.mxu0 %v552
        %1274 = vmatprep.subr.mxu0 0.0
        %1275 = vmatpush1.msra.mxu0 %v557
        %1276 = vmatprep.subr.mxu0 0.0
        %1277 = vmatpush1.msra.mxu0 %v562
        %1278 = vmatprep.subr.mxu0 0.0
        %1279 = vmatpush1.msra.mxu0 %v567
        %1280 = vmatprep.subr.mxu0 0.0
        %1281 = vmatpush1.msra.mxu0 %v572
        %1282 = vmatprep.subr.mxu0 0.0
        %1283 = vmatpush1.msra.mxu0 %v577
        %1284 = vmatprep.subr.mxu0 0.0
        %1285 = vmatpush1.msra.mxu0 %v582
        %1286 = vmatprep.subr.mxu0 0.0
        %1287 = vmatpush1.msra.mxu0 %v587
        %1288 = vmatprep.subr.mxu0 0.0
        %1289 = vmatpush1.msra.mxu0 %v592
        %1290 = vmatprep.subr.mxu0 0.0
        %1291 = vmatpush1.msra.mxu0 %v597
        %1292 = vmatprep.subr.mxu0 0.0
        %1293 = vmatpush1.msra.mxu0 %v602
        %1294 = vmatprep.subr.mxu0 0.0
        %1295 = vmatpush1.msra.mxu0 %v607
        %1296 = vmatprep.subr.mxu0 0.0
        %1297 = vmatpush1.msra.mxu0 %v612
        %1298 = vmatprep.subr.mxu0 0.0
        %1299 = vmatpush1.msra.mxu0 %v617
        %1300 = vmatprep.subr.mxu0 0.0
        %1301 = vmatpush1.msra.mxu0 %v622
        %1302 = vmatprep.subr.mxu0 0.0
        %1303 = vmatpush1.msra.mxu0 %v627
        %1304 = vmatprep.subr.mxu0 0.0
        %1305 = vmatpush1.msra.mxu0 %v632
        %1306 = vmatprep.subr.mxu0 0.0
        %1307 = vmatpush1.msra.mxu0 %v637
        %1308 = vmatprep.subr.mxu0 0.0
        %1309 = vmatpush1.msra.mxu0 %v642
        %1310 = vmatprep.subr.mxu0 0.0
        %1311 = vmatpush1.msra.mxu0 %v647
        %1312 = vmatprep.subr.mxu0 0.0
        %1313 = vmatpush1.msra.mxu0 %v652
        %1314 = vmatprep.subr.mxu0 0.0
        %1315 = vmatpush1.msra.mxu0 %v657
        %1316 = vmatprep.subr.mxu0 0.0
        %1317 = vmatpush1.msra.mxu0 %v662
        %1318 = vmatprep.subr.mxu0 0.0
        %1319 = vmatpush1.msra.mxu0 %v667
        %1320 = vmatprep.subr.mxu0 0.0
        %1321 = vmatpush1.msra.mxu0 %v672
        %1322 = vmatprep.subr.mxu0 0.0
        %1323 = vmatpush1.msra.mxu0 %v677
        %1324 = vmatprep.subr.mxu0 0.0
        %1325 = vmatpush1.msra.mxu0 %v682
        %1326 = vmatprep.subr.mxu0 0.0
        %1327 = vmatpush1.msra.mxu0 %v687
        %1328 = vmatprep.mubr.f32.mxu0 %v366
        %1329 = vmatmul.mubr.f32.gmra.mrb[0].mxu0 %v365
        %v1330 = vpop.f32.mrb[0].mxu0
        %v1331 = vadd.f32 %v1261, %v1330
        %v1332 = vpop.f32.mrb[0].mxu0
        %1333 = vdwg.mxu0
        %1334 = vmatprep.subr.mxu0 0.0
        %1335 = vmatpush1.msra.mxu0 %v692
        %1336 = vmatprep.subr.mxu0 0.0
        %1337 = vmatpush1.msra.mxu0 %v697
        %1338 = vmatprep.subr.mxu0 0.0
        %1339 = vmatpush1.msra.mxu0 %v702
        %1340 = vmatprep.subr.mxu0 0.0
        %1341 = vmatpush1.msra.mxu0 %v707
        %1342 = vmatprep.subr.mxu0 0.0
        %1343 = vmatpush1.msra.mxu0 %v712
        %1344 = vmatprep.subr.mxu0 0.0
        %1345 = vmatpush1.msra.mxu0 %v717
        %1346 = vmatprep.subr.mxu0 0.0
        %1347 = vmatpush1.msra.mxu0 %v722
        %1348 = vmatprep.subr.mxu0 0.0
        %1349 = vmatpush1.msra.mxu0 %v727
        %1350 = vmatprep.subr.mxu0 0.0
        %1351 = vmatpush1.msra.mxu0 %v732
        %1352 = vmatprep.subr.mxu0 0.0
        %1353 = vmatpush1.msra.mxu0 %v737
        %1354 = vmatprep.subr.mxu0 0.0
        %1355 = vmatpush1.msra.mxu0 %v742
        %1356 = vmatprep.subr.mxu0 0.0
        %1357 = vmatpush1.msra.mxu0 %v747
        %1358 = vmatprep.subr.mxu0 0.0
        %1359 = vmatpush1.msra.mxu0 %v752
        %1360 = vmatprep.subr.mxu0 0.0
        %1361 = vmatpush1.msra.mxu0 %v757
        %1362 = vmatprep.subr.mxu0 0.0
        %1363 = vmatpush1.msra.mxu0 %v762
        %1364 = vmatprep.subr.mxu0 0.0
        %1365 = vmatpush1.msra.mxu0 %v767
        %1366 = vmatprep.subr.mxu0 0.0
        %1367 = vmatpush1.msra.mxu0 0.0
        %1368 = vmatprep.subr.mxu0 0.0
        %1369 = vmatpush1.msra.mxu0 0.0
        %1370 = vmatprep.subr.mxu0 0.0
        %1371 = vmatpush1.msra.mxu0 0.0
        %1372 = vmatprep.subr.mxu0 0.0
        %1373 = vmatpush1.msra.mxu0 0.0
        %1374 = vmatprep.subr.mxu0 0.0
        %1375 = vmatpush1.msra.mxu0 0.0
        %1376 = vmatprep.subr.mxu0 0.0
        %1377 = vmatpush1.msra.mxu0 0.0
        %1378 = vmatprep.subr.mxu0 0.0
        %1379 = vmatpush1.msra.mxu0 0.0
        %1380 = vmatprep.subr.mxu0 0.0
        %1381 = vmatpush1.msra.mxu0 0.0
        %1382 = vmatprep.subr.mxu0 0.0
        %1383 = vmatpush1.msra.mxu0 0.0
        %1384 = vmatprep.subr.mxu0 0.0
        %1385 = vmatpush1.msra.mxu0 0.0
        %1386 = vmatprep.subr.mxu0 0.0
        %1387 = vmatpush1.msra.mxu0 0.0
        %1388 = vmatprep.subr.mxu0 0.0
        %1389 = vmatpush1.msra.mxu0 0.0
        %1390 = vmatprep.subr.mxu0 0.0
        %1391 = vmatpush1.msra.mxu0 0.0
        %1392 = vmatprep.subr.mxu0 0.0
        %1393 = vmatpush1.msra.mxu0 0.0
        %1394 = vmatprep.subr.mxu0 0.0
        %1395 = vmatpush1.msra.mxu0 0.0
        %1396 = vmatprep.subr.mxu0 0.0
        %1397 = vmatpush1.msra.mxu0 0.0
        %1398 = vmatprep.mubr.f32.mxu0 0.0
        %1399 = vmatmul.mubr.f32.gmra.mrb[0].mxu0 %v367
        %v1400 = vpop.f32.mrb[0].mxu0
        %v1401 = vadd.f32 %v1331, %v1400
        %v1402 = vpop.f32.mrb[0].mxu0
        %1403 = vdwg.mxu0
        %v1404 = vmul.f32 %v977, 0.03952847
        %v1405 = vmul.f32 %v979, 0.03952847
        %v1406 = vmul.f32 %v1190, 0.03952847
        %v1407 = vmul.f32 %v1192, 0.03952847
        %v1408 = vmul.f32 %v1401, 0.03952847
        %v1409 = vld [vmem:[%s311] sm:$0xff]
        %v1410 = vld [vmem:[%s311 + $0x8] sm:$0xff]
        %v1411 = vld [vmem:[%s311 + $0x10] sm:$0xff]
        %v1412 = vld [vmem:[%s311 + $0x18] sm:$0xff]
        %v1413 = vld [vmem:[%s311 + $0x20] sm:$0xff]
        %v1414 = vld [vmem:[%s311 + $0x28] sm:$0xff]
        %v1415 = vld [vmem:[%s311 + $0x30] sm:$0xff]
        %v1416 = vld [vmem:[%s311 + $0x38] sm:$0xff]
        %v1417 = vld [vmem:[%s311 + $0x40] sm:$0xff]
        %v1418 = vld [vmem:[%s311 + $0x48] sm:$0xff]
        %v1419 = vld [vmem:[#allocation8] sm:$0xff]
        %v1420 = vld [vmem:[#allocation8 + $0x8] sm:$0xff]
        %v1421 = vld [vmem:[#allocation8 + $0x10] sm:$0xff]
        %v1422 = vld [vmem:[#allocation8 + $0x18] sm:$0xff]
        %v1423 = vld [vmem:[#allocation8 + $0x20] sm:$0xff]
        %v1424 = vld [vmem:[#allocation8 + $0x28] sm:$0xff]
        %v1425 = vld [vmem:[#allocation8 + $0x30] sm:$0xff]
        %v1426 = vld [vmem:[#allocation8 + $0x38] sm:$0xff]
        %v1427 = vld [vmem:[#allocation8 + $0x40] sm:$0xff]
        %v1428 = vld [vmem:[#allocation8 + $0x48] sm:$0xff]
        %v1429 = vld [vmem:[#allocation8 + $0x50] sm:$0xff]
        %v1430 = vld [vmem:[#allocation8 + $0x58] sm:$0xff]
        %v1431 = vld [vmem:[#allocation8 + $0x60] sm:$0xff]
        %v1432 = vld [vmem:[#allocation8 + $0x68] sm:$0xff]
        %v1433 = vld [vmem:[#allocation8 + $0x70] sm:$0xff]
        %v1434 = vld [vmem:[#allocation8 + $0x78] sm:$0xff]
        %v1435 = vld [vmem:[#allocation8 + $0x80] sm:$0xff]
        %v1436 = vld [vmem:[#allocation8 + $0x88] sm:$0xff]
        %v1437 = vld [vmem:[#allocation8 + $0x90] sm:$0xff]
        %v1438 = vld [vmem:[#allocation8 + $0x98] sm:$0xff]
        %v1439 = vld [vmem:[#allocation8 + $0xa0] sm:$0xff]
        %v1440 = vld [vmem:[#allocation8 + $0xa8] sm:$0xff]
        %v1441 = vld [vmem:[#allocation8 + $0xb0] sm:$0xff]
        %v1442 = vld [vmem:[#allocation8 + $0xb8] sm:$0xff]
        %v1443 = vld [vmem:[#allocation8 + $0xc0] sm:$0xff]
        %v1444 = vld [vmem:[#allocation8 + $0xc8] sm:$0xff]
        %v1445 = vld [vmem:[#allocation8 + $0xd0] sm:$0xff]
        %v1446 = vld [vmem:[#allocation8 + $0xd8] sm:$0xff]
        %v1447 = vld [vmem:[#allocation8 + $0xe0] sm:$0xff]
        %v1448 = vld [vmem:[#allocation8 + $0xe8] sm:$0xff]
        %v1449 = vld [vmem:[#allocation8 + $0xf0] sm:$0xff]
        %v1450 = vld [vmem:[#allocation8 + $0xf8] sm:$0xff]
        %v1451 = vld [vmem:[#allocation8 + $0x100] sm:$0xff]
        %v1452 = vld [vmem:[#allocation8 + $0x108] sm:$0xff]
        %v1453 = vld [vmem:[#allocation8 + $0x110] sm:$0xff]
        %v1454 = vld [vmem:[#allocation8 + $0x118] sm:$0xff]
        %v1455 = vld [vmem:[#allocation8 + $0x120] sm:$0xff]
        %v1456 = vld [vmem:[#allocation8 + $0x128] sm:$0xff]
        %v1457 = vld [vmem:[#allocation8 + $0x130] sm:$0xff]
        %v1458 = vld [vmem:[#allocation8 + $0x138] sm:$0xff]
        %v1459 = vld [vmem:[#allocation8 + $0x140] sm:$0xff]
        %v1460 = vld [vmem:[#allocation8 + $0x148] sm:$0xff]
        %v1461 = vld [vmem:[#allocation8 + $0x150] sm:$0xff]
        %v1462 = vld [vmem:[#allocation8 + $0x158] sm:$0xff]
        %v1463 = vld [vmem:[#allocation8 + $0x160] sm:$0xff]
        %v1464 = vld [vmem:[#allocation8 + $0x168] sm:$0xff]
        %v1465 = vld [vmem:[#allocation8 + $0x170] sm:$0xff]
        %v1466 = vld [vmem:[#allocation8 + $0x178] sm:$0xff]
        %v1467 = vld [vmem:[#allocation8 + $0x180] sm:$0xff]
        %v1468 = vld [vmem:[#allocation8 + $0x188] sm:$0xff]
        %v1469 = vld [vmem:[#allocation8 + $0x190] sm:$0xff]
        %v1470 = vld [vmem:[#allocation8 + $0x198] sm:$0xff]
        %v1471 = vld [vmem:[#allocation8 + $0x1a0] sm:$0xff]
        %v1472 = vld [vmem:[#allocation8 + $0x1a8] sm:$0xff]
        %v1473 = vld [vmem:[#allocation8 + $0x1b0] sm:$0xff]
        %v1474 = vld [vmem:[#allocation8 + $0x1b8] sm:$0xff]
        %v1475 = vld [vmem:[#allocation8 + $0x1c0] sm:$0xff]
        %v1476 = vld [vmem:[#allocation8 + $0x1c8] sm:$0xff]
        %v1477 = vld [vmem:[#allocation8 + $0x1d0] sm:$0xff]
        %v1478 = vld [vmem:[#allocation8 + $0x1d8] sm:$0xff]
        %v1479 = vld [vmem:[#allocation8 + $0x1e0] sm:$0xff]
        %v1480 = vld [vmem:[#allocation8 + $0x1e8] sm:$0xff]
        %v1481 = vld [vmem:[#allocation8 + $0x1f0] sm:$0xff]
        %v1482 = vld [vmem:[#allocation8 + $0x1f8] sm:$0xff]
        %v1483 = vld [vmem:[#allocation8 + $0x200] sm:$0xff]
        %v1484 = vld [vmem:[#allocation8 + $0x208] sm:$0xff]
        %v1485 = vld [vmem:[#allocation8 + $0x210] sm:$0xff]
        %v1486 = vld [vmem:[#allocation8 + $0x218] sm:$0xff]
        %v1487 = vld [vmem:[#allocation8 + $0x220] sm:$0xff]
        %v1488 = vld [vmem:[#allocation8 + $0x228] sm:$0xff]
        %v1489 = vld [vmem:[#allocation8 + $0x230] sm:$0xff]
        %v1490 = vld [vmem:[#allocation8 + $0x238] sm:$0xff]
        %v1491 = vld [vmem:[#allocation8 + $0x240] sm:$0xff]
        %v1492 = vld [vmem:[#allocation8 + $0x248] sm:$0xff]
        %v1493 = vld [vmem:[#allocation8 + $0x250] sm:$0xff]
        %v1494 = vld [vmem:[#allocation8 + $0x258] sm:$0xff]
        %v1495 = vld [vmem:[#allocation8 + $0x260] sm:$0xff]
        %v1496 = vld [vmem:[#allocation8 + $0x268] sm:$0xff]
        %v1497 = vld [vmem:[#allocation8 + $0x270] sm:$0xff]
        %v1498 = vld [vmem:[#allocation8 + $0x278] sm:$0xff]
        %v1499 = vld [vmem:[#allocation8 + $0x280] sm:$0xff]
        %v1500 = vld [vmem:[#allocation8 + $0x288] sm:$0xff]
        %v1501 = vld [vmem:[#allocation8 + $0x290] sm:$0xff]
        %v1502 = vld [vmem:[#allocation8 + $0x298] sm:$0xff]
        %v1503 = vld [vmem:[#allocation8 + $0x2a0] sm:$0xff]
        %v1504 = vld [vmem:[#allocation8 + $0x2a8] sm:$0xff]
        %v1505 = vld [vmem:[#allocation8 + $0x2b0] sm:$0xff]
        %v1506 = vld [vmem:[#allocation8 + $0x2b8] sm:$0xff]
        %v1507 = vld [vmem:[#allocation8 + $0x2c0] sm:$0xff]
        %v1508 = vld [vmem:[#allocation8 + $0x2c8] sm:$0xff]
        %v1509 = vld [vmem:[#allocation8 + $0x2d0] sm:$0xff]
        %v1510 = vld [vmem:[#allocation8 + $0x2d8] sm:$0xff]
        %v1511 = vld [vmem:[#allocation8 + $0x2e0] sm:$0xff]
        %v1512 = vld [vmem:[#allocation8 + $0x2e8] sm:$0xff]
        %v1513 = vld [vmem:[#allocation8 + $0x2f0] sm:$0xff]
        %v1514 = vld [vmem:[#allocation8 + $0x2f8] sm:$0xff]
        %v1515 = vld [vmem:[#allocation8 + $0x300] sm:$0xff]
        %v1516 = vld [vmem:[#allocation8 + $0x308] sm:$0xff]
        %v1517 = vld [vmem:[#allocation8 + $0x310] sm:$0xff]
        %v1518 = vld [vmem:[#allocation8 + $0x318] sm:$0xff]
        %v1519 = vld [vmem:[#allocation8 + $0x320] sm:$0xff]
        %v1520 = vld [vmem:[#allocation8 + $0x328] sm:$0xff]
        %v1521 = vld [vmem:[#allocation8 + $0x330] sm:$0xff]
        %v1522 = vld [vmem:[#allocation8 + $0x338] sm:$0xff]
        %v1523 = vld [vmem:[#allocation8 + $0x340] sm:$0xff]
        %v1524 = vld [vmem:[#allocation8 + $0x348] sm:$0xff]
        %v1525 = vld [vmem:[#allocation8 + $0x350] sm:$0xff]
        %v1526 = vld [vmem:[#allocation8 + $0x358] sm:$0xff]
        %v1527 = vld [vmem:[#allocation8 + $0x360] sm:$0xff]
        %v1528 = vld [vmem:[#allocation8 + $0x368] sm:$0xff]
        %v1529 = vld [vmem:[#allocation8 + $0x370] sm:$0xff]
        %v1530 = vld [vmem:[#allocation8 + $0x378] sm:$0xff]
        %v1531 = vld [vmem:[#allocation8 + $0x380] sm:$0xff]
        %v1532 = vld [vmem:[#allocation8 + $0x388] sm:$0xff]
        %v1533 = vld [vmem:[#allocation8 + $0x390] sm:$0xff]
        %v1534 = vld [vmem:[#allocation8 + $0x398] sm:$0xff]
        %v1535 = vld [vmem:[#allocation8 + $0x3a0] sm:$0xff]
        %v1536 = vld [vmem:[#allocation8 + $0x3a8] sm:$0xff]
        %v1537 = vld [vmem:[#allocation8 + $0x3b0] sm:$0xff]
        %v1538 = vld [vmem:[#allocation8 + $0x3b8] sm:$0xff]
        %v1539 = vld [vmem:[#allocation8 + $0x3c0] sm:$0xff]
        %v1540 = vld [vmem:[#allocation8 + $0x3c8] sm:$0xff]
        %v1541 = vld [vmem:[#allocation8 + $0x3d0] sm:$0xff]
        %v1542 = vld [vmem:[#allocation8 + $0x3d8] sm:$0xff]
        %v1543 = vld [vmem:[#allocation8 + $0x3e0] sm:$0xff]
        %v1544 = vld [vmem:[#allocation8 + $0x3e8] sm:$0xff]
        %v1545 = vld [vmem:[#allocation8 + $0x3f0] sm:$0xff]
        %v1546 = vld [vmem:[#allocation8 + $0x3f8] sm:$0xff]
        %v1547 = vld [vmem:[#allocation8 + $0x400] sm:$0xff]
        %v1548 = vld [vmem:[#allocation8 + $0x408] sm:$0xff]
        %v1549 = vld [vmem:[#allocation8 + $0x410] sm:$0xff]
        %v1550 = vld [vmem:[#allocation8 + $0x418] sm:$0xff]
        %v1551 = vld [vmem:[#allocation8 + $0x420] sm:$0xff]
        %v1552 = vld [vmem:[#allocation8 + $0x428] sm:$0xff]
        %v1553 = vld [vmem:[#allocation8 + $0x430] sm:$0xff]
        %v1554 = vld [vmem:[#allocation8 + $0x438] sm:$0xff]
        %v1555 = vld [vmem:[#allocation8 + $0x440] sm:$0xff]
        %v1556 = vld [vmem:[#allocation8 + $0x448] sm:$0xff]
        %v1557 = vld [vmem:[#allocation8 + $0x450] sm:$0xff]
        %v1558 = vld [vmem:[#allocation8 + $0x458] sm:$0xff]
        %v1559 = vld [vmem:[#allocation8 + $0x460] sm:$0xff]
        %v1560 = vld [vmem:[#allocation8 + $0x468] sm:$0xff]
        %v1561 = vld [vmem:[#allocation8 + $0x470] sm:$0xff]
        %v1562 = vld [vmem:[#allocation8 + $0x478] sm:$0xff]
        %v1563 = vld [vmem:[#allocation8 + $0x480] sm:$0xff]
        %v1564 = vld [vmem:[#allocation8 + $0x488] sm:$0xff]
        %v1565 = vld [vmem:[#allocation8 + $0x490] sm:$0xff]
        %v1566 = vld [vmem:[#allocation8 + $0x498] sm:$0xff]
        %v1567 = vld [vmem:[#allocation8 + $0x4a0] sm:$0xff]
        %v1568 = vld [vmem:[#allocation8 + $0x4a8] sm:$0xff]
        %v1569 = vld [vmem:[#allocation8 + $0x4b0] sm:$0xff]
        %v1570 = vld [vmem:[#allocation8 + $0x4b8] sm:$0xff]
        %v1571 = vld [vmem:[#allocation8 + $0x4c0] sm:$0xff]
        %v1572 = vld [vmem:[#allocation8 + $0x4c8] sm:$0xff]
        %v1573 = vld [vmem:[#allocation8 + $0x4d0] sm:$0xff]
        %v1574 = vld [vmem:[#allocation8 + $0x4d8] sm:$0xff]
        %v1575 = vld [vmem:[#allocation8 + $0x4e0] sm:$0xff]
        %v1576 = vld [vmem:[#allocation8 + $0x4e8] sm:$0xff]
        %v1577 = vld [vmem:[#allocation8 + $0x4f0] sm:$0xff]
        %v1578 = vld [vmem:[#allocation8 + $0x4f8] sm:$0xff]
        %v1579 = vld [vmem:[#allocation8 + $0x500] sm:$0xff]
        %v1580 = vld [vmem:[#allocation8 + $0x508] sm:$0xff]
        %v1581 = vld [vmem:[#allocation8 + $0x510] sm:$0xff]
        %v1582 = vld [vmem:[#allocation8 + $0x518] sm:$0xff]
        %v1583 = vld [vmem:[#allocation8 + $0x520] sm:$0xff]
        %v1584 = vld [vmem:[#allocation8 + $0x528] sm:$0xff]
        %v1585 = vld [vmem:[#allocation8 + $0x530] sm:$0xff]
        %v1586 = vld [vmem:[#allocation8 + $0x538] sm:$0xff]
        %v1587 = vld [vmem:[#allocation8 + $0x540] sm:$0xff]
        %v1588 = vld [vmem:[#allocation8 + $0x548] sm:$0xff]
        %v1589 = vld [vmem:[#allocation8 + $0x550] sm:$0xff]
        %v1590 = vld [vmem:[#allocation8 + $0x558] sm:$0xff]
        %v1591 = vld [vmem:[#allocation8 + $0x560] sm:$0xff]
        %v1592 = vld [vmem:[#allocation8 + $0x568] sm:$0xff]
        %v1593 = vld [vmem:[#allocation8 + $0x570] sm:$0xff]
        %v1594 = vld [vmem:[#allocation8 + $0x578] sm:$0xff]
        %v1595 = vld [vmem:[#allocation8 + $0x580] sm:$0xff]
        %v1596 = vld [vmem:[#allocation8 + $0x588] sm:$0xff]
        %v1597 = vld [vmem:[#allocation8 + $0x590] sm:$0xff]
        %v1598 = vld [vmem:[#allocation8 + $0x598] sm:$0xff]
        %v1599 = vld [vmem:[#allocation8 + $0x5a0] sm:$0xff]
        %v1600 = vld [vmem:[#allocation8 + $0x5a8] sm:$0xff]
        %v1601 = vld [vmem:[#allocation8 + $0x5b0] sm:$0xff]
        %v1602 = vld [vmem:[#allocation8 + $0x5b8] sm:$0xff]
        %v1603 = vld [vmem:[#allocation8 + $0x5c0] sm:$0xff]
        %v1604 = vld [vmem:[#allocation8 + $0x5c8] sm:$0xff]
        %v1605 = vld [vmem:[#allocation8 + $0x5d0] sm:$0xff]
        %v1606 = vld [vmem:[#allocation8 + $0x5d8] sm:$0xff]
        %v1607 = vld [vmem:[#allocation8 + $0x5e0] sm:$0xff]
        %v1608 = vld [vmem:[#allocation8 + $0x5e8] sm:$0xff]
        %v1609 = vld [vmem:[#allocation8 + $0x5f0] sm:$0xff]
        %v1610 = vld [vmem:[#allocation8 + $0x5f8] sm:$0xff]
        %v1611 = vld [vmem:[#allocation8 + $0x600] sm:$0xff]
        %v1612 = vld [vmem:[#allocation8 + $0x608] sm:$0xff]
        %v1613 = vld [vmem:[#allocation8 + $0x610] sm:$0xff]
        %v1614 = vld [vmem:[#allocation8 + $0x618] sm:$0xff]
        %v1615 = vld [vmem:[#allocation8 + $0x620] sm:$0xff]
        %v1616 = vld [vmem:[#allocation8 + $0x628] sm:$0xff]
        %v1617 = vld [vmem:[#allocation8 + $0x630] sm:$0xff]
        %v1618 = vld [vmem:[#allocation8 + $0x638] sm:$0xff]
        %v1619 = vld [vmem:[#allocation8 + $0x640] sm:$0xff]
        %v1620 = vld [vmem:[#allocation8 + $0x648] sm:$0xff]
        %v1621 = vld [vmem:[#allocation8 + $0x650] sm:$0xff]
        %v1622 = vld [vmem:[#allocation8 + $0x658] sm:$0xff]
        %v1623 = vld [vmem:[#allocation8 + $0x660] sm:$0xff]
        %v1624 = vld [vmem:[#allocation8 + $0x668] sm:$0xff]
        %v1625 = vld [vmem:[#allocation8 + $0x670] sm:$0xff]
        %v1626 = vld [vmem:[#allocation8 + $0x678] sm:$0xff]
        %v1627 = vld [vmem:[#allocation8 + $0x680] sm:$0xff]
        %v1628 = vld [vmem:[#allocation8 + $0x688] sm:$0xff]
        %v1629 = vld [vmem:[#allocation8 + $0x690] sm:$0xff]
        %v1630 = vld [vmem:[#allocation8 + $0x698] sm:$0xff]
        %v1631 = vld [vmem:[#allocation8 + $0x6a0] sm:$0xff]
        %v1632 = vld [vmem:[#allocation8 + $0x6a8] sm:$0xff]
        %v1633 = vld [vmem:[#allocation8 + $0x6b0] sm:$0xff]
        %v1634 = vld [vmem:[#allocation8 + $0x6b8] sm:$0xff]
        %v1635 = vld [vmem:[#allocation8 + $0x6c0] sm:$0xff]
        %v1636 = vld [vmem:[#allocation8 + $0x6c8] sm:$0xff]
        %v1637 = vld [vmem:[#allocation8 + $0x6d0] sm:$0xff]
        %v1638 = vld [vmem:[#allocation8 + $0x6d8] sm:$0xff]
        %v1639 = vld [vmem:[#allocation8 + $0x6e0] sm:$0xff]
        %v1640 = vld [vmem:[#allocation8 + $0x6e8] sm:$0xff]
        %v1641 = vld [vmem:[#allocation8 + $0x6f0] sm:$0xff]
        %v1642 = vld [vmem:[#allocation8 + $0x6f8] sm:$0xff]
        %v1643 = vld [vmem:[#allocation8 + $0x700] sm:$0xff]
        %v1644 = vld [vmem:[#allocation8 + $0x708] sm:$0xff]
        %v1645 = vld [vmem:[#allocation8 + $0x710] sm:$0xff]
        %v1646 = vld [vmem:[#allocation8 + $0x718] sm:$0xff]
        %v1647 = vld [vmem:[#allocation8 + $0x720] sm:$0xff]
        %v1648 = vld [vmem:[#allocation8 + $0x728] sm:$0xff]
        %v1649 = vld [vmem:[#allocation8 + $0x730] sm:$0xff]
        %v1650 = vld [vmem:[#allocation8 + $0x738] sm:$0xff]
        %v1651 = vld [vmem:[#allocation8 + $0x740] sm:$0xff]
        %v1652 = vld [vmem:[#allocation8 + $0x748] sm:$0xff]
        %v1653 = vld [vmem:[#allocation8 + $0x750] sm:$0xff]
        %v1654 = vld [vmem:[#allocation8 + $0x758] sm:$0xff]
        %v1655 = vld [vmem:[#allocation8 + $0x760] sm:$0xff]
        %v1656 = vld [vmem:[#allocation8 + $0x768] sm:$0xff]
        %v1657 = vld [vmem:[#allocation8 + $0x770] sm:$0xff]
        %v1658 = vld [vmem:[#allocation8 + $0x778] sm:$0xff]
        %v1659 = vld [vmem:[#allocation8 + $0x780] sm:$0xff]
        %v1660 = vld [vmem:[#allocation8 + $0x788] sm:$0xff]
        %v1661 = vld [vmem:[#allocation8 + $0x790] sm:$0xff]
        %v1662 = vld [vmem:[#allocation8 + $0x798] sm:$0xff]
        %v1663 = vld [vmem:[#allocation8 + $0x7a0] sm:$0xff]
        %v1664 = vld [vmem:[#allocation8 + $0x7a8] sm:$0xff]
        %v1665 = vld [vmem:[#allocation8 + $0x7b0] sm:$0xff]
        %v1666 = vld [vmem:[#allocation8 + $0x7b8] sm:$0xff]
        %v1667 = vld [vmem:[#allocation8 + $0x7c0] sm:$0xff]
        %v1668 = vld [vmem:[#allocation8 + $0x7c8] sm:$0xff]
        %v1669 = vld [vmem:[#allocation8 + $0x7d0] sm:$0xff]
        %v1670 = vld [vmem:[#allocation8 + $0x7d8] sm:$0xff]
        %v1671 = vld [vmem:[#allocation8 + $0x7e0] sm:$0xff]
        %v1672 = vld [vmem:[#allocation8 + $0x7e8] sm:$0xff]
        %v1673 = vld [vmem:[#allocation8 + $0x7f0] sm:$0xff]
        %v1674 = vld [vmem:[#allocation8 + $0x7f8] sm:$0xff]
        %v1675 = vld [vmem:[#allocation8 + $0x800] sm:$0xff]
        %v1676 = vld [vmem:[#allocation8 + $0x808] sm:$0xff]
        %v1677 = vld [vmem:[#allocation8 + $0x810] sm:$0xff]
        %v1678 = vld [vmem:[#allocation8 + $0x818] sm:$0xff]
        %v1679 = vld [vmem:[#allocation8 + $0x820] sm:$0xff]
        %v1680 = vld [vmem:[#allocation8 + $0x828] sm:$0xff]
        %v1681 = vld [vmem:[#allocation8 + $0x830] sm:$0xff]
        %v1682 = vld [vmem:[#allocation8 + $0x838] sm:$0xff]
        %v1683 = vld [vmem:[#allocation8 + $0x840] sm:$0xff]
        %v1684 = vld [vmem:[#allocation8 + $0x848] sm:$0xff]
        %v1685 = vld [vmem:[#allocation8 + $0x850] sm:$0xff]
        %v1686 = vld [vmem:[#allocation8 + $0x858] sm:$0xff]
        %v1687 = vld [vmem:[#allocation8 + $0x860] sm:$0xff]
        %v1688 = vld [vmem:[#allocation8 + $0x868] sm:$0xff]
        %v1689 = vld [vmem:[#allocation8 + $0x870] sm:$0xff]
        %v1690 = vld [vmem:[#allocation8 + $0x878] sm:$0xff]
        %v1691 = vld [vmem:[#allocation8 + $0x880] sm:$0xff]
        %v1692 = vld [vmem:[#allocation8 + $0x888] sm:$0xff]
        %v1693 = vld [vmem:[#allocation8 + $0x890] sm:$0xff]
        %v1694 = vld [vmem:[#allocation8 + $0x898] sm:$0xff]
        %v1695 = vld [vmem:[#allocation8 + $0x8a0] sm:$0xff]
        %v1696 = vld [vmem:[#allocation8 + $0x8a8] sm:$0xff]
        %v1697 = vld [vmem:[#allocation8 + $0x8b0] sm:$0xff]
        %v1698 = vld [vmem:[#allocation8 + $0x8b8] sm:$0xff]
        %v1699 = vld [vmem:[#allocation8 + $0x8c0] sm:$0xff]
        %v1700 = vld [vmem:[#allocation8 + $0x8c8] sm:$0xff]
        %v1701 = vld [vmem:[#allocation8 + $0x8d0] sm:$0xff]
        %v1702 = vld [vmem:[#allocation8 + $0x8d8] sm:$0xff]
        %v1703 = vld [vmem:[#allocation8 + $0x8e0] sm:$0xff]
        %v1704 = vld [vmem:[#allocation8 + $0x8e8] sm:$0xff]
        %v1705 = vld [vmem:[#allocation8 + $0x8f0] sm:$0xff]
        %v1706 = vld [vmem:[#allocation8 + $0x8f8] sm:$0xff]
        %v1707 = vld [vmem:[#allocation8 + $0x900] sm:$0xff]
        %v1708 = vld [vmem:[#allocation8 + $0x908] sm:$0xff]
        %v1709 = vld [vmem:[#allocation8 + $0x910] sm:$0xff]
        %v1710 = vld [vmem:[#allocation8 + $0x918] sm:$0xff]
        %v1711 = vld [vmem:[#allocation8 + $0x920] sm:$0xff]
        %v1712 = vld [vmem:[#allocation8 + $0x928] sm:$0xff]
        %v1713 = vld [vmem:[#allocation8 + $0x930] sm:$0xff]
        %v1714 = vld [vmem:[#allocation8 + $0x938] sm:$0xff]
        %v1715 = vld [vmem:[#allocation8 + $0x940] sm:$0xff]
        %v1716 = vld [vmem:[#allocation8 + $0x948] sm:$0xff]
        %v1717 = vld [vmem:[#allocation8 + $0x950] sm:$0xff]
        %v1718 = vld [vmem:[#allocation8 + $0x958] sm:$0xff]
        %v1719 = vld [vmem:[#allocation8 + $0x960] sm:$0xff]
        %v1720 = vld [vmem:[#allocation8 + $0x968] sm:$0xff]
        %v1721 = vld [vmem:[#allocation8 + $0x970] sm:$0xff]
        %v1722 = vld [vmem:[#allocation8 + $0x978] sm:$0xff]
        %v1723 = vld [vmem:[#allocation8 + $0x980] sm:$0xff]
        %v1724 = vld [vmem:[#allocation8 + $0x988] sm:$0xff]
        %v1725 = vld [vmem:[#allocation8 + $0x990] sm:$0xff]
        %v1726 = vld [vmem:[#allocation8 + $0x998] sm:$0xff]
        %v1727 = vld [vmem:[#allocation8 + $0x9a0] sm:$0xff]
        %v1728 = vld [vmem:[#allocation8 + $0x9a8] sm:$0xff]
        %v1729 = vld [vmem:[#allocation8 + $0x9b0] sm:$0xff]
        %v1730 = vld [vmem:[#allocation8 + $0x9b8] sm:$0xff]
        %v1731 = vld [vmem:[#allocation8 + $0x9c0] sm:$0xff]
        %v1732 = vld [vmem:[#allocation8 + $0x9c8] sm:$0xff]
        %v1733 = vld [vmem:[#allocation8 + $0x9d0] sm:$0xff]
        %v1734 = vld [vmem:[#allocation8 + $0x9d8] sm:$0xff]
        %v1735 = vld [vmem:[#allocation8 + $0x9e0] sm:$0xff]
        %v1736 = vld [vmem:[#allocation8 + $0x9e8] sm:$0xff]
        %v1737 = vld [vmem:[#allocation8 + $0x9f0] sm:$0xff]
        %v1738 = vld [vmem:[#allocation8 + $0x9f8] sm:$0xff]
        %v1739 = vld [vmem:[#allocation8 + $0xa00] sm:$0xff]
        %v1740 = vld [vmem:[#allocation8 + $0xa08] sm:$0xff]
        %v1741 = vld [vmem:[#allocation8 + $0xa10] sm:$0xff]
        %v1742 = vld [vmem:[#allocation8 + $0xa18] sm:$0xff]
        %v1743 = vld [vmem:[#allocation8 + $0xa20] sm:$0xff]
        %v1744 = vld [vmem:[#allocation8 + $0xa28] sm:$0xff]
        %v1745 = vld [vmem:[#allocation8 + $0xa30] sm:$0xff]
        %v1746 = vld [vmem:[#allocation8 + $0xa38] sm:$0xff]
        %v1747 = vld [vmem:[#allocation8 + $0xa40] sm:$0xff]
        %v1748 = vld [vmem:[#allocation8 + $0xa48] sm:$0xff]
        %v1749 = vld [vmem:[#allocation8 + $0xa50] sm:$0xff]
        %v1750 = vld [vmem:[#allocation8 + $0xa58] sm:$0xff]
        %v1751 = vld [vmem:[#allocation8 + $0xa60] sm:$0xff]
        %v1752 = vld [vmem:[#allocation8 + $0xa68] sm:$0xff]
        %v1753 = vld [vmem:[#allocation8 + $0xa70] sm:$0xff]
        %v1754 = vld [vmem:[#allocation8 + $0xa78] sm:$0xff]
        %v1755 = vld [vmem:[#allocation8 + $0xa80] sm:$0xff]
        %v1756 = vld [vmem:[#allocation8 + $0xa88] sm:$0xff]
        %v1757 = vld [vmem:[#allocation8 + $0xa90] sm:$0xff]
        %v1758 = vld [vmem:[#allocation8 + $0xa98] sm:$0xff]
        %v1759 = vld [vmem:[#allocation8 + $0xaa0] sm:$0xff]
        %v1760 = vld [vmem:[#allocation8 + $0xaa8] sm:$0xff]
        %v1761 = vld [vmem:[#allocation8 + $0xab0] sm:$0xff]
        %v1762 = vld [vmem:[#allocation8 + $0xab8] sm:$0xff]
        %v1763 = vld [vmem:[#allocation8 + $0xac0] sm:$0xff]
        %v1764 = vld [vmem:[#allocation8 + $0xac8] sm:$0xff]
        %v1765 = vld [vmem:[#allocation8 + $0xad0] sm:$0xff]
        %v1766 = vld [vmem:[#allocation8 + $0xad8] sm:$0xff]
        %v1767 = vld [vmem:[#allocation8 + $0xae0] sm:$0xff]
        %v1768 = vld [vmem:[#allocation8 + $0xae8] sm:$0xff]
        %v1769 = vld [vmem:[#allocation8 + $0xaf0] sm:$0xff]
        %v1770 = vld [vmem:[#allocation8 + $0xaf8] sm:$0xff]
        %v1771 = vld [vmem:[#allocation8 + $0xb00] sm:$0xff]
        %v1772 = vld [vmem:[#allocation8 + $0xb08] sm:$0xff]
        %v1773 = vld [vmem:[#allocation8 + $0xb10] sm:$0xff]
        %v1774 = vld [vmem:[#allocation8 + $0xb18] sm:$0xff]
        %v1775 = vld [vmem:[#allocation8 + $0xb20] sm:$0xff]
        %v1776 = vld [vmem:[#allocation8 + $0xb28] sm:$0xff]
        %v1777 = vld [vmem:[#allocation8 + $0xb30] sm:$0xff]
        %v1778 = vld [vmem:[#allocation8 + $0xb38] sm:$0xff]
        %v1779 = vld [vmem:[#allocation8 + $0xb40] sm:$0xff]
        %v1780 = vld [vmem:[#allocation8 + $0xb48] sm:$0xff]
        %v1781 = vld [vmem:[#allocation8 + $0xb50] sm:$0xff]
        %v1782 = vld [vmem:[#allocation8 + $0xb58] sm:$0xff]
        %v1783 = vld [vmem:[#allocation8 + $0xb60] sm:$0xff]
        %v1784 = vld [vmem:[#allocation8 + $0xb68] sm:$0xff]
        %v1785 = vld [vmem:[#allocation8 + $0xb70] sm:$0xff]
        %v1786 = vld [vmem:[#allocation8 + $0xb78] sm:$0xff]
        %v1787 = vld [vmem:[#allocation8 + $0xb80] sm:$0xff]
        %v1788 = vld [vmem:[#allocation8 + $0xb88] sm:$0xff]
        %v1789 = vld [vmem:[#allocation8 + $0xb90] sm:$0xff]
        %v1790 = vld [vmem:[#allocation8 + $0xb98] sm:$0xff]
        %v1791 = vld [vmem:[#allocation8 + $0xba0] sm:$0xff]
        %v1792 = vld [vmem:[#allocation8 + $0xba8] sm:$0xff]
        %v1793 = vld [vmem:[#allocation8 + $0xbb0] sm:$0xff]
        %v1794 = vld [vmem:[#allocation8 + $0xbb8] sm:$0xff]
        %v1795 = vld [vmem:[#allocation8 + $0xbc0] sm:$0xff]
        %v1796 = vld [vmem:[#allocation8 + $0xbc8] sm:$0xff]
        %v1797 = vld [vmem:[#allocation8 + $0xbd0] sm:$0xff]
        %v1798 = vld [vmem:[#allocation8 + $0xbd8] sm:$0xff]
        %v1799 = vld [vmem:[#allocation8 + $0xbe0] sm:$0xff]
        %v1800 = vld [vmem:[#allocation8 + $0xbe8] sm:$0xff]
        %v1801 = vld [vmem:[#allocation8 + $0xbf0] sm:$0xff]
        %v1802 = vld [vmem:[#allocation8 + $0xbf8] sm:$0xff]
        %v1803 = vld [vmem:[#allocation8 + $0xc00] sm:$0xff]
        %v1804 = vld [vmem:[#allocation8 + $0xc08] sm:$0xff]
        %v1805 = vld [vmem:[#allocation8 + $0xc10] sm:$0xff]
        %v1806 = vld [vmem:[#allocation8 + $0xc18] sm:$0xff]
        %v1807 = vld [vmem:[#allocation8 + $0xc20] sm:$0xff]
        %v1808 = vld [vmem:[#allocation8 + $0xc28] sm:$0xff]
        %v1809 = vld [vmem:[#allocation8 + $0xc30] sm:$0xff]
        %v1810 = vld [vmem:[#allocation8 + $0xc38] sm:$0xff]
        %v1811 = vld [vmem:[#allocation8 + $0xc40] sm:$0xff]
        %v1812 = vld [vmem:[#allocation8 + $0xc48] sm:$0xff]
        %v1813 = vld [vmem:[#allocation8 + $0xc50] sm:$0xff]
        %v1814 = vld [vmem:[#allocation8 + $0xc58] sm:$0xff]
        %v1815 = vld [vmem:[#allocation8 + $0xc60] sm:$0xff]
        %v1816 = vld [vmem:[#allocation8 + $0xc68] sm:$0xff]
        %v1817 = vld [vmem:[#allocation8 + $0xc70] sm:$0xff]
        %v1818 = vld [vmem:[#allocation8 + $0xc78] sm:$0xff]
        %1819 = vmatprep.subr.mxu0 %v1420
        %1820 = vmatpush1.msra.mxu0 %v1419
        %1821 = vmatprep.subr.mxu0 %v1425
        %1822 = vmatpush1.msra.mxu0 %v1424
        %1823 = vmatprep.subr.mxu0 %v1430
        %1824 = vmatpush1.msra.mxu0 %v1429
        %1825 = vmatprep.subr.mxu0 %v1435
        %1826 = vmatpush1.msra.mxu0 %v1434
        %1827 = vmatprep.subr.mxu0 %v1440
        %1828 = vmatpush1.msra.mxu0 %v1439
        %1829 = vmatprep.subr.mxu0 %v1445
        %1830 = vmatpush1.msra.mxu0 %v1444
        %1831 = vmatprep.subr.mxu0 %v1450
        %1832 = vmatpush1.msra.mxu0 %v1449
        %1833 = vmatprep.subr.mxu0 %v1455
        %1834 = vmatpush1.msra.mxu0 %v1454
        %1835 = vmatprep.subr.mxu0 %v1460
        %1836 = vmatpush1.msra.mxu0 %v1459
        %1837 = vmatprep.subr.mxu0 %v1465
        %1838 = vmatpush1.msra.mxu0 %v1464
        %1839 = vmatprep.subr.mxu0 %v1470
        %1840 = vmatpush1.msra.mxu0 %v1469
        %1841 = vmatprep.subr.mxu0 %v1475
        %1842 = vmatpush1.msra.mxu0 %v1474
        %1843 = vmatprep.subr.mxu0 %v1480
        %1844 = vmatpush1.msra.mxu0 %v1479
        %1845 = vmatprep.subr.mxu0 %v1485
        %1846 = vmatpush1.msra.mxu0 %v1484
        %1847 = vmatprep.subr.mxu0 %v1490
        %1848 = vmatpush1.msra.mxu0 %v1489
        %1849 = vmatprep.subr.mxu0 %v1495
        %1850 = vmatpush1.msra.mxu0 %v1494
        %1851 = vmatprep.subr.mxu0 %v1500
        %1852 = vmatpush1.msra.mxu0 %v1499
        %1853 = vmatprep.subr.mxu0 %v1505
        %1854 = vmatpush1.msra.mxu0 %v1504
        %1855 = vmatprep.subr.mxu0 %v1510
        %1856 = vmatpush1.msra.mxu0 %v1509
        %1857 = vmatprep.subr.mxu0 %v1515
        %1858 = vmatpush1.msra.mxu0 %v1514
        %1859 = vmatprep.subr.mxu0 %v1520
        %1860 = vmatpush1.msra.mxu0 %v1519
        %1861 = vmatprep.subr.mxu0 %v1525
        %1862 = vmatpush1.msra.mxu0 %v1524
        %1863 = vmatprep.subr.mxu0 %v1530
        %1864 = vmatpush1.msra.mxu0 %v1529
        %1865 = vmatprep.subr.mxu0 %v1535
        %1866 = vmatpush1.msra.mxu0 %v1534
        %1867 = vmatprep.subr.mxu0 %v1540
        %1868 = vmatpush1.msra.mxu0 %v1539
        %1869 = vmatprep.subr.mxu0 %v1545
        %1870 = vmatpush1.msra.mxu0 %v1544
        %1871 = vmatprep.subr.mxu0 %v1550
        %1872 = vmatpush1.msra.mxu0 %v1549
        %1873 = vmatprep.subr.mxu0 %v1555
        %1874 = vmatpush1.msra.mxu0 %v1554
        %1875 = vmatprep.subr.mxu0 %v1560
        %1876 = vmatpush1.msra.mxu0 %v1559
        %1877 = vmatprep.subr.mxu0 %v1565
        %1878 = vmatpush1.msra.mxu0 %v1564
        %1879 = vmatprep.subr.mxu0 %v1570
        %1880 = vmatpush1.msra.mxu0 %v1569
        %1881 = vmatprep.subr.mxu0 %v1575
        %1882 = vmatpush1.msra.mxu0 %v1574
        %1883 = vmatprep.mubr.f32.mxu0 %v1410
        %1884 = vmatmul.mubr.f32.gmra.mrb[0].mxu0 %v1409
        %v1885 = vpop.f32.mrb[0].mxu0
        %v1886 = vadd.f32 0.0, %v1885
        %v1887 = vpop.f32.mrb[0].mxu0
        %v1888 = vadd.f32 0.0, %v1887
        %1889 = vmatprep.mubr.f32.mxu0 %v1415
        %1890 = vmatmul.mubr.f32.gmra.mrb[0].mxu0 %v1414
        %v1891 = vpop.f32.mrb[0].mxu0
        %v1892 = vadd.f32 0.0, %v1891
        %v1893 = vpop.f32.mrb[0].mxu0
        %v1894 = vadd.f32 0.0, %v1893
        %1895 = vdwg.mxu0
        %1896 = vmatprep.subr.mxu0 %v1580
        %1897 = vmatpush1.msra.mxu0 %v1579
        %1898 = vmatprep.subr.mxu0 %v1585
        %1899 = vmatpush1.msra.mxu0 %v1584
        %1900 = vmatprep.subr.mxu0 %v1590
        %1901 = vmatpush1.msra.mxu0 %v1589
        %1902 = vmatprep.subr.mxu0 %v1595
        %1903 = vmatpush1.msra.mxu0 %v1594
        %1904 = vmatprep.subr.mxu0 %v1600
        %1905 = vmatpush1.msra.mxu0 %v1599
        %1906 = vmatprep.subr.mxu0 %v1605
        %1907 = vmatpush1.msra.mxu0 %v1604
        %1908 = vmatprep.subr.mxu0 %v1610
        %1909 = vmatpush1.msra.mxu0 %v1609
        %1910 = vmatprep.subr.mxu0 %v1615
        %1911 = vmatpush1.msra.mxu0 %v1614
        %1912 = vmatprep.subr.mxu0 %v1620
        %1913 = vmatpush1.msra.mxu0 %v1619
        %1914 = vmatprep.subr.mxu0 %v1625
        %1915 = vmatpush1.msra.mxu0 %v1624
        %1916 = vmatprep.subr.mxu0 %v1630
        %1917 = vmatpush1.msra.mxu0 %v1629
        %1918 = vmatprep.subr.mxu0 %v1635
        %1919 = vmatpush1.msra.mxu0 %v1634
        %1920 = vmatprep.subr.mxu0 %v1640
        %1921 = vmatpush1.msra.mxu0 %v1639
        %1922 = vmatprep.subr.mxu0 %v1645
        %1923 = vmatpush1.msra.mxu0 %v1644
        %1924 = vmatprep.subr.mxu0 %v1650
        %1925 = vmatpush1.msra.mxu0 %v1649
        %1926 = vmatprep.subr.mxu0 %v1655
        %1927 = vmatpush1.msra.mxu0 %v1654
        %1928 = vmatprep.subr.mxu0 %v1660
        %1929 = vmatpush1.msra.mxu0 %v1659
        %1930 = vmatprep.subr.mxu0 %v1665
        %1931 = vmatpush1.msra.mxu0 %v1664
        %1932 = vmatprep.subr.mxu0 %v1670
        %1933 = vmatpush1.msra.mxu0 %v1669
        %1934 = vmatprep.subr.mxu0 %v1675
        %1935 = vmatpush1.msra.mxu0 %v1674
        %1936 = vmatprep.subr.mxu0 %v1680
        %1937 = vmatpush1.msra.mxu0 %v1679
        %1938 = vmatprep.subr.mxu0 %v1685
        %1939 = vmatpush1.msra.mxu0 %v1684
        %1940 = vmatprep.subr.mxu0 %v1690
        %1941 = vmatpush1.msra.mxu0 %v1689
        %1942 = vmatprep.subr.mxu0 %v1695
        %1943 = vmatpush1.msra.mxu0 %v1694
        %1944 = vmatprep.subr.mxu0 %v1700
        %1945 = vmatpush1.msra.mxu0 %v1699
        %1946 = vmatprep.subr.mxu0 %v1705
        %1947 = vmatpush1.msra.mxu0 %v1704
        %1948 = vmatprep.subr.mxu0 %v1710
        %1949 = vmatpush1.msra.mxu0 %v1709
        %1950 = vmatprep.subr.mxu0 %v1715
        %1951 = vmatpush1.msra.mxu0 %v1714
        %1952 = vmatprep.subr.mxu0 %v1720
        %1953 = vmatpush1.msra.mxu0 %v1719
        %1954 = vmatprep.subr.mxu0 %v1725
        %1955 = vmatpush1.msra.mxu0 %v1724
        %1956 = vmatprep.subr.mxu0 %v1730
        %1957 = vmatpush1.msra.mxu0 %v1729
        %1958 = vmatprep.subr.mxu0 %v1735
        %1959 = vmatpush1.msra.mxu0 %v1734
        %1960 = vmatprep.mubr.f32.mxu0 %v1412
        %1961 = vmatmul.mubr.f32.gmra.mrb[0].mxu0 %v1411
        %v1962 = vpop.f32.mrb[0].mxu0
        %v1963 = vadd.f32 %v1886, %v1962
        %v1964 = vpop.f32.mrb[0].mxu0
        %v1965 = vadd.f32 %v1888, %v1964
        %1966 = vmatprep.mubr.f32.mxu0 %v1417
        %1967 = vmatmul.mubr.f32.gmra.mrb[0].mxu0 %v1416
        %v1968 = vpop.f32.mrb[0].mxu0
        %v1969 = vadd.f32 %v1892, %v1968
        %v1970 = vpop.f32.mrb[0].mxu0
        %v1971 = vadd.f32 %v1894, %v1970
        %1972 = vdwg.mxu0
        %1973 = vmatprep.subr.mxu0 %v1740
        %1974 = vmatpush1.msra.mxu0 %v1739
        %1975 = vmatprep.subr.mxu0 %v1745
        %1976 = vmatpush1.msra.mxu0 %v1744
        %1977 = vmatprep.subr.mxu0 %v1750
        %1978 = vmatpush1.msra.mxu0 %v1749
        %1979 = vmatprep.subr.mxu0 %v1755
        %1980 = vmatpush1.msra.mxu0 %v1754
        %1981 = vmatprep.subr.mxu0 %v1760
        %1982 = vmatpush1.msra.mxu0 %v1759
        %1983 = vmatprep.subr.mxu0 %v1765
        %1984 = vmatpush1.msra.mxu0 %v1764
        %1985 = vmatprep.subr.mxu0 %v1770
        %1986 = vmatpush1.msra.mxu0 %v1769
        %1987 = vmatprep.subr.mxu0 %v1775
        %1988 = vmatpush1.msra.mxu0 %v1774
        %1989 = vmatprep.subr.mxu0 %v1780
        %1990 = vmatpush1.msra.mxu0 %v1779
        %1991 = vmatprep.subr.mxu0 %v1785
        %1992 = vmatpush1.msra.mxu0 %v1784
        %1993 = vmatprep.subr.mxu0 %v1790
        %1994 = vmatpush1.msra.mxu0 %v1789
        %1995 = vmatprep.subr.mxu0 %v1795
        %1996 = vmatpush1.msra.mxu0 %v1794
        %1997 = vmatprep.subr.mxu0 %v1800
        %1998 = vmatpush1.msra.mxu0 %v1799
        %1999 = vmatprep.subr.mxu0 %v1805
        %2000 = vmatpush1.msra.mxu0 %v1804
        %2001 = vmatprep.subr.mxu0 %v1810
        %2002 = vmatpush1.msra.mxu0 %v1809
        %2003 = vmatprep.subr.mxu0 %v1815
        %2004 = vmatpush1.msra.mxu0 %v1814
        %2005 = vmatprep.subr.mxu0 0.0
        %2006 = vmatpush1.msra.mxu0 0.0
        %2007 = vmatprep.subr.mxu0 0.0
        %2008 = vmatpush1.msra.mxu0 0.0
        %2009 = vmatprep.subr.mxu0 0.0
        %2010 = vmatpush1.msra.mxu0 0.0
        %2011 = vmatprep.subr.mxu0 0.0
        %2012 = vmatpush1.msra.mxu0 0.0
        %2013 = vmatprep.subr.mxu0 0.0
        %2014 = vmatpush1.msra.mxu0 0.0
        %2015 = vmatprep.subr.mxu0 0.0
        %2016 = vmatpush1.msra.mxu0 0.0
        %2017 = vmatprep.subr.mxu0 0.0
        %2018 = vmatpush1.msra.mxu0 0.0
        %2019 = vmatprep.subr.mxu0 0.0
        %2020 = vmatpush1.msra.mxu0 0.0
        %2021 = vmatprep.subr.mxu0 0.0
        %2022 = vmatpush1.msra.mxu0 0.0
        %2023 = vmatprep.subr.mxu0 0.0
        %2024 = vmatpush1.msra.mxu0 0.0
        %2025 = vmatprep.subr.mxu0 0.0
        %2026 = vmatpush1.msra.mxu0 0.0
        %2027 = vmatprep.subr.mxu0 0.0
        %2028 = vmatpush1.msra.mxu0 0.0
        %2029 = vmatprep.subr.mxu0 0.0
        %2030 = vmatpush1.msra.mxu0 0.0
        %2031 = vmatprep.subr.mxu0 0.0
        %2032 = vmatpush1.msra.mxu0 0.0
        %2033 = vmatprep.subr.mxu0 0.0
        %2034 = vmatpush1.msra.mxu0 0.0
        %2035 = vmatprep.subr.mxu0 0.0
        %2036 = vmatpush1.msra.mxu0 0.0
        %2037 = vmatprep.mubr.f32.mxu0 0.0
        %2038 = vmatmul.mubr.f32.gmra.mrb[0].mxu0 %v1413
        %v2039 = vpop.f32.mrb[0].mxu0
        %v2040 = vadd.f32 %v1963, %v2039
        %v2041 = vpop.f32.mrb[0].mxu0
        %v2042 = vadd.f32 %v1965, %v2041
        %2043 = vmatprep.mubr.f32.mxu0 0.0
        %2044 = vmatmul.mubr.f32.gmra.mrb[0].mxu0 %v1418
        %v2045 = vpop.f32.mrb[0].mxu0
        %v2046 = vadd.f32 %v1969, %v2045
        %v2047 = vpop.f32.mrb[0].mxu0
        %v2048 = vadd.f32 %v1971, %v2047
        %2049 = vdwg.mxu0
        %2050 = vmatprep.subr.mxu0 %v1422
        %2051 = vmatpush1.msra.mxu0 %v1421
        %2052 = vmatprep.subr.mxu0 %v1427
        %2053 = vmatpush1.msra.mxu0 %v1426
        %2054 = vmatprep.subr.mxu0 %v1432
        %2055 = vmatpush1.msra.mxu0 %v1431
        %2056 = vmatprep.subr.mxu0 %v1437
        %2057 = vmatpush1.msra.mxu0 %v1436
        %2058 = vmatprep.subr.mxu0 %v1442
        %2059 = vmatpush1.msra.mxu0 %v1441
        %2060 = vmatprep.subr.mxu0 %v1447
        %2061 = vmatpush1.msra.mxu0 %v1446
        %2062 = vmatprep.subr.mxu0 %v1452
        %2063 = vmatpush1.msra.mxu0 %v1451
        %2064 = vmatprep.subr.mxu0 %v1457
        %2065 = vmatpush1.msra.mxu0 %v1456
        %2066 = vmatprep.subr.mxu0 %v1462
        %2067 = vmatpush1.msra.mxu0 %v1461
        %2068 = vmatprep.subr.mxu0 %v1467
        %2069 = vmatpush1.msra.mxu0 %v1466
        %2070 = vmatprep.subr.mxu0 %v1472
        %2071 = vmatpush1.msra.mxu0 %v1471
        %2072 = vmatprep.subr.mxu0 %v1477
        %2073 = vmatpush1.msra.mxu0 %v1476
        %2074 = vmatprep.subr.mxu0 %v1482
        %2075 = vmatpush1.msra.mxu0 %v1481
        %2076 = vmatprep.subr.mxu0 %v1487
        %2077 = vmatpush1.msra.mxu0 %v1486
        %2078 = vmatprep.subr.mxu0 %v1492
        %2079 = vmatpush1.msra.mxu0 %v1491
        %2080 = vmatprep.subr.mxu0 %v1497
        %2081 = vmatpush1.msra.mxu0 %v1496
        %2082 = vmatprep.subr.mxu0 %v1502
        %2083 = vmatpush1.msra.mxu0 %v1501
        %2084 = vmatprep.subr.mxu0 %v1507
        %2085 = vmatpush1.msra.mxu0 %v1506
        %2086 = vmatprep.subr.mxu0 %v1512
        %2087 = vmatpush1.msra.mxu0 %v1511
        %2088 = vmatprep.subr.mxu0 %v1517
        %2089 = vmatpush1.msra.mxu0 %v1516
        %2090 = vmatprep.subr.mxu0 %v1522
        %2091 = vmatpush1.msra.mxu0 %v1521
        %2092 = vmatprep.subr.mxu0 %v1527
        %2093 = vmatpush1.msra.mxu0 %v1526
        %2094 = vmatprep.subr.mxu0 %v1532
        %2095 = vmatpush1.msra.mxu0 %v1531
        %2096 = vmatprep.subr.mxu0 %v1537
        %2097 = vmatpush1.msra.mxu0 %v1536
        %2098 = vmatprep.subr.mxu0 %v1542
        %2099 = vmatpush1.msra.mxu0 %v1541
        %2100 = vmatprep.subr.mxu0 %v1547
        %2101 = vmatpush1.msra.mxu0 %v1546
        %2102 = vmatprep.subr.mxu0 %v1552
        %2103 = vmatpush1.msra.mxu0 %v1551
        %2104 = vmatprep.subr.mxu0 %v1557
        %2105 = vmatpush1.msra.mxu0 %v1556
        %2106 = vmatprep.subr.mxu0 %v1562
        %2107 = vmatpush1.msra.mxu0 %v1561
        %2108 = vmatprep.subr.mxu0 %v1567
        %2109 = vmatpush1.msra.mxu0 %v1566
        %2110 = vmatprep.subr.mxu0 %v1572
        %2111 = vmatpush1.msra.mxu0 %v1571
        %2112 = vmatprep.subr.mxu0 %v1577
        %2113 = vmatpush1.msra.mxu0 %v1576
        %2114 = vmatprep.mubr.f32.mxu0 %v1410
        %2115 = vmatmul.mubr.f32.gmra.mrb[0].mxu0 %v1409
        %v2116 = vpop.f32.mrb[0].mxu0
        %v2117 = vadd.f32 0.0, %v2116
        %v2118 = vpop.f32.mrb[0].mxu0
        %v2119 = vadd.f32 0.0, %v2118
        %2120 = vmatprep.mubr.f32.mxu0 %v1415
        %2121 = vmatmul.mubr.f32.gmra.mrb[0].mxu0 %v1414
        %v2122 = vpop.f32.mrb[0].mxu0
        %v2123 = vadd.f32 0.0, %v2122
        %v2124 = vpop.f32.mrb[0].mxu0
        %v2125 = vadd.f32 0.0, %v2124
        %2126 = vdwg.mxu0
        %2127 = vmatprep.subr.mxu0 %v1582
        %2128 = vmatpush1.msra.mxu0 %v1581
        %2129 = vmatprep.subr.mxu0 %v1587
        %2130 = vmatpush1.msra.mxu0 %v1586
        %2131 = vmatprep.subr.mxu0 %v1592
        %2132 = vmatpush1.msra.mxu0 %v1591
        %2133 = vmatprep.subr.mxu0 %v1597
        %2134 = vmatpush1.msra.mxu0 %v1596
        %2135 = vmatprep.subr.mxu0 %v1602
        %2136 = vmatpush1.msra.mxu0 %v1601
        %2137 = vmatprep.subr.mxu0 %v1607
        %2138 = vmatpush1.msra.mxu0 %v1606
        %2139 = vmatprep.subr.mxu0 %v1612
        %2140 = vmatpush1.msra.mxu0 %v1611
        %2141 = vmatprep.subr.mxu0 %v1617
        %2142 = vmatpush1.msra.mxu0 %v1616
        %2143 = vmatprep.subr.mxu0 %v1622
        %2144 = vmatpush1.msra.mxu0 %v1621
        %2145 = vmatprep.subr.mxu0 %v1627
        %2146 = vmatpush1.msra.mxu0 %v1626
        %2147 = vmatprep.subr.mxu0 %v1632
        %2148 = vmatpush1.msra.mxu0 %v1631
        %2149 = vmatprep.subr.mxu0 %v1637
        %2150 = vmatpush1.msra.mxu0 %v1636
        %2151 = vmatprep.subr.mxu0 %v1642
        %2152 = vmatpush1.msra.mxu0 %v1641
        %2153 = vmatprep.subr.mxu0 %v1647
        %2154 = vmatpush1.msra.mxu0 %v1646
        %2155 = vmatprep.subr.mxu0 %v1652
        %2156 = vmatpush1.msra.mxu0 %v1651
        %2157 = vmatprep.subr.mxu0 %v1657
        %2158 = vmatpush1.msra.mxu0 %v1656
        %2159 = vmatprep.subr.mxu0 %v1662
        %2160 = vmatpush1.msra.mxu0 %v1661
        %2161 = vmatprep.subr.mxu0 %v1667
        %2162 = vmatpush1.msra.mxu0 %v1666
        %2163 = vmatprep.subr.mxu0 %v1672
        %2164 = vmatpush1.msra.mxu0 %v1671
        %2165 = vmatprep.subr.mxu0 %v1677
        %2166 = vmatpush1.msra.mxu0 %v1676
        %2167 = vmatprep.subr.mxu0 %v1682
        %2168 = vmatpush1.msra.mxu0 %v1681
        %2169 = vmatprep.subr.mxu0 %v1687
        %2170 = vmatpush1.msra.mxu0 %v1686
        %2171 = vmatprep.subr.mxu0 %v1692
        %2172 = vmatpush1.msra.mxu0 %v1691
        %2173 = vmatprep.subr.mxu0 %v1697
        %2174 = vmatpush1.msra.mxu0 %v1696
        %2175 = vmatprep.subr.mxu0 %v1702
        %2176 = vmatpush1.msra.mxu0 %v1701
        %2177 = vmatprep.subr.mxu0 %v1707
        %2178 = vmatpush1.msra.mxu0 %v1706
        %2179 = vmatprep.subr.mxu0 %v1712
        %2180 = vmatpush1.msra.mxu0 %v1711
        %2181 = vmatprep.subr.mxu0 %v1717
        %2182 = vmatpush1.msra.mxu0 %v1716
        %2183 = vmatprep.subr.mxu0 %v1722
        %2184 = vmatpush1.msra.mxu0 %v1721
        %2185 = vmatprep.subr.mxu0 %v1727
        %2186 = vmatpush1.msra.mxu0 %v1726
        %2187 = vmatprep.subr.mxu0 %v1732
        %2188 = vmatpush1.msra.mxu0 %v1731
        %2189 = vmatprep.subr.mxu0 %v1737
        %2190 = vmatpush1.msra.mxu0 %v1736
        %2191 = vmatprep.mubr.f32.mxu0 %v1412
        %2192 = vmatmul.mubr.f32.gmra.mrb[0].mxu0 %v1411
        %v2193 = vpop.f32.mrb[0].mxu0
        %v2194 = vadd.f32 %v2117, %v2193
        %v2195 = vpop.f32.mrb[0].mxu0
        %v2196 = vadd.f32 %v2119, %v2195
        %2197 = vmatprep.mubr.f32.mxu0 %v1417
        %2198 = vmatmul.mubr.f32.gmra.mrb[0].mxu0 %v1416
        %v2199 = vpop.f32.mrb[0].mxu0
        %v2200 = vadd.f32 %v2123, %v2199
        %v2201 = vpop.f32.mrb[0].mxu0
        %v2202 = vadd.f32 %v2125, %v2201
        %2203 = vdwg.mxu0
        %2204 = vmatprep.subr.mxu0 %v1742
        %2205 = vmatpush1.msra.mxu0 %v1741
        %2206 = vmatprep.subr.mxu0 %v1747
        %2207 = vmatpush1.msra.mxu0 %v1746
        %2208 = vmatprep.subr.mxu0 %v1752
        %2209 = vmatpush1.msra.mxu0 %v1751
        %2210 = vmatprep.subr.mxu0 %v1757
        %2211 = vmatpush1.msra.mxu0 %v1756
        %2212 = vmatprep.subr.mxu0 %v1762
        %2213 = vmatpush1.msra.mxu0 %v1761
        %2214 = vmatprep.subr.mxu0 %v1767
        %2215 = vmatpush1.msra.mxu0 %v1766
        %2216 = vmatprep.subr.mxu0 %v1772
        %2217 = vmatpush1.msra.mxu0 %v1771
        %2218 = vmatprep.subr.mxu0 %v1777
        %2219 = vmatpush1.msra.mxu0 %v1776
        %2220 = vmatprep.subr.mxu0 %v1782
        %2221 = vmatpush1.msra.mxu0 %v1781
        %2222 = vmatprep.subr.mxu0 %v1787
        %2223 = vmatpush1.msra.mxu0 %v1786
        %2224 = vmatprep.subr.mxu0 %v1792
        %2225 = vmatpush1.msra.mxu0 %v1791
        %2226 = vmatprep.subr.mxu0 %v1797
        %2227 = vmatpush1.msra.mxu0 %v1796
        %2228 = vmatprep.subr.mxu0 %v1802
        %2229 = vmatpush1.msra.mxu0 %v1801
        %2230 = vmatprep.subr.mxu0 %v1807
        %2231 = vmatpush1.msra.mxu0 %v1806
        %2232 = vmatprep.subr.mxu0 %v1812
        %2233 = vmatpush1.msra.mxu0 %v1811
        %2234 = vmatprep.subr.mxu0 %v1817
        %2235 = vmatpush1.msra.mxu0 %v1816
        %2236 = vmatprep.subr.mxu0 0.0
        %2237 = vmatpush1.msra.mxu0 0.0
        %2238 = vmatprep.subr.mxu0 0.0
        %2239 = vmatpush1.msra.mxu0 0.0
        %2240 = vmatprep.subr.mxu0 0.0
        %2241 = vmatpush1.msra.mxu0 0.0
        %2242 = vmatprep.subr.mxu0 0.0
        %2243 = vmatpush1.msra.mxu0 0.0
        %2244 = vmatprep.subr.mxu0 0.0
        %2245 = vmatpush1.msra.mxu0 0.0
        %2246 = vmatprep.subr.mxu0 0.0
        %2247 = vmatpush1.msra.mxu0 0.0
        %2248 = vmatprep.subr.mxu0 0.0
        %2249 = vmatpush1.msra.mxu0 0.0
        %2250 = vmatprep.subr.mxu0 0.0
        %2251 = vmatpush1.msra.mxu0 0.0
        %2252 = vmatprep.subr.mxu0 0.0
        %2253 = vmatpush1.msra.mxu0 0.0
        %2254 = vmatprep.subr.mxu0 0.0
        %2255 = vmatpush1.msra.mxu0 0.0
        %2256 = vmatprep.subr.mxu0 0.0
        %2257 = vmatpush1.msra.mxu0 0.0
        %2258 = vmatprep.subr.mxu0 0.0
        %2259 = vmatpush1.msra.mxu0 0.0
        %2260 = vmatprep.subr.mxu0 0.0
        %2261 = vmatpush1.msra.mxu0 0.0
        %2262 = vmatprep.subr.mxu0 0.0
        %2263 = vmatpush1.msra.mxu0 0.0
        %2264 = vmatprep.subr.mxu0 0.0
        %2265 = vmatpush1.msra.mxu0 0.0
        %2266 = vmatprep.subr.mxu0 0.0
        %2267 = vmatpush1.msra.mxu0 0.0
        %2268 = vmatprep.mubr.f32.mxu0 0.0
        %2269 = vmatmul.mubr.f32.gmra.mrb[0].mxu0 %v1413
        %v2270 = vpop.f32.mrb[0].mxu0
        %v2271 = vadd.f32 %v2194, %v2270
        %v2272 = vpop.f32.mrb[0].mxu0
        %v2273 = vadd.f32 %v2196, %v2272
        %2274 = vmatprep.mubr.f32.mxu0 0.0
        %2275 = vmatmul.mubr.f32.gmra.mrb[0].mxu0 %v1418
        %v2276 = vpop.f32.mrb[0].mxu0
        %v2277 = vadd.f32 %v2200, %v2276
        %v2278 = vpop.f32.mrb[0].mxu0
        %v2279 = vadd.f32 %v2202, %v2278
        %2280 = vdwg.mxu0
        %2281 = vmatprep.subr.mxu0 0.0
        %2282 = vmatpush1.msra.mxu0 %v1423
        %2283 = vmatprep.subr.mxu0 0.0
        %2284 = vmatpush1.msra.mxu0 %v1428
        %2285 = vmatprep.subr.mxu0 0.0
        %2286 = vmatpush1.msra.mxu0 %v1433
        %2287 = vmatprep.subr.mxu0 0.0
        %2288 = vmatpush1.msra.mxu0 %v1438
        %2289 = vmatprep.subr.mxu0 0.0
        %2290 = vmatpush1.msra.mxu0 %v1443
        %2291 = vmatprep.subr.mxu0 0.0
        %2292 = vmatpush1.msra.mxu0 %v1448
        %2293 = vmatprep.subr.mxu0 0.0
        %2294 = vmatpush1.msra.mxu0 %v1453
        %2295 = vmatprep.subr.mxu0 0.0
        %2296 = vmatpush1.msra.mxu0 %v1458
        %2297 = vmatprep.subr.mxu0 0.0
        %2298 = vmatpush1.msra.mxu0 %v1463
        %2299 = vmatprep.subr.mxu0 0.0
        %2300 = vmatpush1.msra.mxu0 %v1468
        %2301 = vmatprep.subr.mxu0 0.0
        %2302 = vmatpush1.msra.mxu0 %v1473
        %2303 = vmatprep.subr.mxu0 0.0
        %2304 = vmatpush1.msra.mxu0 %v1478
        %2305 = vmatprep.subr.mxu0 0.0
        %2306 = vmatpush1.msra.mxu0 %v1483
        %2307 = vmatprep.subr.mxu0 0.0
        %2308 = vmatpush1.msra.mxu0 %v1488
        %2309 = vmatprep.subr.mxu0 0.0
        %2310 = vmatpush1.msra.mxu0 %v1493
        %2311 = vmatprep.subr.mxu0 0.0
        %2312 = vmatpush1.msra.mxu0 %v1498
        %2313 = vmatprep.subr.mxu0 0.0
        %2314 = vmatpush1.msra.mxu0 %v1503
        %2315 = vmatprep.subr.mxu0 0.0
        %2316 = vmatpush1.msra.mxu0 %v1508
        %2317 = vmatprep.subr.mxu0 0.0
        %2318 = vmatpush1.msra.mxu0 %v1513
        %2319 = vmatprep.subr.mxu0 0.0
        %2320 = vmatpush1.msra.mxu0 %v1518
        %2321 = vmatprep.subr.mxu0 0.0
        %2322 = vmatpush1.msra.mxu0 %v1523
        %2323 = vmatprep.subr.mxu0 0.0
        %2324 = vmatpush1.msra.mxu0 %v1528
        %2325 = vmatprep.subr.mxu0 0.0
        %2326 = vmatpush1.msra.mxu0 %v1533
        %2327 = vmatprep.subr.mxu0 0.0
        %2328 = vmatpush1.msra.mxu0 %v1538
        %2329 = vmatprep.subr.mxu0 0.0
        %2330 = vmatpush1.msra.mxu0 %v1543
        %2331 = vmatprep.subr.mxu0 0.0
        %2332 = vmatpush1.msra.mxu0 %v1548
        %2333 = vmatprep.subr.mxu0 0.0
        %2334 = vmatpush1.msra.mxu0 %v1553
        %2335 = vmatprep.subr.mxu0 0.0
        %2336 = vmatpush1.msra.mxu0 %v1558
        %2337 = vmatprep.subr.mxu0 0.0
        %2338 = vmatpush1.msra.mxu0 %v1563
        %2339 = vmatprep.subr.mxu0 0.0
        %2340 = vmatpush1.msra.mxu0 %v1568
        %2341 = vmatprep.subr.mxu0 0.0
        %2342 = vmatpush1.msra.mxu0 %v1573
        %2343 = vmatprep.subr.mxu0 0.0
        %2344 = vmatpush1.msra.mxu0 %v1578
        %2345 = vmatprep.mubr.f32.mxu0 %v1410
        %2346 = vmatmul.mubr.f32.gmra.mrb[0].mxu0 %v1409
        %v2347 = vpop.f32.mrb[0].mxu0
        %v2348 = vadd.f32 0.0, %v2347
        %v2349 = vpop.f32.mrb[0].mxu0
        %2350 = vmatprep.mubr.f32.mxu0 %v1415
        %2351 = vmatmul.mubr.f32.gmra.mrb[0].mxu0 %v1414
        %v2352 = vpop.f32.mrb[0].mxu0
        %v2353 = vadd.f32 0.0, %v2352
        %v2354 = vpop.f32.mrb[0].mxu0
        %2355 = vdwg.mxu0
        %2356 = vmatprep.subr.mxu0 0.0
        %2357 = vmatpush1.msra.mxu0 %v1583
        %2358 = vmatprep.subr.mxu0 0.0
        %2359 = vmatpush1.msra.mxu0 %v1588
        %2360 = vmatprep.subr.mxu0 0.0
        %2361 = vmatpush1.msra.mxu0 %v1593
        %2362 = vmatprep.subr.mxu0 0.0
        %2363 = vmatpush1.msra.mxu0 %v1598
        %2364 = vmatprep.subr.mxu0 0.0
        %2365 = vmatpush1.msra.mxu0 %v1603
        %2366 = vmatprep.subr.mxu0 0.0
        %2367 = vmatpush1.msra.mxu0 %v1608
        %2368 = vmatprep.subr.mxu0 0.0
        %2369 = vmatpush1.msra.mxu0 %v1613
        %2370 = vmatprep.subr.mxu0 0.0
        %2371 = vmatpush1.msra.mxu0 %v1618
        %2372 = vmatprep.subr.mxu0 0.0
        %2373 = vmatpush1.msra.mxu0 %v1623
        %2374 = vmatprep.subr.mxu0 0.0
        %2375 = vmatpush1.msra.mxu0 %v1628
        %2376 = vmatprep.subr.mxu0 0.0
        %2377 = vmatpush1.msra.mxu0 %v1633
        %2378 = vmatprep.subr.mxu0 0.0
        %2379 = vmatpush1.msra.mxu0 %v1638
        %2380 = vmatprep.subr.mxu0 0.0
        %2381 = vmatpush1.msra.mxu0 %v1643
        %2382 = vmatprep.subr.mxu0 0.0
        %2383 = vmatpush1.msra.mxu0 %v1648
        %2384 = vmatprep.subr.mxu0 0.0
        %2385 = vmatpush1.msra.mxu0 %v1653
        %2386 = vmatprep.subr.mxu0 0.0
        %2387 = vmatpush1.msra.mxu0 %v1658
        %2388 = vmatprep.subr.mxu0 0.0
        %2389 = vmatpush1.msra.mxu0 %v1663
        %2390 = vmatprep.subr.mxu0 0.0
        %2391 = vmatpush1.msra.mxu0 %v1668
        %2392 = vmatprep.subr.mxu0 0.0
        %2393 = vmatpush1.msra.mxu0 %v1673
        %2394 = vmatprep.subr.mxu0 0.0
        %2395 = vmatpush1.msra.mxu0 %v1678
        %2396 = vmatprep.subr.mxu0 0.0
        %2397 = vmatpush1.msra.mxu0 %v1683
        %2398 = vmatprep.subr.mxu0 0.0
        %2399 = vmatpush1.msra.mxu0 %v1688
        %2400 = vmatprep.subr.mxu0 0.0
        %2401 = vmatpush1.msra.mxu0 %v1693
        %2402 = vmatprep.subr.mxu0 0.0
        %2403 = vmatpush1.msra.mxu0 %v1698
        %2404 = vmatprep.subr.mxu0 0.0
        %2405 = vmatpush1.msra.mxu0 %v1703
        %2406 = vmatprep.subr.mxu0 0.0
        %2407 = vmatpush1.msra.mxu0 %v1708
        %2408 = vmatprep.subr.mxu0 0.0
        %2409 = vmatpush1.msra.mxu0 %v1713
        %2410 = vmatprep.subr.mxu0 0.0
        %2411 = vmatpush1.msra.mxu0 %v1718
        %2412 = vmatprep.subr.mxu0 0.0
        %2413 = vmatpush1.msra.mxu0 %v1723
        %2414 = vmatprep.subr.mxu0 0.0
        %2415 = vmatpush1.msra.mxu0 %v1728
        %2416 = vmatprep.subr.mxu0 0.0
        %2417 = vmatpush1.msra.mxu0 %v1733
        %2418 = vmatprep.subr.mxu0 0.0
        %2419 = vmatpush1.msra.mxu0 %v1738
        %2420 = vmatprep.mubr.f32.mxu0 %v1412
        %2421 = vmatmul.mubr.f32.gmra.mrb[0].mxu0 %v1411
        %v2422 = vpop.f32.mrb[0].mxu0
        %v2423 = vadd.f32 %v2348, %v2422
        %v2424 = vpop.f32.mrb[0].mxu0
        %2425 = vmatprep.mubr.f32.mxu0 %v1417
        %2426 = vmatmul.mubr.f32.gmra.mrb[0].mxu0 %v1416
        %v2427 = vpop.f32.mrb[0].mxu0
        %v2428 = vadd.f32 %v2353, %v2427
        %v2429 = vpop.f32.mrb[0].mxu0
        %2430 = vdwg.mxu0
        %2431 = vmatprep.subr.mxu0 0.0
        %2432 = vmatpush1.msra.mxu0 %v1743
        %2433 = vmatprep.subr.mxu0 0.0
        %2434 = vmatpush1.msra.mxu0 %v1748
        %2435 = vmatprep.subr.mxu0 0.0
        %2436 = vmatpush1.msra.mxu0 %v1753
        %2437 = vmatprep.subr.mxu0 0.0
        %2438 = vmatpush1.msra.mxu0 %v1758
        %2439 = vmatprep.subr.mxu0 0.0
        %2440 = vmatpush1.msra.mxu0 %v1763
        %2441 = vmatprep.subr.mxu0 0.0
        %2442 = vmatpush1.msra.mxu0 %v1768
        %2443 = vmatprep.subr.mxu0 0.0
        %2444 = vmatpush1.msra.mxu0 %v1773
        %2445 = vmatprep.subr.mxu0 0.0
        %2446 = vmatpush1.msra.mxu0 %v1778
        %2447 = vmatprep.subr.mxu0 0.0
        %2448 = vmatpush1.msra.mxu0 %v1783
        %2449 = vmatprep.subr.mxu0 0.0
        %2450 = vmatpush1.msra.mxu0 %v1788
        %2451 = vmatprep.subr.mxu0 0.0
        %2452 = vmatpush1.msra.mxu0 %v1793
        %2453 = vmatprep.subr.mxu0 0.0
        %2454 = vmatpush1.msra.mxu0 %v1798
        %2455 = vmatprep.subr.mxu0 0.0
        %2456 = vmatpush1.msra.mxu0 %v1803
        %2457 = vmatprep.subr.mxu0 0.0
        %2458 = vmatpush1.msra.mxu0 %v1808
        %2459 = vmatprep.subr.mxu0 0.0
        %2460 = vmatpush1.msra.mxu0 %v1813
        %2461 = vmatprep.subr.mxu0 0.0
        %2462 = vmatpush1.msra.mxu0 %v1818
        %2463 = vmatprep.subr.mxu0 0.0
        %2464 = vmatpush1.msra.mxu0 0.0
        %2465 = vmatprep.subr.mxu0 0.0
        %2466 = vmatpush1.msra.mxu0 0.0
        %2467 = vmatprep.subr.mxu0 0.0
        %2468 = vmatpush1.msra.mxu0 0.0
        %2469 = vmatprep.subr.mxu0 0.0
        %2470 = vmatpush1.msra.mxu0 0.0
        %2471 = vmatprep.subr.mxu0 0.0
        %2472 = vmatpush1.msra.mxu0 0.0
        %2473 = vmatprep.subr.mxu0 0.0
        %2474 = vmatpush1.msra.mxu0 0.0
        %2475 = vmatprep.subr.mxu0 0.0
        %2476 = vmatpush1.msra.mxu0 0.0
        %2477 = vmatprep.subr.mxu0 0.0
        %2478 = vmatpush1.msra.mxu0 0.0
        %2479 = vmatprep.subr.mxu0 0.0
        %2480 = vmatpush1.msra.mxu0 0.0
        %2481 = vmatprep.subr.mxu0 0.0
        %2482 = vmatpush1.msra.mxu0 0.0
        %2483 = vmatprep.subr.mxu0 0.0
        %2484 = vmatpush1.msra.mxu0 0.0
        %2485 = vmatprep.subr.mxu0 0.0
        %2486 = vmatpush1.msra.mxu0 0.0
        %2487 = vmatprep.subr.mxu0 0.0
        %2488 = vmatpush1.msra.mxu0 0.0
        %2489 = vmatprep.subr.mxu0 0.0
        %2490 = vmatpush1.msra.mxu0 0.0
        %2491 = vmatprep.subr.mxu0 0.0
        %2492 = vmatpush1.msra.mxu0 0.0
        %2493 = vmatprep.subr.mxu0 0.0
        %2494 = vmatpush1.msra.mxu0 0.0
        %2495 = vmatprep.mubr.f32.mxu0 0.0
        %2496 = vmatmul.mubr.f32.gmra.mrb[0].mxu0 %v1413
        %v2497 = vpop.f32.mrb[0].mxu0
        %v2498 = vadd.f32 %v2423, %v2497
        %v2499 = vpop.f32.mrb[0].mxu0
        %2500 = vmatprep.mubr.f32.mxu0 0.0
        %2501 = vmatmul.mubr.f32.gmra.mrb[0].mxu0 %v1418
        %v2502 = vpop.f32.mrb[0].mxu0
        %v2503 = vadd.f32 %v2428, %v2502
        %v2504 = vpop.f32.mrb[0].mxu0
        %2505 = vdwg.mxu0
        %v2506 = vld [vmem:[#allocation10] sm:$0xff]
        %v2507 = vld [vmem:[#allocation10 + $0x8] sm:$0xff]
        %v2508 = vld [vmem:[#allocation10 + $0x10] sm:$0xff]
        %v2509 = vld [vmem:[#allocation10 + $0x18] sm:$0xff]
        %v2510 = vld [vmem:[#allocation10 + $0x20] sm:$0xff]
        %v2511 = vld [vmem:[#allocation10 + $0x28] sm:$0xff]
        %v2512 = vld [vmem:[#allocation10 + $0x30] sm:$0xff]
        %v2513 = vld [vmem:[#allocation10 + $0x38] sm:$0xff]
        %v2514 = vld [vmem:[#allocation10 + $0x40] sm:$0xff]
        %v2515 = vld [vmem:[#allocation10 + $0x48] sm:$0xff]
        %v2516 = vld [vmem:[#allocation10 + $0x50] sm:$0xff]
        %v2517 = vld [vmem:[#allocation10 + $0x58] sm:$0xff]
        %v2518 = vld [vmem:[#allocation10 + $0x60] sm:$0xff]
        %v2519 = vld [vmem:[#allocation10 + $0x68] sm:$0xff]
        %v2520 = vld [vmem:[#allocation10 + $0x70] sm:$0xff]
        %v2521 = vld [vmem:[#allocation10 + $0x78] sm:$0xff]
        %v2522 = vld [vmem:[#allocation10 + $0x80] sm:$0xff]
        %v2523 = vld [vmem:[#allocation10 + $0x88] sm:$0xff]
        %v2524 = vld [vmem:[#allocation10 + $0x90] sm:$0xff]
        %v2525 = vld [vmem:[#allocation10 + $0x98] sm:$0xff]
        %v2526 = vld [vmem:[#allocation10 + $0xa0] sm:$0xff]
        %v2527 = vld [vmem:[#allocation10 + $0xa8] sm:$0xff]
        %v2528 = vld [vmem:[#allocation10 + $0xb0] sm:$0xff]
        %v2529 = vld [vmem:[#allocation10 + $0xb8] sm:$0xff]
        %v2530 = vld [vmem:[#allocation10 + $0xc0] sm:$0xff]
        %v2531 = vld [vmem:[#allocation10 + $0xc8] sm:$0xff]
        %v2532 = vld [vmem:[#allocation10 + $0xd0] sm:$0xff]
        %v2533 = vld [vmem:[#allocation10 + $0xd8] sm:$0xff]
        %v2534 = vld [vmem:[#allocation10 + $0xe0] sm:$0xff]
        %v2535 = vld [vmem:[#allocation10 + $0xe8] sm:$0xff]
        %v2536 = vld [vmem:[#allocation10 + $0xf0] sm:$0xff]
        %v2537 = vld [vmem:[#allocation10 + $0xf8] sm:$0xff]
        %v2538 = vld [vmem:[#allocation10 + $0x100] sm:$0xff]
        %v2539 = vld [vmem:[#allocation10 + $0x108] sm:$0xff]
        %v2540 = vld [vmem:[#allocation10 + $0x110] sm:$0xff]
        %v2541 = vld [vmem:[#allocation10 + $0x118] sm:$0xff]
        %v2542 = vld [vmem:[#allocation10 + $0x120] sm:$0xff]
        %v2543 = vld [vmem:[#allocation10 + $0x128] sm:$0xff]
        %v2544 = vld [vmem:[#allocation10 + $0x130] sm:$0xff]
        %v2545 = vld [vmem:[#allocation10 + $0x138] sm:$0xff]
        %v2546 = vld [vmem:[#allocation10 + $0x140] sm:$0xff]
        %v2547 = vld [vmem:[#allocation10 + $0x148] sm:$0xff]
        %v2548 = vld [vmem:[#allocation10 + $0x150] sm:$0xff]
        %v2549 = vld [vmem:[#allocation10 + $0x158] sm:$0xff]
        %v2550 = vld [vmem:[#allocation10 + $0x160] sm:$0xff]
        %v2551 = vld [vmem:[#allocation10 + $0x168] sm:$0xff]
        %v2552 = vld [vmem:[#allocation10 + $0x170] sm:$0xff]
        %v2553 = vld [vmem:[#allocation10 + $0x178] sm:$0xff]
        %v2554 = vld [vmem:[#allocation10 + $0x180] sm:$0xff]
        %v2555 = vld [vmem:[#allocation10 + $0x188] sm:$0xff]
        %v2556 = vld [vmem:[#allocation10 + $0x190] sm:$0xff]
        %v2557 = vld [vmem:[#allocation10 + $0x198] sm:$0xff]
        %v2558 = vld [vmem:[#allocation10 + $0x1a0] sm:$0xff]
        %v2559 = vld [vmem:[#allocation10 + $0x1a8] sm:$0xff]
        %v2560 = vld [vmem:[#allocation10 + $0x1b0] sm:$0xff]
        %v2561 = vld [vmem:[#allocation10 + $0x1b8] sm:$0xff]
        %v2562 = vld [vmem:[#allocation10 + $0x1c0] sm:$0xff]
        %v2563 = vld [vmem:[#allocation10 + $0x1c8] sm:$0xff]
        %v2564 = vld [vmem:[#allocation10 + $0x1d0] sm:$0xff]
        %v2565 = vld [vmem:[#allocation10 + $0x1d8] sm:$0xff]
        %v2566 = vld [vmem:[#allocation10 + $0x1e0] sm:$0xff]
        %v2567 = vld [vmem:[#allocation10 + $0x1e8] sm:$0xff]
        %v2568 = vld [vmem:[#allocation10 + $0x1f0] sm:$0xff]
        %v2569 = vld [vmem:[#allocation10 + $0x1f8] sm:$0xff]
        %v2570 = vld [vmem:[#allocation10 + $0x200] sm:$0xff]
        %v2571 = vld [vmem:[#allocation10 + $0x208] sm:$0xff]
        %v2572 = vld [vmem:[#allocation10 + $0x210] sm:$0xff]
        %v2573 = vld [vmem:[#allocation10 + $0x218] sm:$0xff]
        %v2574 = vld [vmem:[#allocation10 + $0x220] sm:$0xff]
        %v2575 = vld [vmem:[#allocation10 + $0x228] sm:$0xff]
        %v2576 = vld [vmem:[#allocation10 + $0x230] sm:$0xff]
        %v2577 = vld [vmem:[#allocation10 + $0x238] sm:$0xff]
        %v2578 = vld [vmem:[#allocation10 + $0x240] sm:$0xff]
        %v2579 = vld [vmem:[#allocation10 + $0x248] sm:$0xff]
        %v2580 = vld [vmem:[#allocation10 + $0x250] sm:$0xff]
        %v2581 = vld [vmem:[#allocation10 + $0x258] sm:$0xff]
        %v2582 = vld [vmem:[#allocation10 + $0x260] sm:$0xff]
        %v2583 = vld [vmem:[#allocation10 + $0x268] sm:$0xff]
        %v2584 = vld [vmem:[#allocation10 + $0x270] sm:$0xff]
        %v2585 = vld [vmem:[#allocation10 + $0x278] sm:$0xff]
        %v2586 = vld [vmem:[#allocation10 + $0x280] sm:$0xff]
        %v2587 = vld [vmem:[#allocation10 + $0x288] sm:$0xff]
        %v2588 = vld [vmem:[#allocation10 + $0x290] sm:$0xff]
        %v2589 = vld [vmem:[#allocation10 + $0x298] sm:$0xff]
        %v2590 = vld [vmem:[#allocation10 + $0x2a0] sm:$0xff]
        %v2591 = vld [vmem:[#allocation10 + $0x2a8] sm:$0xff]
        %v2592 = vld [vmem:[#allocation10 + $0x2b0] sm:$0xff]
        %v2593 = vld [vmem:[#allocation10 + $0x2b8] sm:$0xff]
        %v2594 = vld [vmem:[#allocation10 + $0x2c0] sm:$0xff]
        %v2595 = vld [vmem:[#allocation10 + $0x2c8] sm:$0xff]
        %v2596 = vld [vmem:[#allocation10 + $0x2d0] sm:$0xff]
        %v2597 = vld [vmem:[#allocation10 + $0x2d8] sm:$0xff]
        %v2598 = vld [vmem:[#allocation10 + $0x2e0] sm:$0xff]
        %v2599 = vld [vmem:[#allocation10 + $0x2e8] sm:$0xff]
        %v2600 = vld [vmem:[#allocation10 + $0x2f0] sm:$0xff]
        %v2601 = vld [vmem:[#allocation10 + $0x2f8] sm:$0xff]
        %v2602 = vld [vmem:[#allocation10 + $0x300] sm:$0xff]
        %v2603 = vld [vmem:[#allocation10 + $0x308] sm:$0xff]
        %v2604 = vld [vmem:[#allocation10 + $0x310] sm:$0xff]
        %v2605 = vld [vmem:[#allocation10 + $0x318] sm:$0xff]
        %v2606 = vld [vmem:[#allocation10 + $0x320] sm:$0xff]
        %v2607 = vld [vmem:[#allocation10 + $0x328] sm:$0xff]
        %v2608 = vld [vmem:[#allocation10 + $0x330] sm:$0xff]
        %v2609 = vld [vmem:[#allocation10 + $0x338] sm:$0xff]
        %v2610 = vld [vmem:[#allocation10 + $0x340] sm:$0xff]
        %v2611 = vld [vmem:[#allocation10 + $0x348] sm:$0xff]
        %v2612 = vld [vmem:[#allocation10 + $0x350] sm:$0xff]
        %v2613 = vld [vmem:[#allocation10 + $0x358] sm:$0xff]
        %v2614 = vld [vmem:[#allocation10 + $0x360] sm:$0xff]
        %v2615 = vld [vmem:[#allocation10 + $0x368] sm:$0xff]
        %v2616 = vld [vmem:[#allocation10 + $0x370] sm:$0xff]
        %v2617 = vld [vmem:[#allocation10 + $0x378] sm:$0xff]
        %v2618 = vld [vmem:[#allocation10 + $0x380] sm:$0xff]
        %v2619 = vld [vmem:[#allocation10 + $0x388] sm:$0xff]
        %v2620 = vld [vmem:[#allocation10 + $0x390] sm:$0xff]
        %v2621 = vld [vmem:[#allocation10 + $0x398] sm:$0xff]
        %v2622 = vld [vmem:[#allocation10 + $0x3a0] sm:$0xff]
        %v2623 = vld [vmem:[#allocation10 + $0x3a8] sm:$0xff]
        %v2624 = vld [vmem:[#allocation10 + $0x3b0] sm:$0xff]
        %v2625 = vld [vmem:[#allocation10 + $0x3b8] sm:$0xff]
        %v2626 = vld [vmem:[#allocation10 + $0x3c0] sm:$0xff]
        %v2627 = vld [vmem:[#allocation10 + $0x3c8] sm:$0xff]
        %v2628 = vld [vmem:[#allocation10 + $0x3d0] sm:$0xff]
        %v2629 = vld [vmem:[#allocation10 + $0x3d8] sm:$0xff]
        %v2630 = vld [vmem:[#allocation10 + $0x3e0] sm:$0xff]
        %v2631 = vld [vmem:[#allocation10 + $0x3e8] sm:$0xff]
        %v2632 = vld [vmem:[#allocation10 + $0x3f0] sm:$0xff]
        %v2633 = vld [vmem:[#allocation10 + $0x3f8] sm:$0xff]
        %v2634 = vld [vmem:[#allocation10 + $0x400] sm:$0xff]
        %v2635 = vld [vmem:[#allocation10 + $0x408] sm:$0xff]
        %v2636 = vld [vmem:[#allocation10 + $0x410] sm:$0xff]
        %v2637 = vld [vmem:[#allocation10 + $0x418] sm:$0xff]
        %v2638 = vld [vmem:[#allocation10 + $0x420] sm:$0xff]
        %v2639 = vld [vmem:[#allocation10 + $0x428] sm:$0xff]
        %v2640 = vld [vmem:[#allocation10 + $0x430] sm:$0xff]
        %v2641 = vld [vmem:[#allocation10 + $0x438] sm:$0xff]
        %v2642 = vld [vmem:[#allocation10 + $0x440] sm:$0xff]
        %v2643 = vld [vmem:[#allocation10 + $0x448] sm:$0xff]
        %v2644 = vld [vmem:[#allocation10 + $0x450] sm:$0xff]
        %v2645 = vld [vmem:[#allocation10 + $0x458] sm:$0xff]
        %v2646 = vld [vmem:[#allocation10 + $0x460] sm:$0xff]
        %v2647 = vld [vmem:[#allocation10 + $0x468] sm:$0xff]
        %v2648 = vld [vmem:[#allocation10 + $0x470] sm:$0xff]
        %v2649 = vld [vmem:[#allocation10 + $0x478] sm:$0xff]
        %v2650 = vld [vmem:[#allocation10 + $0x480] sm:$0xff]
        %v2651 = vld [vmem:[#allocation10 + $0x488] sm:$0xff]
        %v2652 = vld [vmem:[#allocation10 + $0x490] sm:$0xff]
        %v2653 = vld [vmem:[#allocation10 + $0x498] sm:$0xff]
        %v2654 = vld [vmem:[#allocation10 + $0x4a0] sm:$0xff]
        %v2655 = vld [vmem:[#allocation10 + $0x4a8] sm:$0xff]
        %v2656 = vld [vmem:[#allocation10 + $0x4b0] sm:$0xff]
        %v2657 = vld [vmem:[#allocation10 + $0x4b8] sm:$0xff]
        %v2658 = vld [vmem:[#allocation10 + $0x4c0] sm:$0xff]
        %v2659 = vld [vmem:[#allocation10 + $0x4c8] sm:$0xff]
        %v2660 = vld [vmem:[#allocation10 + $0x4d0] sm:$0xff]
        %v2661 = vld [vmem:[#allocation10 + $0x4d8] sm:$0xff]
        %v2662 = vld [vmem:[#allocation10 + $0x4e0] sm:$0xff]
        %v2663 = vld [vmem:[#allocation10 + $0x4e8] sm:$0xff]
        %v2664 = vld [vmem:[#allocation10 + $0x4f0] sm:$0xff]
        %v2665 = vld [vmem:[#allocation10 + $0x4f8] sm:$0xff]
        %v2666 = vld [vmem:[#allocation10 + $0x500] sm:$0xff]
        %v2667 = vld [vmem:[#allocation10 + $0x508] sm:$0xff]
        %v2668 = vld [vmem:[#allocation10 + $0x510] sm:$0xff]
        %v2669 = vld [vmem:[#allocation10 + $0x518] sm:$0xff]
        %v2670 = vld [vmem:[#allocation10 + $0x520] sm:$0xff]
        %v2671 = vld [vmem:[#allocation10 + $0x528] sm:$0xff]
        %v2672 = vld [vmem:[#allocation10 + $0x530] sm:$0xff]
        %v2673 = vld [vmem:[#allocation10 + $0x538] sm:$0xff]
        %v2674 = vld [vmem:[#allocation10 + $0x540] sm:$0xff]
        %v2675 = vld [vmem:[#allocation10 + $0x548] sm:$0xff]
        %v2676 = vld [vmem:[#allocation10 + $0x550] sm:$0xff]
        %v2677 = vld [vmem:[#allocation10 + $0x558] sm:$0xff]
        %v2678 = vld [vmem:[#allocation10 + $0x560] sm:$0xff]
        %v2679 = vld [vmem:[#allocation10 + $0x568] sm:$0xff]
        %v2680 = vld [vmem:[#allocation10 + $0x570] sm:$0xff]
        %v2681 = vld [vmem:[#allocation10 + $0x578] sm:$0xff]
        %v2682 = vld [vmem:[#allocation10 + $0x580] sm:$0xff]
        %v2683 = vld [vmem:[#allocation10 + $0x588] sm:$0xff]
        %v2684 = vld [vmem:[#allocation10 + $0x590] sm:$0xff]
        %v2685 = vld [vmem:[#allocation10 + $0x598] sm:$0xff]
        %v2686 = vld [vmem:[#allocation10 + $0x5a0] sm:$0xff]
        %v2687 = vld [vmem:[#allocation10 + $0x5a8] sm:$0xff]
        %v2688 = vld [vmem:[#allocation10 + $0x5b0] sm:$0xff]
        %v2689 = vld [vmem:[#allocation10 + $0x5b8] sm:$0xff]
        %v2690 = vld [vmem:[#allocation10 + $0x5c0] sm:$0xff]
        %v2691 = vld [vmem:[#allocation10 + $0x5c8] sm:$0xff]
        %v2692 = vld [vmem:[#allocation10 + $0x5d0] sm:$0xff]
        %v2693 = vld [vmem:[#allocation10 + $0x5d8] sm:$0xff]
        %v2694 = vld [vmem:[#allocation10 + $0x5e0] sm:$0xff]
        %v2695 = vld [vmem:[#allocation10 + $0x5e8] sm:$0xff]
        %v2696 = vld [vmem:[#allocation10 + $0x5f0] sm:$0xff]
        %v2697 = vld [vmem:[#allocation10 + $0x5f8] sm:$0xff]
        %v2698 = vld [vmem:[#allocation10 + $0x600] sm:$0xff]
        %v2699 = vld [vmem:[#allocation10 + $0x608] sm:$0xff]
        %v2700 = vld [vmem:[#allocation10 + $0x610] sm:$0xff]
        %v2701 = vld [vmem:[#allocation10 + $0x618] sm:$0xff]
        %v2702 = vld [vmem:[#allocation10 + $0x620] sm:$0xff]
        %v2703 = vld [vmem:[#allocation10 + $0x628] sm:$0xff]
        %v2704 = vld [vmem:[#allocation10 + $0x630] sm:$0xff]
        %v2705 = vld [vmem:[#allocation10 + $0x638] sm:$0xff]
        %v2706 = vld [vmem:[#allocation10 + $0x640] sm:$0xff]
        %v2707 = vld [vmem:[#allocation10 + $0x648] sm:$0xff]
        %v2708 = vld [vmem:[#allocation10 + $0x650] sm:$0xff]
        %v2709 = vld [vmem:[#allocation10 + $0x658] sm:$0xff]
        %v2710 = vld [vmem:[#allocation10 + $0x660] sm:$0xff]
        %v2711 = vld [vmem:[#allocation10 + $0x668] sm:$0xff]
        %v2712 = vld [vmem:[#allocation10 + $0x670] sm:$0xff]
        %v2713 = vld [vmem:[#allocation10 + $0x678] sm:$0xff]
        %v2714 = vld [vmem:[#allocation10 + $0x680] sm:$0xff]
        %v2715 = vld [vmem:[#allocation10 + $0x688] sm:$0xff]
        %v2716 = vld [vmem:[#allocation10 + $0x690] sm:$0xff]
        %v2717 = vld [vmem:[#allocation10 + $0x698] sm:$0xff]
        %v2718 = vld [vmem:[#allocation10 + $0x6a0] sm:$0xff]
        %v2719 = vld [vmem:[#allocation10 + $0x6a8] sm:$0xff]
        %v2720 = vld [vmem:[#allocation10 + $0x6b0] sm:$0xff]
        %v2721 = vld [vmem:[#allocation10 + $0x6b8] sm:$0xff]
        %v2722 = vld [vmem:[#allocation10 + $0x6c0] sm:$0xff]
        %v2723 = vld [vmem:[#allocation10 + $0x6c8] sm:$0xff]
        %v2724 = vld [vmem:[#allocation10 + $0x6d0] sm:$0xff]
        %v2725 = vld [vmem:[#allocation10 + $0x6d8] sm:$0xff]
        %v2726 = vld [vmem:[#allocation10 + $0x6e0] sm:$0xff]
        %v2727 = vld [vmem:[#allocation10 + $0x6e8] sm:$0xff]
        %v2728 = vld [vmem:[#allocation10 + $0x6f0] sm:$0xff]
        %v2729 = vld [vmem:[#allocation10 + $0x6f8] sm:$0xff]
        %v2730 = vld [vmem:[#allocation10 + $0x700] sm:$0xff]
        %v2731 = vld [vmem:[#allocation10 + $0x708] sm:$0xff]
        %v2732 = vld [vmem:[#allocation10 + $0x710] sm:$0xff]
        %v2733 = vld [vmem:[#allocation10 + $0x718] sm:$0xff]
        %v2734 = vld [vmem:[#allocation10 + $0x720] sm:$0xff]
        %v2735 = vld [vmem:[#allocation10 + $0x728] sm:$0xff]
        %v2736 = vld [vmem:[#allocation10 + $0x730] sm:$0xff]
        %v2737 = vld [vmem:[#allocation10 + $0x738] sm:$0xff]
        %v2738 = vld [vmem:[#allocation10 + $0x740] sm:$0xff]
        %v2739 = vld [vmem:[#allocation10 + $0x748] sm:$0xff]
        %v2740 = vld [vmem:[#allocation10 + $0x750] sm:$0xff]
        %v2741 = vld [vmem:[#allocation10 + $0x758] sm:$0xff]
        %v2742 = vld [vmem:[#allocation10 + $0x760] sm:$0xff]
        %v2743 = vld [vmem:[#allocation10 + $0x768] sm:$0xff]
        %v2744 = vld [vmem:[#allocation10 + $0x770] sm:$0xff]
        %v2745 = vld [vmem:[#allocation10 + $0x778] sm:$0xff]
        %v2746 = vld [vmem:[#allocation10 + $0x780] sm:$0xff]
        %v2747 = vld [vmem:[#allocation10 + $0x788] sm:$0xff]
        %v2748 = vld [vmem:[#allocation10 + $0x790] sm:$0xff]
        %v2749 = vld [vmem:[#allocation10 + $0x798] sm:$0xff]
        %v2750 = vld [vmem:[#allocation10 + $0x7a0] sm:$0xff]
        %v2751 = vld [vmem:[#allocation10 + $0x7a8] sm:$0xff]
        %v2752 = vld [vmem:[#allocation10 + $0x7b0] sm:$0xff]
        %v2753 = vld [vmem:[#allocation10 + $0x7b8] sm:$0xff]
        %v2754 = vld [vmem:[#allocation10 + $0x7c0] sm:$0xff]
        %v2755 = vld [vmem:[#allocation10 + $0x7c8] sm:$0xff]
        %v2756 = vld [vmem:[#allocation10 + $0x7d0] sm:$0xff]
        %v2757 = vld [vmem:[#allocation10 + $0x7d8] sm:$0xff]
        %v2758 = vld [vmem:[#allocation10 + $0x7e0] sm:$0xff]
        %v2759 = vld [vmem:[#allocation10 + $0x7e8] sm:$0xff]
        %v2760 = vld [vmem:[#allocation10 + $0x7f0] sm:$0xff]
        %v2761 = vld [vmem:[#allocation10 + $0x7f8] sm:$0xff]
        %v2762 = vld [vmem:[#allocation10 + $0x800] sm:$0xff]
        %v2763 = vld [vmem:[#allocation10 + $0x808] sm:$0xff]
        %v2764 = vld [vmem:[#allocation10 + $0x810] sm:$0xff]
        %v2765 = vld [vmem:[#allocation10 + $0x818] sm:$0xff]
        %v2766 = vld [vmem:[#allocation10 + $0x820] sm:$0xff]
        %v2767 = vld [vmem:[#allocation10 + $0x828] sm:$0xff]
        %v2768 = vld [vmem:[#allocation10 + $0x830] sm:$0xff]
        %v2769 = vld [vmem:[#allocation10 + $0x838] sm:$0xff]
        %v2770 = vld [vmem:[#allocation10 + $0x840] sm:$0xff]
        %v2771 = vld [vmem:[#allocation10 + $0x848] sm:$0xff]
        %v2772 = vld [vmem:[#allocation10 + $0x850] sm:$0xff]
        %v2773 = vld [vmem:[#allocation10 + $0x858] sm:$0xff]
        %v2774 = vld [vmem:[#allocation10 + $0x860] sm:$0xff]
        %v2775 = vld [vmem:[#allocation10 + $0x868] sm:$0xff]
        %v2776 = vld [vmem:[#allocation10 + $0x870] sm:$0xff]
        %v2777 = vld [vmem:[#allocation10 + $0x878] sm:$0xff]
        %v2778 = vld [vmem:[#allocation10 + $0x880] sm:$0xff]
        %v2779 = vld [vmem:[#allocation10 + $0x888] sm:$0xff]
        %v2780 = vld [vmem:[#allocation10 + $0x890] sm:$0xff]
        %v2781 = vld [vmem:[#allocation10 + $0x898] sm:$0xff]
        %v2782 = vld [vmem:[#allocation10 + $0x8a0] sm:$0xff]
        %v2783 = vld [vmem:[#allocation10 + $0x8a8] sm:$0xff]
        %v2784 = vld [vmem:[#allocation10 + $0x8b0] sm:$0xff]
        %v2785 = vld [vmem:[#allocation10 + $0x8b8] sm:$0xff]
        %v2786 = vld [vmem:[#allocation10 + $0x8c0] sm:$0xff]
        %v2787 = vld [vmem:[#allocation10 + $0x8c8] sm:$0xff]
        %v2788 = vld [vmem:[#allocation10 + $0x8d0] sm:$0xff]
        %v2789 = vld [vmem:[#allocation10 + $0x8d8] sm:$0xff]
        %v2790 = vld [vmem:[#allocation10 + $0x8e0] sm:$0xff]
        %v2791 = vld [vmem:[#allocation10 + $0x8e8] sm:$0xff]
        %v2792 = vld [vmem:[#allocation10 + $0x8f0] sm:$0xff]
        %v2793 = vld [vmem:[#allocation10 + $0x8f8] sm:$0xff]
        %v2794 = vld [vmem:[#allocation10 + $0x900] sm:$0xff]
        %v2795 = vld [vmem:[#allocation10 + $0x908] sm:$0xff]
        %v2796 = vld [vmem:[#allocation10 + $0x910] sm:$0xff]
        %v2797 = vld [vmem:[#allocation10 + $0x918] sm:$0xff]
        %v2798 = vld [vmem:[#allocation10 + $0x920] sm:$0xff]
        %v2799 = vld [vmem:[#allocation10 + $0x928] sm:$0xff]
        %v2800 = vld [vmem:[#allocation10 + $0x930] sm:$0xff]
        %v2801 = vld [vmem:[#allocation10 + $0x938] sm:$0xff]
        %v2802 = vld [vmem:[#allocation10 + $0x940] sm:$0xff]
        %v2803 = vld [vmem:[#allocation10 + $0x948] sm:$0xff]
        %v2804 = vld [vmem:[#allocation10 + $0x950] sm:$0xff]
        %v2805 = vld [vmem:[#allocation10 + $0x958] sm:$0xff]
        %v2806 = vld [vmem:[#allocation10 + $0x960] sm:$0xff]
        %v2807 = vld [vmem:[#allocation10 + $0x968] sm:$0xff]
        %v2808 = vld [vmem:[#allocation10 + $0x970] sm:$0xff]
        %v2809 = vld [vmem:[#allocation10 + $0x978] sm:$0xff]
        %v2810 = vld [vmem:[#allocation10 + $0x980] sm:$0xff]
        %v2811 = vld [vmem:[#allocation10 + $0x988] sm:$0xff]
        %v2812 = vld [vmem:[#allocation10 + $0x990] sm:$0xff]
        %v2813 = vld [vmem:[#allocation10 + $0x998] sm:$0xff]
        %v2814 = vld [vmem:[#allocation10 + $0x9a0] sm:$0xff]
        %v2815 = vld [vmem:[#allocation10 + $0x9a8] sm:$0xff]
        %v2816 = vld [vmem:[#allocation10 + $0x9b0] sm:$0xff]
        %v2817 = vld [vmem:[#allocation10 + $0x9b8] sm:$0xff]
        %v2818 = vld [vmem:[#allocation10 + $0x9c0] sm:$0xff]
        %v2819 = vld [vmem:[#allocation10 + $0x9c8] sm:$0xff]
        %v2820 = vld [vmem:[#allocation10 + $0x9d0] sm:$0xff]
        %v2821 = vld [vmem:[#allocation10 + $0x9d8] sm:$0xff]
        %v2822 = vld [vmem:[#allocation10 + $0x9e0] sm:$0xff]
        %v2823 = vld [vmem:[#allocation10 + $0x9e8] sm:$0xff]
        %v2824 = vld [vmem:[#allocation10 + $0x9f0] sm:$0xff]
        %v2825 = vld [vmem:[#allocation10 + $0x9f8] sm:$0xff]
        %v2826 = vld [vmem:[#allocation10 + $0xa00] sm:$0xff]
        %v2827 = vld [vmem:[#allocation10 + $0xa08] sm:$0xff]
        %v2828 = vld [vmem:[#allocation10 + $0xa10] sm:$0xff]
        %v2829 = vld [vmem:[#allocation10 + $0xa18] sm:$0xff]
        %v2830 = vld [vmem:[#allocation10 + $0xa20] sm:$0xff]
        %v2831 = vld [vmem:[#allocation10 + $0xa28] sm:$0xff]
        %v2832 = vld [vmem:[#allocation10 + $0xa30] sm:$0xff]
        %v2833 = vld [vmem:[#allocation10 + $0xa38] sm:$0xff]
        %v2834 = vld [vmem:[#allocation10 + $0xa40] sm:$0xff]
        %v2835 = vld [vmem:[#allocation10 + $0xa48] sm:$0xff]
        %v2836 = vld [vmem:[#allocation10 + $0xa50] sm:$0xff]
        %v2837 = vld [vmem:[#allocation10 + $0xa58] sm:$0xff]
        %v2838 = vld [vmem:[#allocation10 + $0xa60] sm:$0xff]
        %v2839 = vld [vmem:[#allocation10 + $0xa68] sm:$0xff]
        %v2840 = vld [vmem:[#allocation10 + $0xa70] sm:$0xff]
        %v2841 = vld [vmem:[#allocation10 + $0xa78] sm:$0xff]
        %v2842 = vld [vmem:[#allocation10 + $0xa80] sm:$0xff]
        %v2843 = vld [vmem:[#allocation10 + $0xa88] sm:$0xff]
        %v2844 = vld [vmem:[#allocation10 + $0xa90] sm:$0xff]
        %v2845 = vld [vmem:[#allocation10 + $0xa98] sm:$0xff]
        %v2846 = vld [vmem:[#allocation10 + $0xaa0] sm:$0xff]
        %v2847 = vld [vmem:[#allocation10 + $0xaa8] sm:$0xff]
        %v2848 = vld [vmem:[#allocation10 + $0xab0] sm:$0xff]
        %v2849 = vld [vmem:[#allocation10 + $0xab8] sm:$0xff]
        %v2850 = vld [vmem:[#allocation10 + $0xac0] sm:$0xff]
        %v2851 = vld [vmem:[#allocation10 + $0xac8] sm:$0xff]
        %v2852 = vld [vmem:[#allocation10 + $0xad0] sm:$0xff]
        %v2853 = vld [vmem:[#allocation10 + $0xad8] sm:$0xff]
        %v2854 = vld [vmem:[#allocation10 + $0xae0] sm:$0xff]
        %v2855 = vld [vmem:[#allocation10 + $0xae8] sm:$0xff]
        %v2856 = vld [vmem:[#allocation10 + $0xaf0] sm:$0xff]
        %v2857 = vld [vmem:[#allocation10 + $0xaf8] sm:$0xff]
        %v2858 = vld [vmem:[#allocation10 + $0xb00] sm:$0xff]
        %v2859 = vld [vmem:[#allocation10 + $0xb08] sm:$0xff]
        %v2860 = vld [vmem:[#allocation10 + $0xb10] sm:$0xff]
        %v2861 = vld [vmem:[#allocation10 + $0xb18] sm:$0xff]
        %v2862 = vld [vmem:[#allocation10 + $0xb20] sm:$0xff]
        %v2863 = vld [vmem:[#allocation10 + $0xb28] sm:$0xff]
        %v2864 = vld [vmem:[#allocation10 + $0xb30] sm:$0xff]
        %v2865 = vld [vmem:[#allocation10 + $0xb38] sm:$0xff]
        %v2866 = vld [vmem:[#allocation10 + $0xb40] sm:$0xff]
        %v2867 = vld [vmem:[#allocation10 + $0xb48] sm:$0xff]
        %v2868 = vld [vmem:[#allocation10 + $0xb50] sm:$0xff]
        %v2869 = vld [vmem:[#allocation10 + $0xb58] sm:$0xff]
        %v2870 = vld [vmem:[#allocation10 + $0xb60] sm:$0xff]
        %v2871 = vld [vmem:[#allocation10 + $0xb68] sm:$0xff]
        %v2872 = vld [vmem:[#allocation10 + $0xb70] sm:$0xff]
        %v2873 = vld [vmem:[#allocation10 + $0xb78] sm:$0xff]
        %v2874 = vld [vmem:[#allocation10 + $0xb80] sm:$0xff]
        %v2875 = vld [vmem:[#allocation10 + $0xb88] sm:$0xff]
        %v2876 = vld [vmem:[#allocation10 + $0xb90] sm:$0xff]
        %v2877 = vld [vmem:[#allocation10 + $0xb98] sm:$0xff]
        %v2878 = vld [vmem:[#allocation10 + $0xba0] sm:$0xff]
        %v2879 = vld [vmem:[#allocation10 + $0xba8] sm:$0xff]
        %v2880 = vld [vmem:[#allocation10 + $0xbb0] sm:$0xff]
        %v2881 = vld [vmem:[#allocation10 + $0xbb8] sm:$0xff]
        %v2882 = vld [vmem:[#allocation10 + $0xbc0] sm:$0xff]
        %v2883 = vld [vmem:[#allocation10 + $0xbc8] sm:$0xff]
        %v2884 = vld [vmem:[#allocation10 + $0xbd0] sm:$0xff]
        %v2885 = vld [vmem:[#allocation10 + $0xbd8] sm:$0xff]
        %v2886 = vld [vmem:[#allocation10 + $0xbe0] sm:$0xff]
        %v2887 = vld [vmem:[#allocation10 + $0xbe8] sm:$0xff]
        %v2888 = vld [vmem:[#allocation10 + $0xbf0] sm:$0xff]
        %v2889 = vld [vmem:[#allocation10 + $0xbf8] sm:$0xff]
        %v2890 = vld [vmem:[#allocation10 + $0xc00] sm:$0xff]
        %v2891 = vld [vmem:[#allocation10 + $0xc08] sm:$0xff]
        %v2892 = vld [vmem:[#allocation10 + $0xc10] sm:$0xff]
        %v2893 = vld [vmem:[#allocation10 + $0xc18] sm:$0xff]
        %v2894 = vld [vmem:[#allocation10 + $0xc20] sm:$0xff]
        %v2895 = vld [vmem:[#allocation10 + $0xc28] sm:$0xff]
        %v2896 = vld [vmem:[#allocation10 + $0xc30] sm:$0xff]
        %v2897 = vld [vmem:[#allocation10 + $0xc38] sm:$0xff]
        %v2898 = vld [vmem:[#allocation10 + $0xc40] sm:$0xff]
        %v2899 = vld [vmem:[#allocation10 + $0xc48] sm:$0xff]
        %v2900 = vld [vmem:[#allocation10 + $0xc50] sm:$0xff]
        %v2901 = vld [vmem:[#allocation10 + $0xc58] sm:$0xff]
        %v2902 = vld [vmem:[#allocation10 + $0xc60] sm:$0xff]
        %v2903 = vld [vmem:[#allocation10 + $0xc68] sm:$0xff]
        %v2904 = vld [vmem:[#allocation10 + $0xc70] sm:$0xff]
        %v2905 = vld [vmem:[#allocation10 + $0xc78] sm:$0xff]
        %2906 = vmatprep.subr.mxu0 %v2507
        %2907 = vmatpush1.msra.mxu0 %v2506
        %2908 = vmatprep.subr.mxu0 %v2512
        %2909 = vmatpush1.msra.mxu0 %v2511
        %2910 = vmatprep.subr.mxu0 %v2517
        %2911 = vmatpush1.msra.mxu0 %v2516
        %2912 = vmatprep.subr.mxu0 %v2522
        %2913 = vmatpush1.msra.mxu0 %v2521
        %2914 = vmatprep.subr.mxu0 %v2527
        %2915 = vmatpush1.msra.mxu0 %v2526
        %2916 = vmatprep.subr.mxu0 %v2532
        %2917 = vmatpush1.msra.mxu0 %v2531
        %2918 = vmatprep.subr.mxu0 %v2537
        %2919 = vmatpush1.msra.mxu0 %v2536
        %2920 = vmatprep.subr.mxu0 %v2542
        %2921 = vmatpush1.msra.mxu0 %v2541
        %2922 = vmatprep.subr.mxu0 %v2547
        %2923 = vmatpush1.msra.mxu0 %v2546
        %2924 = vmatprep.subr.mxu0 %v2552
        %2925 = vmatpush1.msra.mxu0 %v2551
        %2926 = vmatprep.subr.mxu0 %v2557
        %2927 = vmatpush1.msra.mxu0 %v2556
        %2928 = vmatprep.subr.mxu0 %v2562
        %2929 = vmatpush1.msra.mxu0 %v2561
        %2930 = vmatprep.subr.mxu0 %v2567
        %2931 = vmatpush1.msra.mxu0 %v2566
        %2932 = vmatprep.subr.mxu0 %v2572
        %2933 = vmatpush1.msra.mxu0 %v2571
        %2934 = vmatprep.subr.mxu0 %v2577
        %2935 = vmatpush1.msra.mxu0 %v2576
        %2936 = vmatprep.subr.mxu0 %v2582
        %2937 = vmatpush1.msra.mxu0 %v2581
        %2938 = vmatprep.subr.mxu0 %v2587
        %2939 = vmatpush1.msra.mxu0 %v2586
        %2940 = vmatprep.subr.mxu0 %v2592
        %2941 = vmatpush1.msra.mxu0 %v2591
        %2942 = vmatprep.subr.mxu0 %v2597
        %2943 = vmatpush1.msra.mxu0 %v2596
        %2944 = vmatprep.subr.mxu0 %v2602
        %2945 = vmatpush1.msra.mxu0 %v2601
        %2946 = vmatprep.subr.mxu0 %v2607
        %2947 = vmatpush1.msra.mxu0 %v2606
        %2948 = vmatprep.subr.mxu0 %v2612
        %2949 = vmatpush1.msra.mxu0 %v2611
        %2950 = vmatprep.subr.mxu0 %v2617
        %2951 = vmatpush1.msra.mxu0 %v2616
        %2952 = vmatprep.subr.mxu0 %v2622
        %2953 = vmatpush1.msra.mxu0 %v2621
        %2954 = vmatprep.subr.mxu0 %v2627
        %2955 = vmatpush1.msra.mxu0 %v2626
        %2956 = vmatprep.subr.mxu0 %v2632
        %2957 = vmatpush1.msra.mxu0 %v2631
        %2958 = vmatprep.subr.mxu0 %v2637
        %2959 = vmatpush1.msra.mxu0 %v2636
        %2960 = vmatprep.subr.mxu0 %v2642
        %2961 = vmatpush1.msra.mxu0 %v2641
        %2962 = vmatprep.subr.mxu0 %v2647
        %2963 = vmatpush1.msra.mxu0 %v2646
        %2964 = vmatprep.subr.mxu0 %v2652
        %2965 = vmatpush1.msra.mxu0 %v2651
        %2966 = vmatprep.subr.mxu0 %v2657
        %2967 = vmatpush1.msra.mxu0 %v2656
        %2968 = vmatprep.subr.mxu0 %v2662
        %2969 = vmatpush1.msra.mxu0 %v2661
        %2970 = vmatprep.mubr.f32.mxu0 %v1410
        %2971 = vmatmul.mubr.f32.gmra.mrb[0].mxu0 %v1409
        %v2972 = vpop.f32.mrb[0].mxu0
        %v2973 = vadd.f32 0.0, %v2972
        %v2974 = vpop.f32.mrb[0].mxu0
        %v2975 = vadd.f32 0.0, %v2974
        %2976 = vmatprep.mubr.f32.mxu0 %v1415
        %2977 = vmatmul.mubr.f32.gmra.mrb[0].mxu0 %v1414
        %v2978 = vpop.f32.mrb[0].mxu0
        %v2979 = vadd.f32 0.0, %v2978
        %v2980 = vpop.f32.mrb[0].mxu0
        %v2981 = vadd.f32 0.0, %v2980
        %2982 = vdwg.mxu0
        %2983 = vmatprep.subr.mxu0 %v2667
        %2984 = vmatpush1.msra.mxu0 %v2666
        %2985 = vmatprep.subr.mxu0 %v2672
        %2986 = vmatpush1.msra.mxu0 %v2671
        %2987 = vmatprep.subr.mxu0 %v2677
        %2988 = vmatpush1.msra.mxu0 %v2676
        %2989 = vmatprep.subr.mxu0 %v2682
        %2990 = vmatpush1.msra.mxu0 %v2681
        %2991 = vmatprep.subr.mxu0 %v2687
        %2992 = vmatpush1.msra.mxu0 %v2686
        %2993 = vmatprep.subr.mxu0 %v2692
        %2994 = vmatpush1.msra.mxu0 %v2691
        %2995 = vmatprep.subr.mxu0 %v2697
        %2996 = vmatpush1.msra.mxu0 %v2696
        %2997 = vmatprep.subr.mxu0 %v2702
        %2998 = vmatpush1.msra.mxu0 %v2701
        %2999 = vmatprep.subr.mxu0 %v2707
        %3000 = vmatpush1.msra.mxu0 %v2706
        %3001 = vmatprep.subr.mxu0 %v2712
        %3002 = vmatpush1.msra.mxu0 %v2711
        %3003 = vmatprep.subr.mxu0 %v2717
        %3004 = vmatpush1.msra.mxu0 %v2716
        %3005 = vmatprep.subr.mxu0 %v2722
        %3006 = vmatpush1.msra.mxu0 %v2721
        %3007 = vmatprep.subr.mxu0 %v2727
        %3008 = vmatpush1.msra.mxu0 %v2726
        %3009 = vmatprep.subr.mxu0 %v2732
        %3010 = vmatpush1.msra.mxu0 %v2731
        %3011 = vmatprep.subr.mxu0 %v2737
        %3012 = vmatpush1.msra.mxu0 %v2736
        %3013 = vmatprep.subr.mxu0 %v2742
        %3014 = vmatpush1.msra.mxu0 %v2741
        %3015 = vmatprep.subr.mxu0 %v2747
        %3016 = vmatpush1.msra.mxu0 %v2746
        %3017 = vmatprep.subr.mxu0 %v2752
        %3018 = vmatpush1.msra.mxu0 %v2751
        %3019 = vmatprep.subr.mxu0 %v2757
        %3020 = vmatpush1.msra.mxu0 %v2756
        %3021 = vmatprep.subr.mxu0 %v2762
        %3022 = vmatpush1.msra.mxu0 %v2761
        %3023 = vmatprep.subr.mxu0 %v2767
        %3024 = vmatpush1.msra.mxu0 %v2766
        %3025 = vmatprep.subr.mxu0 %v2772
        %3026 = vmatpush1.msra.mxu0 %v2771
        %3027 = vmatprep.subr.mxu0 %v2777
        %3028 = vmatpush1.msra.mxu0 %v2776
        %3029 = vmatprep.subr.mxu0 %v2782
        %3030 = vmatpush1.msra.mxu0 %v2781
        %3031 = vmatprep.subr.mxu0 %v2787
        %3032 = vmatpush1.msra.mxu0 %v2786
        %3033 = vmatprep.subr.mxu0 %v2792
        %3034 = vmatpush1.msra.mxu0 %v2791
        %3035 = vmatprep.subr.mxu0 %v2797
        %3036 = vmatpush1.msra.mxu0 %v2796
        %3037 = vmatprep.subr.mxu0 %v2802
        %3038 = vmatpush1.msra.mxu0 %v2801
        %3039 = vmatprep.subr.mxu0 %v2807
        %3040 = vmatpush1.msra.mxu0 %v2806
        %3041 = vmatprep.subr.mxu0 %v2812
        %3042 = vmatpush1.msra.mxu0 %v2811
        %3043 = vmatprep.subr.mxu0 %v2817
        %3044 = vmatpush1.msra.mxu0 %v2816
        %3045 = vmatprep.subr.mxu0 %v2822
        %3046 = vmatpush1.msra.mxu0 %v2821
        %3047 = vmatprep.mubr.f32.mxu0 %v1412
        %3048 = vmatmul.mubr.f32.gmra.mrb[0].mxu0 %v1411
        %v3049 = vpop.f32.mrb[0].mxu0
        %v3050 = vadd.f32 %v2973, %v3049
        %v3051 = vpop.f32.mrb[0].mxu0
        %v3052 = vadd.f32 %v2975, %v3051
        %3053 = vmatprep.mubr.f32.mxu0 %v1417
        %3054 = vmatmul.mubr.f32.gmra.mrb[0].mxu0 %v1416
        %v3055 = vpop.f32.mrb[0].mxu0
        %v3056 = vadd.f32 %v2979, %v3055
        %v3057 = vpop.f32.mrb[0].mxu0
        %v3058 = vadd.f32 %v2981, %v3057
        %3059 = vdwg.mxu0
        %3060 = vmatprep.subr.mxu0 %v2827
        %3061 = vmatpush1.msra.mxu0 %v2826
        %3062 = vmatprep.subr.mxu0 %v2832
        %3063 = vmatpush1.msra.mxu0 %v2831
        %3064 = vmatprep.subr.mxu0 %v2837
        %3065 = vmatpush1.msra.mxu0 %v2836
        %3066 = vmatprep.subr.mxu0 %v2842
        %3067 = vmatpush1.msra.mxu0 %v2841
        %3068 = vmatprep.subr.mxu0 %v2847
        %3069 = vmatpush1.msra.mxu0 %v2846
        %3070 = vmatprep.subr.mxu0 %v2852
        %3071 = vmatpush1.msra.mxu0 %v2851
        %3072 = vmatprep.subr.mxu0 %v2857
        %3073 = vmatpush1.msra.mxu0 %v2856
        %3074 = vmatprep.subr.mxu0 %v2862
        %3075 = vmatpush1.msra.mxu0 %v2861
        %3076 = vmatprep.subr.mxu0 %v2867
        %3077 = vmatpush1.msra.mxu0 %v2866
        %3078 = vmatprep.subr.mxu0 %v2872
        %3079 = vmatpush1.msra.mxu0 %v2871
        %3080 = vmatprep.subr.mxu0 %v2877
        %3081 = vmatpush1.msra.mxu0 %v2876
        %3082 = vmatprep.subr.mxu0 %v2882
        %3083 = vmatpush1.msra.mxu0 %v2881
        %3084 = vmatprep.subr.mxu0 %v2887
        %3085 = vmatpush1.msra.mxu0 %v2886
        %3086 = vmatprep.subr.mxu0 %v2892
        %3087 = vmatpush1.msra.mxu0 %v2891
        %3088 = vmatprep.subr.mxu0 %v2897
        %3089 = vmatpush1.msra.mxu0 %v2896
        %3090 = vmatprep.subr.mxu0 %v2902
        %3091 = vmatpush1.msra.mxu0 %v2901
        %3092 = vmatprep.subr.mxu0 0.0
        %3093 = vmatpush1.msra.mxu0 0.0
        %3094 = vmatprep.subr.mxu0 0.0
        %3095 = vmatpush1.msra.mxu0 0.0
        %3096 = vmatprep.subr.mxu0 0.0
        %3097 = vmatpush1.msra.mxu0 0.0
        %3098 = vmatprep.subr.mxu0 0.0
        %3099 = vmatpush1.msra.mxu0 0.0
        %3100 = vmatprep.subr.mxu0 0.0
        %3101 = vmatpush1.msra.mxu0 0.0
        %3102 = vmatprep.subr.mxu0 0.0
        %3103 = vmatpush1.msra.mxu0 0.0
        %3104 = vmatprep.subr.mxu0 0.0
        %3105 = vmatpush1.msra.mxu0 0.0
        %3106 = vmatprep.subr.mxu0 0.0
        %3107 = vmatpush1.msra.mxu0 0.0
        %3108 = vmatprep.subr.mxu0 0.0
        %3109 = vmatpush1.msra.mxu0 0.0
        %3110 = vmatprep.subr.mxu0 0.0
        %3111 = vmatpush1.msra.mxu0 0.0
        %3112 = vmatprep.subr.mxu0 0.0
        %3113 = vmatpush1.msra.mxu0 0.0
        %3114 = vmatprep.subr.mxu0 0.0
        %3115 = vmatpush1.msra.mxu0 0.0
        %3116 = vmatprep.subr.mxu0 0.0
        %3117 = vmatpush1.msra.mxu0 0.0
        %3118 = vmatprep.subr.mxu0 0.0
        %3119 = vmatpush1.msra.mxu0 0.0
        %3120 = vmatprep.subr.mxu0 0.0
        %3121 = vmatpush1.msra.mxu0 0.0
        %3122 = vmatprep.subr.mxu0 0.0
        %3123 = vmatpush1.msra.mxu0 0.0
        %3124 = vmatprep.mubr.f32.mxu0 0.0
        %3125 = vmatmul.mubr.f32.gmra.mrb[0].mxu0 %v1413
        %v3126 = vpop.f32.mrb[0].mxu0
        %v3127 = vadd.f32 %v3050, %v3126
        %v3128 = vpop.f32.mrb[0].mxu0
        %v3129 = vadd.f32 %v3052, %v3128
        %3130 = vmatprep.mubr.f32.mxu0 0.0
        %3131 = vmatmul.mubr.f32.gmra.mrb[0].mxu0 %v1418
        %v3132 = vpop.f32.mrb[0].mxu0
        %v3133 = vadd.f32 %v3056, %v3132
        %v3134 = vpop.f32.mrb[0].mxu0
        %v3135 = vadd.f32 %v3058, %v3134
        %3136 = vdwg.mxu0
        %3137 = vmatprep.subr.mxu0 %v2509
        %3138 = vmatpush1.msra.mxu0 %v2508
        %3139 = vmatprep.subr.mxu0 %v2514
        %3140 = vmatpush1.msra.mxu0 %v2513
        %3141 = vmatprep.subr.mxu0 %v2519
        %3142 = vmatpush1.msra.mxu0 %v2518
        %3143 = vmatprep.subr.mxu0 %v2524
        %3144 = vmatpush1.msra.mxu0 %v2523
        %3145 = vmatprep.subr.mxu0 %v2529
        %3146 = vmatpush1.msra.mxu0 %v2528
        %3147 = vmatprep.subr.mxu0 %v2534
        %3148 = vmatpush1.msra.mxu0 %v2533
        %3149 = vmatprep.subr.mxu0 %v2539
        %3150 = vmatpush1.msra.mxu0 %v2538
        %3151 = vmatprep.subr.mxu0 %v2544
        %3152 = vmatpush1.msra.mxu0 %v2543
        %3153 = vmatprep.subr.mxu0 %v2549
        %3154 = vmatpush1.msra.mxu0 %v2548
        %3155 = vmatprep.subr.mxu0 %v2554
        %3156 = vmatpush1.msra.mxu0 %v2553
        %3157 = vmatprep.subr.mxu0 %v2559
        %3158 = vmatpush1.msra.mxu0 %v2558
        %3159 = vmatprep.subr.mxu0 %v2564
        %3160 = vmatpush1.msra.mxu0 %v2563
        %3161 = vmatprep.subr.mxu0 %v2569
        %3162 = vmatpush1.msra.mxu0 %v2568
        %3163 = vmatprep.subr.mxu0 %v2574
        %3164 = vmatpush1.msra.mxu0 %v2573
        %3165 = vmatprep.subr.mxu0 %v2579
        %3166 = vmatpush1.msra.mxu0 %v2578
        %3167 = vmatprep.subr.mxu0 %v2584
        %3168 = vmatpush1.msra.mxu0 %v2583
        %3169 = vmatprep.subr.mxu0 %v2589
        %3170 = vmatpush1.msra.mxu0 %v2588
        %3171 = vmatprep.subr.mxu0 %v2594
        %3172 = vmatpush1.msra.mxu0 %v2593
        %3173 = vmatprep.subr.mxu0 %v2599
        %3174 = vmatpush1.msra.mxu0 %v2598
        %3175 = vmatprep.subr.mxu0 %v2604
        %3176 = vmatpush1.msra.mxu0 %v2603
        %3177 = vmatprep.subr.mxu0 %v2609
        %3178 = vmatpush1.msra.mxu0 %v2608
        %3179 = vmatprep.subr.mxu0 %v2614
        %3180 = vmatpush1.msra.mxu0 %v2613
        %3181 = vmatprep.subr.mxu0 %v2619
        %3182 = vmatpush1.msra.mxu0 %v2618
        %3183 = vmatprep.subr.mxu0 %v2624
        %3184 = vmatpush1.msra.mxu0 %v2623
        %3185 = vmatprep.subr.mxu0 %v2629
        %3186 = vmatpush1.msra.mxu0 %v2628
        %3187 = vmatprep.subr.mxu0 %v2634
        %3188 = vmatpush1.msra.mxu0 %v2633
        %3189 = vmatprep.subr.mxu0 %v2639
        %3190 = vmatpush1.msra.mxu0 %v2638
        %3191 = vmatprep.subr.mxu0 %v2644
        %3192 = vmatpush1.msra.mxu0 %v2643
        %3193 = vmatprep.subr.mxu0 %v2649
        %3194 = vmatpush1.msra.mxu0 %v2648
        %3195 = vmatprep.subr.mxu0 %v2654
        %3196 = vmatpush1.msra.mxu0 %v2653
        %3197 = vmatprep.subr.mxu0 %v2659
        %3198 = vmatpush1.msra.mxu0 %v2658
        %3199 = vmatprep.subr.mxu0 %v2664
        %3200 = vmatpush1.msra.mxu0 %v2663
        %3201 = vmatprep.mubr.f32.mxu0 %v1410
        %3202 = vmatmul.mubr.f32.gmra.mrb[0].mxu0 %v1409
        %v3203 = vpop.f32.mrb[0].mxu0
        %v3204 = vadd.f32 0.0, %v3203
        %v3205 = vpop.f32.mrb[0].mxu0
        %v3206 = vadd.f32 0.0, %v3205
        %3207 = vmatprep.mubr.f32.mxu0 %v1415
        %3208 = vmatmul.mubr.f32.gmra.mrb[0].mxu0 %v1414
        %v3209 = vpop.f32.mrb[0].mxu0
        %v3210 = vadd.f32 0.0, %v3209
        %v3211 = vpop.f32.mrb[0].mxu0
        %v3212 = vadd.f32 0.0, %v3211
        %3213 = vdwg.mxu0
        %3214 = vmatprep.subr.mxu0 %v2669
        %3215 = vmatpush1.msra.mxu0 %v2668
        %3216 = vmatprep.subr.mxu0 %v2674
        %3217 = vmatpush1.msra.mxu0 %v2673
        %3218 = vmatprep.subr.mxu0 %v2679
        %3219 = vmatpush1.msra.mxu0 %v2678
        %3220 = vmatprep.subr.mxu0 %v2684
        %3221 = vmatpush1.msra.mxu0 %v2683
        %3222 = vmatprep.subr.mxu0 %v2689
        %3223 = vmatpush1.msra.mxu0 %v2688
        %3224 = vmatprep.subr.mxu0 %v2694
        %3225 = vmatpush1.msra.mxu0 %v2693
        %3226 = vmatprep.subr.mxu0 %v2699
        %3227 = vmatpush1.msra.mxu0 %v2698
        %3228 = vmatprep.subr.mxu0 %v2704
        %3229 = vmatpush1.msra.mxu0 %v2703
        %3230 = vmatprep.subr.mxu0 %v2709
        %3231 = vmatpush1.msra.mxu0 %v2708
        %3232 = vmatprep.subr.mxu0 %v2714
        %3233 = vmatpush1.msra.mxu0 %v2713
        %3234 = vmatprep.subr.mxu0 %v2719
        %3235 = vmatpush1.msra.mxu0 %v2718
        %3236 = vmatprep.subr.mxu0 %v2724
        %3237 = vmatpush1.msra.mxu0 %v2723
        %3238 = vmatprep.subr.mxu0 %v2729
        %3239 = vmatpush1.msra.mxu0 %v2728
        %3240 = vmatprep.subr.mxu0 %v2734
        %3241 = vmatpush1.msra.mxu0 %v2733
        %3242 = vmatprep.subr.mxu0 %v2739
        %3243 = vmatpush1.msra.mxu0 %v2738
        %3244 = vmatprep.subr.mxu0 %v2744
        %3245 = vmatpush1.msra.mxu0 %v2743
        %3246 = vmatprep.subr.mxu0 %v2749
        %3247 = vmatpush1.msra.mxu0 %v2748
        %3248 = vmatprep.subr.mxu0 %v2754
        %3249 = vmatpush1.msra.mxu0 %v2753
        %3250 = vmatprep.subr.mxu0 %v2759
        %3251 = vmatpush1.msra.mxu0 %v2758
        %3252 = vmatprep.subr.mxu0 %v2764
        %3253 = vmatpush1.msra.mxu0 %v2763
        %3254 = vmatprep.subr.mxu0 %v2769
        %3255 = vmatpush1.msra.mxu0 %v2768
        %3256 = vmatprep.subr.mxu0 %v2774
        %3257 = vmatpush1.msra.mxu0 %v2773
        %3258 = vmatprep.subr.mxu0 %v2779
        %3259 = vmatpush1.msra.mxu0 %v2778
        %3260 = vmatprep.subr.mxu0 %v2784
        %3261 = vmatpush1.msra.mxu0 %v2783
        %3262 = vmatprep.subr.mxu0 %v2789
        %3263 = vmatpush1.msra.mxu0 %v2788
        %3264 = vmatprep.subr.mxu0 %v2794
        %3265 = vmatpush1.msra.mxu0 %v2793
        %3266 = vmatprep.subr.mxu0 %v2799
        %3267 = vmatpush1.msra.mxu0 %v2798
        %3268 = vmatprep.subr.mxu0 %v2804
        %3269 = vmatpush1.msra.mxu0 %v2803
        %3270 = vmatprep.subr.mxu0 %v2809
        %3271 = vmatpush1.msra.mxu0 %v2808
        %3272 = vmatprep.subr.mxu0 %v2814
        %3273 = vmatpush1.msra.mxu0 %v2813
        %3274 = vmatprep.subr.mxu0 %v2819
        %3275 = vmatpush1.msra.mxu0 %v2818
        %3276 = vmatprep.subr.mxu0 %v2824
        %3277 = vmatpush1.msra.mxu0 %v2823
        %3278 = vmatprep.mubr.f32.mxu0 %v1412
        %3279 = vmatmul.mubr.f32.gmra.mrb[0].mxu0 %v1411
        %v3280 = vpop.f32.mrb[0].mxu0
        %v3281 = vadd.f32 %v3204, %v3280
        %v3282 = vpop.f32.mrb[0].mxu0
        %v3283 = vadd.f32 %v3206, %v3282
        %3284 = vmatprep.mubr.f32.mxu0 %v1417
        %3285 = vmatmul.mubr.f32.gmra.mrb[0].mxu0 %v1416
        %v3286 = vpop.f32.mrb[0].mxu0
        %v3287 = vadd.f32 %v3210, %v3286
        %v3288 = vpop.f32.mrb[0].mxu0
        %v3289 = vadd.f32 %v3212, %v3288
        %3290 = vdwg.mxu0
        %3291 = vmatprep.subr.mxu0 %v2829
        %3292 = vmatpush1.msra.mxu0 %v2828
        %3293 = vmatprep.subr.mxu0 %v2834
        %3294 = vmatpush1.msra.mxu0 %v2833
        %3295 = vmatprep.subr.mxu0 %v2839
        %3296 = vmatpush1.msra.mxu0 %v2838
        %3297 = vmatprep.subr.mxu0 %v2844
        %3298 = vmatpush1.msra.mxu0 %v2843
        %3299 = vmatprep.subr.mxu0 %v2849
        %3300 = vmatpush1.msra.mxu0 %v2848
        %3301 = vmatprep.subr.mxu0 %v2854
        %3302 = vmatpush1.msra.mxu0 %v2853
        %3303 = vmatprep.subr.mxu0 %v2859
        %3304 = vmatpush1.msra.mxu0 %v2858
        %3305 = vmatprep.subr.mxu0 %v2864
        %3306 = vmatpush1.msra.mxu0 %v2863
        %3307 = vmatprep.subr.mxu0 %v2869
        %3308 = vmatpush1.msra.mxu0 %v2868
        %3309 = vmatprep.subr.mxu0 %v2874
        %3310 = vmatpush1.msra.mxu0 %v2873
        %3311 = vmatprep.subr.mxu0 %v2879
        %3312 = vmatpush1.msra.mxu0 %v2878
        %3313 = vmatprep.subr.mxu0 %v2884
        %3314 = vmatpush1.msra.mxu0 %v2883
        %3315 = vmatprep.subr.mxu0 %v2889
        %3316 = vmatpush1.msra.mxu0 %v2888
        %3317 = vmatprep.subr.mxu0 %v2894
        %3318 = vmatpush1.msra.mxu0 %v2893
        %3319 = vmatprep.subr.mxu0 %v2899
        %3320 = vmatpush1.msra.mxu0 %v2898
        %3321 = vmatprep.subr.mxu0 %v2904
        %3322 = vmatpush1.msra.mxu0 %v2903
        %3323 = vmatprep.subr.mxu0 0.0
        %3324 = vmatpush1.msra.mxu0 0.0
        %3325 = vmatprep.subr.mxu0 0.0
        %3326 = vmatpush1.msra.mxu0 0.0
        %3327 = vmatprep.subr.mxu0 0.0
        %3328 = vmatpush1.msra.mxu0 0.0
        %3329 = vmatprep.subr.mxu0 0.0
        %3330 = vmatpush1.msra.mxu0 0.0
        %3331 = vmatprep.subr.mxu0 0.0
        %3332 = vmatpush1.msra.mxu0 0.0
        %3333 = vmatprep.subr.mxu0 0.0
        %3334 = vmatpush1.msra.mxu0 0.0
        %3335 = vmatprep.subr.mxu0 0.0
        %3336 = vmatpush1.msra.mxu0 0.0
        %3337 = vmatprep.subr.mxu0 0.0
        %3338 = vmatpush1.msra.mxu0 0.0
        %3339 = vmatprep.subr.mxu0 0.0
        %3340 = vmatpush1.msra.mxu0 0.0
        %3341 = vmatprep.subr.mxu0 0.0
        %3342 = vmatpush1.msra.mxu0 0.0
        %3343 = vmatprep.subr.mxu0 0.0
        %3344 = vmatpush1.msra.mxu0 0.0
        %3345 = vmatprep.subr.mxu0 0.0
        %3346 = vmatpush1.msra.mxu0 0.0
        %3347 = vmatprep.subr.mxu0 0.0
        %3348 = vmatpush1.msra.mxu0 0.0
        %3349 = vmatprep.subr.mxu0 0.0
        %3350 = vmatpush1.msra.mxu0 0.0
        %3351 = vmatprep.subr.mxu0 0.0
        %3352 = vmatpush1.msra.mxu0 0.0
        %3353 = vmatprep.subr.mxu0 0.0
        %3354 = vmatpush1.msra.mxu0 0.0
        %3355 = vmatprep.mubr.f32.mxu0 0.0
        %3356 = vmatmul.mubr.f32.gmra.mrb[0].mxu0 %v1413
        %v3357 = vpop.f32.mrb[0].mxu0
        %v3358 = vadd.f32 %v3281, %v3357
        %v3359 = vpop.f32.mrb[0].mxu0
        %v3360 = vadd.f32 %v3283, %v3359
        %3361 = vmatprep.mubr.f32.mxu0 0.0
        %3362 = vmatmul.mubr.f32.gmra.mrb[0].mxu0 %v1418
        %v3363 = vpop.f32.mrb[0].mxu0
        %v3364 = vadd.f32 %v3287, %v3363
        %v3365 = vpop.f32.mrb[0].mxu0
        %v3366 = vadd.f32 %v3289, %v3365
        %3367 = vdwg.mxu0
        %3368 = vmatprep.subr.mxu0 0.0
        %3369 = vmatpush1.msra.mxu0 %v2510
        %3370 = vmatprep.subr.mxu0 0.0
        %3371 = vmatpush1.msra.mxu0 %v2515
        %3372 = vmatprep.subr.mxu0 0.0
        %3373 = vmatpush1.msra.mxu0 %v2520
        %3374 = vmatprep.subr.mxu0 0.0
        %3375 = vmatpush1.msra.mxu0 %v2525
        %3376 = vmatprep.subr.mxu0 0.0
        %3377 = vmatpush1.msra.mxu0 %v2530
        %3378 = vmatprep.subr.mxu0 0.0
        %3379 = vmatpush1.msra.mxu0 %v2535
        %3380 = vmatprep.subr.mxu0 0.0
        %3381 = vmatpush1.msra.mxu0 %v2540
        %3382 = vmatprep.subr.mxu0 0.0
        %3383 = vmatpush1.msra.mxu0 %v2545
        %3384 = vmatprep.subr.mxu0 0.0
        %3385 = vmatpush1.msra.mxu0 %v2550
        %3386 = vmatprep.subr.mxu0 0.0
        %3387 = vmatpush1.msra.mxu0 %v2555
        %3388 = vmatprep.subr.mxu0 0.0
        %3389 = vmatpush1.msra.mxu0 %v2560
        %3390 = vmatprep.subr.mxu0 0.0
        %3391 = vmatpush1.msra.mxu0 %v2565
        %3392 = vmatprep.subr.mxu0 0.0
        %3393 = vmatpush1.msra.mxu0 %v2570
        %3394 = vmatprep.subr.mxu0 0.0
        %3395 = vmatpush1.msra.mxu0 %v2575
        %3396 = vmatprep.subr.mxu0 0.0
        %3397 = vmatpush1.msra.mxu0 %v2580
        %3398 = vmatprep.subr.mxu0 0.0
        %3399 = vmatpush1.msra.mxu0 %v2585
        %3400 = vmatprep.subr.mxu0 0.0
        %3401 = vmatpush1.msra.mxu0 %v2590
        %3402 = vmatprep.subr.mxu0 0.0
        %3403 = vmatpush1.msra.mxu0 %v2595
        %3404 = vmatprep.subr.mxu0 0.0
        %3405 = vmatpush1.msra.mxu0 %v2600
        %3406 = vmatprep.subr.mxu0 0.0
        %3407 = vmatpush1.msra.mxu0 %v2605
        %3408 = vmatprep.subr.mxu0 0.0
        %3409 = vmatpush1.msra.mxu0 %v2610
        %3410 = vmatprep.subr.mxu0 0.0
        %3411 = vmatpush1.msra.mxu0 %v2615
        %3412 = vmatprep.subr.mxu0 0.0
        %3413 = vmatpush1.msra.mxu0 %v2620
        %3414 = vmatprep.subr.mxu0 0.0
        %3415 = vmatpush1.msra.mxu0 %v2625
        %3416 = vmatprep.subr.mxu0 0.0
        %3417 = vmatpush1.msra.mxu0 %v2630
        %3418 = vmatprep.subr.mxu0 0.0
        %3419 = vmatpush1.msra.mxu0 %v2635
        %3420 = vmatprep.subr.mxu0 0.0
        %3421 = vmatpush1.msra.mxu0 %v2640
        %3422 = vmatprep.subr.mxu0 0.0
        %3423 = vmatpush1.msra.mxu0 %v2645
        %3424 = vmatprep.subr.mxu0 0.0
        %3425 = vmatpush1.msra.mxu0 %v2650
        %3426 = vmatprep.subr.mxu0 0.0
        %3427 = vmatpush1.msra.mxu0 %v2655
        %3428 = vmatprep.subr.mxu0 0.0
        %3429 = vmatpush1.msra.mxu0 %v2660
        %3430 = vmatprep.subr.mxu0 0.0
        %3431 = vmatpush1.msra.mxu0 %v2665
        %3432 = vmatprep.mubr.f32.mxu0 %v1410
        %3433 = vmatmul.mubr.f32.gmra.mrb[0].mxu0 %v1409
        %v3434 = vpop.f32.mrb[0].mxu0
        %v3435 = vadd.f32 0.0, %v3434
        %v3436 = vpop.f32.mrb[0].mxu0
        %3437 = vmatprep.mubr.f32.mxu0 %v1415
        %3438 = vmatmul.mubr.f32.gmra.mrb[0].mxu0 %v1414
        %v3439 = vpop.f32.mrb[0].mxu0
        %v3440 = vadd.f32 0.0, %v3439
        %v3441 = vpop.f32.mrb[0].mxu0
        %3442 = vdwg.mxu0
        %3443 = vmatprep.subr.mxu0 0.0
        %3444 = vmatpush1.msra.mxu0 %v2670
        %3445 = vmatprep.subr.mxu0 0.0
        %3446 = vmatpush1.msra.mxu0 %v2675
        %3447 = vmatprep.subr.mxu0 0.0
        %3448 = vmatpush1.msra.mxu0 %v2680
        %3449 = vmatprep.subr.mxu0 0.0
        %3450 = vmatpush1.msra.mxu0 %v2685
        %3451 = vmatprep.subr.mxu0 0.0
        %3452 = vmatpush1.msra.mxu0 %v2690
        %3453 = vmatprep.subr.mxu0 0.0
        %3454 = vmatpush1.msra.mxu0 %v2695
        %3455 = vmatprep.subr.mxu0 0.0
        %3456 = vmatpush1.msra.mxu0 %v2700
        %3457 = vmatprep.subr.mxu0 0.0
        %3458 = vmatpush1.msra.mxu0 %v2705
        %3459 = vmatprep.subr.mxu0 0.0
        %3460 = vmatpush1.msra.mxu0 %v2710
        %3461 = vmatprep.subr.mxu0 0.0
        %3462 = vmatpush1.msra.mxu0 %v2715
        %3463 = vmatprep.subr.mxu0 0.0
        %3464 = vmatpush1.msra.mxu0 %v2720
        %3465 = vmatprep.subr.mxu0 0.0
        %3466 = vmatpush1.msra.mxu0 %v2725
        %3467 = vmatprep.subr.mxu0 0.0
        %3468 = vmatpush1.msra.mxu0 %v2730
        %3469 = vmatprep.subr.mxu0 0.0
        %3470 = vmatpush1.msra.mxu0 %v2735
        %3471 = vmatprep.subr.mxu0 0.0
        %3472 = vmatpush1.msra.mxu0 %v2740
        %3473 = vmatprep.subr.mxu0 0.0
        %3474 = vmatpush1.msra.mxu0 %v2745
        %3475 = vmatprep.subr.mxu0 0.0
        %3476 = vmatpush1.msra.mxu0 %v2750
        %3477 = vmatprep.subr.mxu0 0.0
        %3478 = vmatpush1.msra.mxu0 %v2755
        %3479 = vmatprep.subr.mxu0 0.0
        %3480 = vmatpush1.msra.mxu0 %v2760
        %3481 = vmatprep.subr.mxu0 0.0
        %3482 = vmatpush1.msra.mxu0 %v2765
        %3483 = vmatprep.subr.mxu0 0.0
        %3484 = vmatpush1.msra.mxu0 %v2770
        %3485 = vmatprep.subr.mxu0 0.0
        %3486 = vmatpush1.msra.mxu0 %v2775
        %3487 = vmatprep.subr.mxu0 0.0
        %3488 = vmatpush1.msra.mxu0 %v2780
        %3489 = vmatprep.subr.mxu0 0.0
        %3490 = vmatpush1.msra.mxu0 %v2785
        %3491 = vmatprep.subr.mxu0 0.0
        %3492 = vmatpush1.msra.mxu0 %v2790
        %3493 = vmatprep.subr.mxu0 0.0
        %3494 = vmatpush1.msra.mxu0 %v2795
        %3495 = vmatprep.subr.mxu0 0.0
        %3496 = vmatpush1.msra.mxu0 %v2800
        %3497 = vmatprep.subr.mxu0 0.0
        %3498 = vmatpush1.msra.mxu0 %v2805
        %3499 = vmatprep.subr.mxu0 0.0
        %3500 = vmatpush1.msra.mxu0 %v2810
        %3501 = vmatprep.subr.mxu0 0.0
        %3502 = vmatpush1.msra.mxu0 %v2815
        %3503 = vmatprep.subr.mxu0 0.0
        %3504 = vmatpush1.msra.mxu0 %v2820
        %3505 = vmatprep.subr.mxu0 0.0
        %3506 = vmatpush1.msra.mxu0 %v2825
        %3507 = vmatprep.mubr.f32.mxu0 %v1412
        %3508 = vmatmul.mubr.f32.gmra.mrb[0].mxu0 %v1411
        %v3509 = vpop.f32.mrb[0].mxu0
        %v3510 = vadd.f32 %v3435, %v3509
        %v3511 = vpop.f32.mrb[0].mxu0
        %3512 = vmatprep.mubr.f32.mxu0 %v1417
        %3513 = vmatmul.mubr.f32.gmra.mrb[0].mxu0 %v1416
        %v3514 = vpop.f32.mrb[0].mxu0
        %v3515 = vadd.f32 %v3440, %v3514
        %v3516 = vpop.f32.mrb[0].mxu0
        %3517 = vdwg.mxu0
        %3518 = vmatprep.subr.mxu0 0.0
        %3519 = vmatpush1.msra.mxu0 %v2830
        %3520 = vmatprep.subr.mxu0 0.0
        %3521 = vmatpush1.msra.mxu0 %v2835
        %3522 = vmatprep.subr.mxu0 0.0
        %3523 = vmatpush1.msra.mxu0 %v2840
        %3524 = vmatprep.subr.mxu0 0.0
        %3525 = vmatpush1.msra.mxu0 %v2845
        %3526 = vmatprep.subr.mxu0 0.0
        %3527 = vmatpush1.msra.mxu0 %v2850
        %3528 = vmatprep.subr.mxu0 0.0
        %3529 = vmatpush1.msra.mxu0 %v2855
        %3530 = vmatprep.subr.mxu0 0.0
        %3531 = vmatpush1.msra.mxu0 %v2860
        %3532 = vmatprep.subr.mxu0 0.0
        %3533 = vmatpush1.msra.mxu0 %v2865
        %3534 = vmatprep.subr.mxu0 0.0
        %3535 = vmatpush1.msra.mxu0 %v2870
        %3536 = vmatprep.subr.mxu0 0.0
        %3537 = vmatpush1.msra.mxu0 %v2875
        %3538 = vmatprep.subr.mxu0 0.0
        %3539 = vmatpush1.msra.mxu0 %v2880
        %3540 = vmatprep.subr.mxu0 0.0
        %3541 = vmatpush1.msra.mxu0 %v2885
        %3542 = vmatprep.subr.mxu0 0.0
        %3543 = vmatpush1.msra.mxu0 %v2890
        %3544 = vmatprep.subr.mxu0 0.0
        %3545 = vmatpush1.msra.mxu0 %v2895
        %3546 = vmatprep.subr.mxu0 0.0
        %3547 = vmatpush1.msra.mxu0 %v2900
        %3548 = vmatprep.subr.mxu0 0.0
        %3549 = vmatpush1.msra.mxu0 %v2905
        %3550 = vmatprep.subr.mxu0 0.0
        %3551 = vmatpush1.msra.mxu0 0.0
        %3552 = vmatprep.subr.mxu0 0.0
        %3553 = vmatpush1.msra.mxu0 0.0
        %3554 = vmatprep.subr.mxu0 0.0
        %3555 = vmatpush1.msra.mxu0 0.0
        %3556 = vmatprep.subr.mxu0 0.0
        %3557 = vmatpush1.msra.mxu0 0.0
        %3558 = vmatprep.subr.mxu0 0.0
        %3559 = vmatpush1.msra.mxu0 0.0
        %3560 = vmatprep.subr.mxu0 0.0
        %3561 = vmatpush1.msra.mxu0 0.0
        %3562 = vmatprep.subr.mxu0 0.0
        %3563 = vmatpush1.msra.mxu0 0.0
        %3564 = vmatprep.subr.mxu0 0.0
        %3565 = vmatpush1.msra.mxu0 0.0
        %3566 = vmatprep.subr.mxu0 0.0
        %3567 = vmatpush1.msra.mxu0 0.0
        %3568 = vmatprep.subr.mxu0 0.0
        %3569 = vmatpush1.msra.mxu0 0.0
        %3570 = vmatprep.subr.mxu0 0.0
        %3571 = vmatpush1.msra.mxu0 0.0
        %3572 = vmatprep.subr.mxu0 0.0
        %3573 = vmatpush1.msra.mxu0 0.0
        %3574 = vmatprep.subr.mxu0 0.0
        %3575 = vmatpush1.msra.mxu0 0.0
        %3576 = vmatprep.subr.mxu0 0.0
        %3577 = vmatpush1.msra.mxu0 0.0
        %3578 = vmatprep.subr.mxu0 0.0
        %3579 = vmatpush1.msra.mxu0 0.0
        %3580 = vmatprep.subr.mxu0 0.0
        %3581 = vmatpush1.msra.mxu0 0.0
        %3582 = vmatprep.mubr.f32.mxu0 0.0
        %3583 = vmatmul.mubr.f32.gmra.mrb[0].mxu0 %v1413
        %v3584 = vpop.f32.mrb[0].mxu0
        %v3585 = vadd.f32 %v3510, %v3584
        %v3586 = vpop.f32.mrb[0].mxu0
        %3587 = vmatprep.mubr.f32.mxu0 0.0
        %3588 = vmatmul.mubr.f32.gmra.mrb[0].mxu0 %v1418
        %v3589 = vpop.f32.mrb[0].mxu0
        %v3590 = vadd.f32 %v3515, %v3589
        %v3591 = vpop.f32.mrb[0].mxu0
        %3592 = vdwg.mxu0
        %3593 = vmatprep.subr.mxu0 %v2042
        %3594 = vmatpush1.xpose.msra.mxu0 %v2040
        %3595 = vmatprep.subr.mxu0 %v2048
        %3596 = vmatpush1.xpose.msra.mxu0 %v2046
        %3597 = vmatprep.subr.mxu0 0.0
        %3598 = vmatpush1.xpose.msra.mxu0 0.0
        %3599 = vmatprep.subr.mxu0 0.0
        %3600 = vmatpush1.xpose.msra.mxu0 0.0
        %3601 = vmatprep.subr.mxu0 0.0
        %3602 = vmatpush1.xpose.msra.mxu0 0.0
        %3603 = vmatprep.subr.mxu0 0.0
        %3604 = vmatpush1.xpose.msra.mxu0 0.0
        %3605 = vmatprep.subr.mxu0 0.0
        %3606 = vmatpush1.xpose.msra.mxu0 0.0
        %3607 = vmatprep.subr.mxu0 0.0
        %3608 = vmatpush1.xpose.msra.mxu0 0.0
        %3609 = vmatprep.subr.mxu0 0.0
        %3610 = vmatpush1.xpose.msra.mxu0 0.0
        %3611 = vmatprep.subr.mxu0 0.0
        %3612 = vmatpush1.xpose.msra.mxu0 0.0
        %3613 = vmatprep.subr.mxu0 0.0
        %3614 = vmatpush1.xpose.msra.mxu0 0.0
        %3615 = vmatprep.subr.mxu0 0.0
        %3616 = vmatpush1.xpose.msra.mxu0 0.0
        %3617 = vmatprep.subr.mxu0 0.0
        %3618 = vmatpush1.xpose.msra.mxu0 0.0
        %3619 = vmatprep.subr.mxu0 0.0
        %3620 = vmatpush1.xpose.msra.mxu0 0.0
        %3621 = vmatprep.subr.mxu0 0.0
        %3622 = vmatpush1.xpose.msra.mxu0 0.0
        %3623 = vmatprep.subr.mxu0 0.0
        %3624 = vmatpush1.xpose.msra.mxu0 0.0
        %3625 = vmatprep.subr.mxu0 0.0
        %3626 = vmatpush1.xpose.msra.mxu0 0.0
        %3627 = vmatprep.subr.mxu0 0.0
        %3628 = vmatpush1.xpose.msra.mxu0 0.0
        %3629 = vmatprep.subr.mxu0 0.0
        %3630 = vmatpush1.xpose.msra.mxu0 0.0
        %3631 = vmatprep.subr.mxu0 0.0
        %3632 = vmatpush1.xpose.msra.mxu0 0.0
        %3633 = vmatprep.subr.mxu0 0.0
        %3634 = vmatpush1.xpose.msra.mxu0 0.0
        %3635 = vmatprep.subr.mxu0 0.0
        %3636 = vmatpush1.xpose.msra.mxu0 0.0
        %3637 = vmatprep.subr.mxu0 0.0
        %3638 = vmatpush1.xpose.msra.mxu0 0.0
        %3639 = vmatprep.subr.mxu0 0.0
        %3640 = vmatpush1.xpose.msra.mxu0 0.0
        %3641 = vmatprep.subr.mxu0 0.0
        %3642 = vmatpush1.xpose.msra.mxu0 0.0
        %3643 = vmatprep.subr.mxu0 0.0
        %3644 = vmatpush1.xpose.msra.mxu0 0.0
        %3645 = vmatprep.subr.mxu0 0.0
        %3646 = vmatpush1.xpose.msra.mxu0 0.0
        %3647 = vmatprep.subr.mxu0 0.0
        %3648 = vmatpush1.xpose.msra.mxu0 0.0
        %3649 = vmatprep.subr.mxu0 0.0
        %3650 = vmatpush1.xpose.msra.mxu0 0.0
        %3651 = vmatprep.subr.mxu0 0.0
        %3652 = vmatpush1.xpose.msra.mxu0 0.0
        %3653 = vmatprep.subr.mxu0 0.0
        %3654 = vmatpush1.xpose.msra.mxu0 0.0
        %3655 = vmatprep.subr.mxu0 0.0
        %3656 = vmatpush1.xpose.msra.mxu0 0.0
        %3657 = vmatprep.mubr.f32.mxu0 %v1405
        %3658 = vmatmul.mubr.f32.gmra.mrb[0].mxu0 %v1404
        %v3659 = vpop.f32.mrb[0].mxu0
        %v3660 = vadd.f32 0.0, %v3659
        %v3661 = vpop.f32.mrb[0].mxu0
        %3662 = vdwg.mxu0
        %3663 = vmatprep.subr.mxu0 %v2273
        %3664 = vmatpush1.xpose.msra.mxu0 %v2271
        %3665 = vmatprep.subr.mxu0 %v2279
        %3666 = vmatpush1.xpose.msra.mxu0 %v2277
        %3667 = vmatprep.subr.mxu0 0.0
        %3668 = vmatpush1.xpose.msra.mxu0 0.0
        %3669 = vmatprep.subr.mxu0 0.0
        %3670 = vmatpush1.xpose.msra.mxu0 0.0
        %3671 = vmatprep.subr.mxu0 0.0
        %3672 = vmatpush1.xpose.msra.mxu0 0.0
        %3673 = vmatprep.subr.mxu0 0.0
        %3674 = vmatpush1.xpose.msra.mxu0 0.0
        %3675 = vmatprep.subr.mxu0 0.0
        %3676 = vmatpush1.xpose.msra.mxu0 0.0
        %3677 = vmatprep.subr.mxu0 0.0
        %3678 = vmatpush1.xpose.msra.mxu0 0.0
        %3679 = vmatprep.subr.mxu0 0.0
        %3680 = vmatpush1.xpose.msra.mxu0 0.0
        %3681 = vmatprep.subr.mxu0 0.0
        %3682 = vmatpush1.xpose.msra.mxu0 0.0
        %3683 = vmatprep.subr.mxu0 0.0
        %3684 = vmatpush1.xpose.msra.mxu0 0.0
        %3685 = vmatprep.subr.mxu0 0.0
        %3686 = vmatpush1.xpose.msra.mxu0 0.0
        %3687 = vmatprep.subr.mxu0 0.0
        %3688 = vmatpush1.xpose.msra.mxu0 0.0
        %3689 = vmatprep.subr.mxu0 0.0
        %3690 = vmatpush1.xpose.msra.mxu0 0.0
        %3691 = vmatprep.subr.mxu0 0.0
        %3692 = vmatpush1.xpose.msra.mxu0 0.0
        %3693 = vmatprep.subr.mxu0 0.0
        %3694 = vmatpush1.xpose.msra.mxu0 0.0
        %3695 = vmatprep.subr.mxu0 0.0
        %3696 = vmatpush1.xpose.msra.mxu0 0.0
        %3697 = vmatprep.subr.mxu0 0.0
        %3698 = vmatpush1.xpose.msra.mxu0 0.0
        %3699 = vmatprep.subr.mxu0 0.0
        %3700 = vmatpush1.xpose.msra.mxu0 0.0
        %3701 = vmatprep.subr.mxu0 0.0
        %3702 = vmatpush1.xpose.msra.mxu0 0.0
        %3703 = vmatprep.subr.mxu0 0.0
        %3704 = vmatpush1.xpose.msra.mxu0 0.0
        %3705 = vmatprep.subr.mxu0 0.0
        %3706 = vmatpush1.xpose.msra.mxu0 0.0
        %3707 = vmatprep.subr.mxu0 0.0
        %3708 = vmatpush1.xpose.msra.mxu0 0.0
        %3709 = vmatprep.subr.mxu0 0.0
        %3710 = vmatpush1.xpose.msra.mxu0 0.0
        %3711 = vmatprep.subr.mxu0 0.0
        %3712 = vmatpush1.xpose.msra.mxu0 0.0
        %3713 = vmatprep.subr.mxu0 0.0
        %3714 = vmatpush1.xpose.msra.mxu0 0.0
        %3715 = vmatprep.subr.mxu0 0.0
        %3716 = vmatpush1.xpose.msra.mxu0 0.0
        %3717 = vmatprep.subr.mxu0 0.0
        %3718 = vmatpush1.xpose.msra.mxu0 0.0
        %3719 = vmatprep.subr.mxu0 0.0
        %3720 = vmatpush1.xpose.msra.mxu0 0.0
        %3721 = vmatprep.subr.mxu0 0.0
        %3722 = vmatpush1.xpose.msra.mxu0 0.0
        %3723 = vmatprep.subr.mxu0 0.0
        %3724 = vmatpush1.xpose.msra.mxu0 0.0
        %3725 = vmatprep.subr.mxu0 0.0
        %3726 = vmatpush1.xpose.msra.mxu0 0.0
        %3727 = vmatprep.mubr.f32.mxu0 %v1407
        %3728 = vmatmul.mubr.f32.gmra.mrb[0].mxu0 %v1406
        %v3729 = vpop.f32.mrb[0].mxu0
        %v3730 = vadd.f32 %v3660, %v3729
        %v3731 = vpop.f32.mrb[0].mxu0
        %3732 = vdwg.mxu0
        %3733 = vmatprep.subr.mxu0 0.0
        %3734 = vmatpush1.xpose.msra.mxu0 %v2498
        %3735 = vmatprep.subr.mxu0 0.0
        %3736 = vmatpush1.xpose.msra.mxu0 %v2503
        %3737 = vmatprep.subr.mxu0 0.0
        %3738 = vmatpush1.xpose.msra.mxu0 0.0
        %3739 = vmatprep.subr.mxu0 0.0
        %3740 = vmatpush1.xpose.msra.mxu0 0.0
        %3741 = vmatprep.subr.mxu0 0.0
        %3742 = vmatpush1.xpose.msra.mxu0 0.0
        %3743 = vmatprep.subr.mxu0 0.0
        %3744 = vmatpush1.xpose.msra.mxu0 0.0
        %3745 = vmatprep.subr.mxu0 0.0
        %3746 = vmatpush1.xpose.msra.mxu0 0.0
        %3747 = vmatprep.subr.mxu0 0.0
        %3748 = vmatpush1.xpose.msra.mxu0 0.0
        %3749 = vmatprep.subr.mxu0 0.0
        %3750 = vmatpush1.xpose.msra.mxu0 0.0
        %3751 = vmatprep.subr.mxu0 0.0
        %3752 = vmatpush1.xpose.msra.mxu0 0.0
        %3753 = vmatprep.subr.mxu0 0.0
        %3754 = vmatpush1.xpose.msra.mxu0 0.0
        %3755 = vmatprep.subr.mxu0 0.0
        %3756 = vmatpush1.xpose.msra.mxu0 0.0
        %3757 = vmatprep.subr.mxu0 0.0
        %3758 = vmatpush1.xpose.msra.mxu0 0.0
        %3759 = vmatprep.subr.mxu0 0.0
        %3760 = vmatpush1.xpose.msra.mxu0 0.0
        %3761 = vmatprep.subr.mxu0 0.0
        %3762 = vmatpush1.xpose.msra.mxu0 0.0
        %3763 = vmatprep.subr.mxu0 0.0
        %3764 = vmatpush1.xpose.msra.mxu0 0.0
        %3765 = vmatprep.subr.mxu0 0.0
        %3766 = vmatpush1.xpose.msra.mxu0 0.0
        %3767 = vmatprep.subr.mxu0 0.0
        %3768 = vmatpush1.xpose.msra.mxu0 0.0
        %3769 = vmatprep.subr.mxu0 0.0
        %3770 = vmatpush1.xpose.msra.mxu0 0.0
        %3771 = vmatprep.subr.mxu0 0.0
        %3772 = vmatpush1.xpose.msra.mxu0 0.0
        %3773 = vmatprep.subr.mxu0 0.0
        %3774 = vmatpush1.xpose.msra.mxu0 0.0
        %3775 = vmatprep.subr.mxu0 0.0
        %3776 = vmatpush1.xpose.msra.mxu0 0.0
        %3777 = vmatprep.subr.mxu0 0.0
        %3778 = vmatpush1.xpose.msra.mxu0 0.0
        %3779 = vmatprep.subr.mxu0 0.0
        %3780 = vmatpush1.xpose.msra.mxu0 0.0
        %3781 = vmatprep.subr.mxu0 0.0
        %3782 = vmatpush1.xpose.msra.mxu0 0.0
        %3783 = vmatprep.subr.mxu0 0.0
        %3784 = vmatpush1.xpose.msra.mxu0 0.0
        %3785 = vmatprep.subr.mxu0 0.0
        %3786 = vmatpush1.xpose.msra.mxu0 0.0
        %3787 = vmatprep.subr.mxu0 0.0
        %3788 = vmatpush1.xpose.msra.mxu0 0.0
        %3789 = vmatprep.subr.mxu0 0.0
        %3790 = vmatpush1.xpose.msra.mxu0 0.0
        %3791 = vmatprep.subr.mxu0 0.0
        %3792 = vmatpush1.xpose.msra.mxu0 0.0
        %3793 = vmatprep.subr.mxu0 0.0
        %3794 = vmatpush1.xpose.msra.mxu0 0.0
        %3795 = vmatprep.subr.mxu0 0.0
        %3796 = vmatpush1.xpose.msra.mxu0 0.0
        %3797 = vmatprep.mubr.f32.mxu0 0.0
        %3798 = vmatmul.mubr.f32.gmra.mrb[0].mxu0 %v1408
        %v3799 = vpop.f32.mrb[0].mxu0
        %v3800 = vadd.f32 %v3730, %v3799
        %v3801 = vpop.f32.mrb[0].mxu0
        %3802 = vdwg.mxu0
        %vm3803 = vcmask 130048
        %v3804 = vsel %vm3803, %v3800, -inf
        %3805 = vmax.xlane.f32.xlu0 %v3804
        %v3806 = vpop.xlane.xlu0 %3805
        %v3807 = vsub.f32 %v3800, %v3806
        %v3808 = vmul.f32 %v3807, 1.442695
        %v3809 = vpow.pop %v3808
        %v3810 = vsel %vm3803, %v3809, 0.0
        %3811 = vadd.xlane.f32.xlu0 %v3810
        %v3812 = vpop.xlane.xlu0 %3811
        %v3813 = vrcp.pop %v3812
        %v3814 = vmul.f32 1.0, %v3813
        %v3815 = vmul.f32 %v3809, %v3814
        %3816 = vst.msk [vmem:[%s361] sm:$0xff] %vm3803, %v3815
        %v3817 = vpack.c.bf16 %v3815, %v3815
        %v3818 = vpack.c.bf16 %v3133, %v3127
        %v3819 = vpack.c.bf16 %v3135, %v3129
        %v3820 = vpack.c.bf16 %v3364, %v3358
        %v3821 = vpack.c.bf16 %v3366, %v3360
        %v3822 = vpack.c.bf16 %v3590, %v3585
        %v3824 = vsel %vm3803, %v3817, 0
        %3826 = vmatprep.subr.bf16.mxu0 %v3819
        %3827 = vmatpush1.bf16.msra.mxu0 %v3818
        %3828 = vmatprep.subr.bf16.mxu0 0
        %3829 = vmatpush1.bf16.msra.mxu0 0
        %3830 = vmatprep.subr.bf16.mxu0 0
        %3831 = vmatpush1.bf16.msra.mxu0 0
        %3832 = vmatprep.subr.bf16.mxu0 0
        %3833 = vmatpush1.bf16.msra.mxu0 0
        %3834 = vmatprep.subr.bf16.mxu0 0
        %3835 = vmatpush1.bf16.msra.mxu0 0
        %3836 = vmatprep.subr.bf16.mxu0 0
        %3837 = vmatpush1.bf16.msra.mxu0 0
        %3838 = vmatprep.subr.bf16.mxu0 0
        %3839 = vmatpush1.bf16.msra.mxu0 0
        %3840 = vmatprep.subr.bf16.mxu0 0
        %3841 = vmatpush1.bf16.msra.mxu0 0
        %3842 = vmatprep.subr.bf16.mxu0 0
        %3843 = vmatpush1.bf16.msra.mxu0 0
        %3844 = vmatprep.subr.bf16.mxu0 0
        %3845 = vmatpush1.bf16.msra.mxu0 0
        %3846 = vmatprep.subr.bf16.mxu0 0
        %3847 = vmatpush1.bf16.msra.mxu0 0
        %3848 = vmatprep.subr.bf16.mxu0 0
        %3849 = vmatpush1.bf16.msra.mxu0 0
        %3850 = vmatprep.subr.bf16.mxu0 0
        %3851 = vmatpush1.bf16.msra.mxu0 0
        %3852 = vmatprep.subr.bf16.mxu0 0
        %3853 = vmatpush1.bf16.msra.mxu0 0
        %3854 = vmatprep.subr.bf16.mxu0 0
        %3855 = vmatpush1.bf16.msra.mxu0 0
        %3856 = vmatprep.subr.bf16.mxu0 0
        %3857 = vmatpush1.bf16.msra.mxu0 0
        %3858 = vmatprep.mubr.bf16.mxu0 0
        %3859 = vmatmul.mubr.bf16.gmra.mrb[0].mxu0 %v3824
        %v3860 = vpop.f32.mrb[0].mxu0
        %v3861 = vadd.f32 0.0, %v3860
        %v3862 = vpop.f32.mrb[0].mxu0
        %v3863 = vadd.f32 0.0, %v3862
        %v3864 = vpop.f32.mrb[0].mxu0
        %v3865 = vpop.f32.mrb[0].mxu0
        %3866 = vdwg.mxu0
        %3867 = vmatprep.subr.bf16.mxu0 %v3821
        %3868 = vmatpush1.bf16.msra.mxu0 %v3820
        %3869 = vmatprep.subr.bf16.mxu0 0
        %3870 = vmatpush1.bf16.msra.mxu0 0
        %3871 = vmatprep.subr.bf16.mxu0 0
        %3872 = vmatpush1.bf16.msra.mxu0 0
        %3873 = vmatprep.subr.bf16.mxu0 0
        %3874 = vmatpush1.bf16.msra.mxu0 0
        %3875 = vmatprep.subr.bf16.mxu0 0
        %3876 = vmatpush1.bf16.msra.mxu0 0
        %3877 = vmatprep.subr.bf16.mxu0 0
        %3878 = vmatpush1.bf16.msra.mxu0 0
        %3879 = vmatprep.subr.bf16.mxu0 0
        %3880 = vmatpush1.bf16.msra.mxu0 0
        %3881 = vmatprep.subr.bf16.mxu0 0
        %3882 = vmatpush1.bf16.msra.mxu0 0
        %3883 = vmatprep.subr.bf16.mxu0 0
        %3884 = vmatpush1.bf16.msra.mxu0 0
        %3885 = vmatprep.subr.bf16.mxu0 0
        %3886 = vmatpush1.bf16.msra.mxu0 0
        %3887 = vmatprep.subr.bf16.mxu0 0
        %3888 = vmatpush1.bf16.msra.mxu0 0
        %3889 = vmatprep.subr.bf16.mxu0 0
        %3890 = vmatpush1.bf16.msra.mxu0 0
        %3891 = vmatprep.subr.bf16.mxu0 0
        %3892 = vmatpush1.bf16.msra.mxu0 0
        %3893 = vmatprep.subr.bf16.mxu0 0
        %3894 = vmatpush1.bf16.msra.mxu0 0
        %3895 = vmatprep.subr.bf16.mxu0 0
        %3896 = vmatpush1.bf16.msra.mxu0 0
        %3897 = vmatprep.subr.bf16.mxu0 0
        %3898 = vmatpush1.bf16.msra.mxu0 0
        %3899 = vmatprep.mubr.bf16.mxu0 0
        %3900 = vmatmul.mubr.bf16.gmra.mrb[0].mxu0 %v3824
        %v3901 = vpop.f32.mrb[0].mxu0
        %v3902 = vadd.f32 0.0, %v3901
        %v3903 = vpop.f32.mrb[0].mxu0
        %v3904 = vadd.f32 0.0, %v3903
        %v3905 = vpop.f32.mrb[0].mxu0
        %v3906 = vpop.f32.mrb[0].mxu0
        %3907 = vdwg.mxu0
        %3908 = vmatprep.subr.bf16.mxu0 0
        %3909 = vmatpush1.bf16.msra.mxu0 %v3822
        %3910 = vmatprep.subr.bf16.mxu0 0
        %3911 = vmatpush1.bf16.msra.mxu0 0
        %3912 = vmatprep.subr.bf16.mxu0 0
        %3913 = vmatpush1.bf16.msra.mxu0 0
        %3914 = vmatprep.subr.bf16.mxu0 0
        %3915 = vmatpush1.bf16.msra.mxu0 0
        %3916 = vmatprep.subr.bf16.mxu0 0
        %3917 = vmatpush1.bf16.msra.mxu0 0
        %3918 = vmatprep.subr.bf16.mxu0 0
        %3919 = vmatpush1.bf16.msra.mxu0 0
        %3920 = vmatprep.subr.bf16.mxu0 0
        %3921 = vmatpush1.bf16.msra.mxu0 0
        %3922 = vmatprep.subr.bf16.mxu0 0
        %3923 = vmatpush1.bf16.msra.mxu0 0
        %3924 = vmatprep.subr.bf16.mxu0 0
        %3925 = vmatpush1.bf16.msra.mxu0 0
        %3926 = vmatprep.subr.bf16.mxu0 0
        %3927 = vmatpush1.bf16.msra.mxu0 0
        %3928 = vmatprep.subr.bf16.mxu0 0
        %3929 = vmatpush1.bf16.msra.mxu0 0
        %3930 = vmatprep.subr.bf16.mxu0 0
        %3931 = vmatpush1.bf16.msra.mxu0 0
        %3932 = vmatprep.subr.bf16.mxu0 0
        %3933 = vmatpush1.bf16.msra.mxu0 0
        %3934 = vmatprep.subr.bf16.mxu0 0
        %3935 = vmatpush1.bf16.msra.mxu0 0
        %3936 = vmatprep.subr.bf16.mxu0 0
        %3937 = vmatpush1.bf16.msra.mxu0 0
        %3938 = vmatprep.subr.bf16.mxu0 0
        %3939 = vmatpush1.bf16.msra.mxu0 0
        %3940 = vmatprep.mubr.bf16.mxu0 0
        %3941 = vmatmul.mubr.bf16.gmra.mrb[0].mxu0 %v3824
        %v3942 = vpop.f32.mrb[0].mxu0
        %v3943 = vadd.f32 0.0, %v3942
        %v3944 = vpop.f32.mrb[0].mxu0
        %v3945 = vpop.f32.mrb[0].mxu0
        %v3946 = vpop.f32.mrb[0].mxu0
        %3947 = vdwg.mxu0
        %3948 = vst [vmem:[%s354] sm:$0xff] %v3861
        %3949 = vst [vmem:[%s354 + $0x8] sm:$0xff] %v3863
        %3950 = vst [vmem:[%s354 + $0x10] sm:$0xff] %v3902
        %3951 = vst [vmem:[%s354 + $0x18] sm:$0xff] %v3904
        %3952 = vst [vmem:[%s354 + $0x20] sm:$0xff] %v3943
        %s3953 = sand.u32 %s154, 1
        %s3954 = scalar_lea.sflag [#allocation4], %s3953
        %s3955 = sand.u32 %s154, 1
        %s3956 = smul.addr %s3955, 40
        %s3957 = scalar_lea.vmem [#allocation11], %s3956
        %s3958 = sand.u32 %s180, 1
        %s3959 = scalar_lea.sflag [#allocation13], %s3958
        %s3960 = sand.u32 %s180, 1
        %s3961 = smul.addr %s3960, 8
        %s3962 = scalar_lea.vmem [#allocation12], %s3961
        // Predicated region
        $region61: #{cross_attention.1} parent=39 // pred_check
          %p3963 = pneg %p164
        $region62: #{cross_attention.1} parent=39 // pred_check_branch
          %3965 = sbr.rel (%p3963) target = $region64
        $region63: #{cross_attention.1} parent=39 // pred_region
          %s3967 = ssub.s32 640, 640
          %3968 = vsyncadd %s3954, %s3967
          %s3969 = smul.addr %s31, 5
          %s3970 = smul.addr %s3969, 128
          %s3971 = scalar_lea.hbm %s5, %s3970
          %s3973 = sshll.u32 %s3957, 4
          %s3974 = int_to_ptr.vmem [resolvable:$true] %s3973
          %3976 = dma.vmem_to_hbm [thread:$0]  %s3974, 640, %s3971, %s3954
        $region64: #{cross_attention.1} parent=39 // pred_fallthru
          _
        // Predicated region
        $region65: #{cross_attention.1} parent=39 // pred_check
          %p3977 = pneg %p190
        $region66: #{cross_attention.1} parent=39 // pred_check_branch
          %3979 = sbr.rel (%p3977) target = $region68
        $region67: #{cross_attention.1} parent=39 // pred_region
          %s3981 = ssub.s32 128, 128
          %3982 = vsyncadd %s3959, %s3981
          %s3983 = smul.addr %s31, 128
          %s3984 = scalar_lea.hbm %s6, %s3983
          %s3986 = sshll.u32 %s3962, 4
          %s3987 = int_to_ptr.vmem [resolvable:$true] %s3986
          %3989 = dma.vmem_to_hbm [thread:$0]  %s3987, 128, %s3984, %s3959
        $region68: #{cross_attention.1} parent=39 // pred_fallthru
          _
      $region40: #{cross_attention.1} parent=5 // pred_fallthru
        _
      %p3990 = scmp.le.s32.totalorder 2, %s26
      // Predicated region
      $region69: #{cross_attention.1} parent=5 // pred_check
        %p3991 = pneg %p3990
      $region70: #{cross_attention.1} parent=5 // pred_check_branch
        %3993 = sbr.rel (%p3991) target = $region72
      $region71: #{cross_attention.1} parent=5 // pred_region
        %s3994 = ssub.s32 %s26, 2
        // Predicated region
        $region73: #{cross_attention.1} parent=71 // pred_check
          %p3995 = pneg %p170
        $region74: #{cross_attention.1} parent=71 // pred_check_branch
          %3997 = sbr.rel (%p3995) target = $region76
        $region75: #{cross_attention.1} parent=71 // pred_region
          %s3998 = sand.u32 %s155, 1
          %s3999 = scalar_lea.sflag [#allocation4], %s3998
          %s4000 = sand.u32 %s155, 1
          %s4001 = smul.addr %s4000, 40
          %s4002 = scalar_lea.vmem [#allocation11], %s4001
          %4003 = dma.done %s3999, 640
        $region76: #{cross_attention.1} parent=71 // pred_fallthru
          _
        // Predicated region
        $region77: #{cross_attention.1} parent=71 // pred_check
          %p4004 = pneg %p196
        $region78: #{cross_attention.1} parent=71 // pred_check_branch
          %4006 = sbr.rel (%p4004) target = $region80
        $region79: #{cross_attention.1} parent=71 // pred_region
          %s4007 = sand.u32 %s181, 1
          %s4008 = scalar_lea.sflag [#allocation13], %s4007
          %s4009 = sand.u32 %s181, 1
          %s4010 = smul.addr %s4009, 8
          %s4011 = scalar_lea.vmem [#allocation12], %s4010
          %4012 = dma.done %s4008, 128
        $region80: #{cross_attention.1} parent=71 // pred_fallthru
          _
      $region72: #{cross_attention.1} parent=5 // pred_fallthru
        _
    $region6: #{cross_attention.1} parent=1 // loop_footer
      %s30 = sadd.s32 1, %s26
    $region7: #{cross_attention.1} parent=1 // loop_footer_branch
      %25 = sbr.rel target = $region3
    $region8: #{cross_attention.1} parent=1 // loop_exit
      _
    %4013 = vsyncpa [#allocation3], 1
    %s4014 = scalar_lea.sflag [#allocation3], 1
    %4015 = vsyncpa %s4014, 1
    %4016 = vsyncpa [#allocation6], 1
    %s4017 = scalar_lea.sflag [#allocation6], 1
    %4018 = vsyncpa %s4017, 1
    %4019 = vsyncpa [#allocation9], 1
    %4020 = vsyncpa [#allocation4], 1
    %s4021 = scalar_lea.sflag [#allocation4], 1
    %4022 = vsyncpa %s4021, 1
    %4023 = vsyncpa [#allocation13], 1
    %s4024 = scalar_lea.sflag [#allocation13], 1
    %4025 = vsyncpa %s4024, 1

</llo_original>
